<compile_context>
chip_gen: v5e
topology: v5e:2x2
jax: 0.10.0
libtpu: 0.0.40
codegen_flags: <defaults>
</compile_context>

<pallas_src>
import functools

import jax
import jax.numpy as jnp
from jax import lax
from jax.experimental import pallas as pl
from jax.experimental.pallas import tpu as pltpu

# ----------------------------- configuration -------------------------------
B = 2            # batch
C = 4            # image channels
IMG = 16         # spatial size (H = W)
PATCH = 4        # patch size
P_PER_IMG = (IMG // PATCH) ** 2          # 16 patches per image
N_TOK = 2 * P_PER_IMG                    # img tokens + gt_img tokens = 32
D = 32           # model dim
HEADS = 2
DH = D // HEADS  # 16
DEPTH = 2        # number of Attention modules -> number of recordings
MLP = 64
NUM_CLASSES = 10
PATCH_DIM = C * PATCH * PATCH            # 64
LANES = 128
ATT_SLAB = DEPTH * HEADS * N_TOK         # 128: lane-dense probs slab width

# ------------------- packed-parameter layout (static offsets) ---------------
# w_rows: (W_ROWS_TOTAL, D) row-stacked D-column weight matrices.
W_PATCH_ROW = 0                                   # w_patch      (PATCH_DIM, D)
W_M2_ROW = PATCH_DIM                              # w_m2[l]      (MLP, D) per layer
W_O_ROW = W_M2_ROW + DEPTH * MLP                  # w_o[l]       (D, D) per layer
W_POS_ROW = W_O_ROW + DEPTH * D                   # pos          (N_TOK, D)
W_ROWS_TOTAL = W_POS_ROW + N_TOK                  # 288

# vecs: (VECS_ROWS, 128): one 128-lane-padded vector per row + padded w_head.
ROW_B_PATCH, ROW_LNF_G, ROW_LNF_B, ROW_B_HEAD = 0, 1, 2, 3
ROW_LAYER0 = 4
ROWS_PER_LAYER = 7 + 3 * HEADS                    # 13


def _lrow(l, off):
    return ROW_LAYER0 + l * ROWS_PER_LAYER + off


def _row_ln1g(l): return _lrow(l, 0)
def _row_ln1b(l): return _lrow(l, 1)
def _row_ln2g(l): return _lrow(l, 2)
def _row_ln2b(l): return _lrow(l, 3)
def _row_bo(l): return _lrow(l, 4)
def _row_bm1(l): return _lrow(l, 5)
def _row_bm2(l): return _lrow(l, 6)
def _row_bq(l, hd): return _lrow(l, 7 + 3 * hd + 0)
def _row_bk(l, hd): return _lrow(l, 7 + 3 * hd + 1)
def _row_bv(l, hd): return _lrow(l, 7 + 3 * hd + 2)


W_HEAD_ROW = 32                                   # zero-padded (D, 128) head weight
VECS_ROWS = W_HEAD_ROW + D                        # 64
assert ROW_LAYER0 + DEPTH * ROWS_PER_LAYER <= W_HEAD_ROW


# ----------------------------- fused Pallas kernel ---------------------------
def _fused_kernel(patches_ref, w_qkvh_ref, w_rows_ref, w_m1s_ref, vecs_ref,
                  pred_ref, probs_ref, *, bb):
    """One grid step processes `bb` batch elements; everything stays in VMEM."""
    f32 = jnp.float32

    def vec(row, width):                          # (1, width) bias/γ/β row
        return vecs_ref[row:row + 1, :width]

    def ln(x, row_g, row_b, eps=1e-5):
        mu = jnp.mean(x, axis=-1, keepdims=True)
        var = jnp.mean((x - mu) ** 2, axis=-1, keepdims=True)
        return (x - mu) * lax.rsqrt(var + eps) * vec(row_g, D) + vec(row_b, D)

    # merged patch embedding for all bb batch elements: one MXU pass.
    w_patch = w_rows_ref[W_PATCH_ROW:W_PATCH_ROW + PATCH_DIM, :]   # (64, D)
    pos = w_rows_ref[W_POS_ROW:W_POS_ROW + N_TOK, :]               # (N, D)
    x = jnp.dot(patches_ref[...], w_patch, preferred_element_type=f32)
    x = x + vec(ROW_B_PATCH, D)
    x = x + (jnp.concatenate([pos] * bb, axis=0) if bb > 1 else pos)

    dn = (((1,), (1,)), ((), ()))       # q @ k^T without materializing k.T
    probs_tiles = [[] for _ in range(bb)]         # per batch, lane-concat later

    for l in range(DEPTH):                                    # static unroll
        # ---------------- attention (per-head accumulation) -----------------
        h = ln(x, _row_ln1g(l), _row_ln1b(l))
        attn_out = [None] * bb
        for hd in range(HEADS):                               # static unroll
            base = (l * HEADS + hd) * 3
            # per-head projections from lane-0-aligned slabs (all bb*N rows);
            # softmax scale is folded into the q weights/bias at pack time.
            q = jnp.dot(h, w_qkvh_ref[base + 0],
                        preferred_element_type=f32) + vec(_row_bq(l, hd), DH)
            k = jnp.dot(h, w_qkvh_ref[base + 1],
                        preferred_element_type=f32) + vec(_row_bk(l, hd), DH)
            v = jnp.dot(h, w_qkvh_ref[base + 2],
                        preferred_element_type=f32) + vec(_row_bv(l, hd), DH)
            r_o = W_O_ROW + l * D + hd * DH
            w_o_hd = w_rows_ref[r_o:r_o + DH, :]              # (DH, D)
            for b in range(bb):                               # static unroll
                r0 = b * N_TOK
                qb = q[r0:r0 + N_TOK]
                kb = k[r0:r0 + N_TOK]
                vb = v[r0:r0 + N_TOK]
                s = lax.dot_general(qb, kb, dn, preferred_element_type=f32)
                s = s - jnp.max(s, axis=-1, keepdims=True)
                e = jnp.exp(s)
                p = e / jnp.sum(e, axis=-1, keepdims=True)    # exact probs
                probs_tiles[b].append(p)                      # "forward hook"
                c = jnp.dot(jnp.dot(p, vb, preferred_element_type=f32),
                            w_o_hd, preferred_element_type=f32)   # (N, D)
                attn_out[b] = c if attn_out[b] is None else attn_out[b] + c
        o = jnp.concatenate(attn_out, axis=0) if bb > 1 else attn_out[0]
        x = x + o + vec(_row_bo(l), D)

        # ---------------------------- MLP ------------------------------------
        h2 = ln(x, _row_ln2g(l), _row_ln2b(l))
        m = jnp.dot(h2, w_m1s_ref[l],
                    preferred_element_type=f32) + vec(_row_bm1(l), MLP)
        m = jax.nn.gelu(m)
        r_m2 = W_M2_ROW + l * MLP
        x = x + jnp.dot(m, w_rows_ref[r_m2:r_m2 + MLP, :],
                        preferred_element_type=f32) + vec(_row_bm2(l), D)

    # ------------------------- head (128-lane padded) -------------------------
    x = ln(x, ROW_LNF_G, ROW_LNF_B)
    pooled = [jnp.mean(x[b * N_TOK:(b + 1) * N_TOK], axis=0, keepdims=True)
              for b in range(bb)]
    pooled = jnp.concatenate(pooled, axis=0) if bb > 1 else pooled[0]   # (bb, D)
    w_head = vecs_ref[W_HEAD_ROW:W_HEAD_ROW + D, :]                     # (D, 128)
    pred = jnp.dot(pooled, w_head,
                   preferred_element_type=f32) + vec(ROW_B_HEAD, LANES)
    pred_ref[...] = pred[:, None, :]                                    # (bb,1,128)

    # lane-dense probs slab: one unmasked full-width store per batch element.
    for b in range(bb):
        probs_ref[b * N_TOK:(b + 1) * N_TOK, :] = \
            jnp.concatenate(probs_tiles[b], axis=-1)                    # (N, 128)


# ----------------------------- plain-JAX glue -------------------------------
def patchify(img):
    """NCHW image -> (B, num_patches, C*patch*patch)."""
    b, c, h, w = img.shape
    x = img.reshape(b, c, h // PATCH, PATCH, w // PATCH, PATCH)
    x = x.transpose(0, 2, 4, 1, 3, 5)
    return x.reshape(b, (h // PATCH) * (w // PATCH), c * PATCH * PATCH)


def _batches_per_grid_step():
    """Fold the batch on single-TensorCore chips; grid=(B,) on multi-TC chips."""
    try:
        kind = jax.devices()[0].device_kind.lower()
    except Exception:
        return B
    if "v7" in kind or "v4" in kind:
        return 1                                   # 2 TensorCores per device
    if "v5" in kind and "lite" not in kind and "5e" not in kind:
        return 1                                   # v5p (megacore)
    return B                                       # v2/v3/v5e/v6e: single TC


def pack_params(params):
    """Pack the parameter dict into 4 VMEM-friendly slabs (done ONCE, at init)."""
    scale = DH ** -0.5
    f32 = jnp.float32

    # (DEPTH*HEADS*3, D, DH) per-head q/k/v weights; softmax scale folded into q.
    slabs = []
    for l in range(DEPTH):
        w = params["w_qkv"][l]
        for hd in range(HEADS):
            slabs.append(w[:, hd * DH:(hd + 1) * DH] * scale)
            slabs.append(w[:, D + hd * DH:D + (hd + 1) * DH])
            slabs.append(w[:, 2 * D + hd * DH:2 * D + (hd + 1) * DH])
    w_qkvh = jnp.stack(slabs, axis=0).astype(f32)

    # (W_ROWS_TOTAL, D) row-stacked: patch-embed, mlp-out, attn-out, pos.
    rows = [params["w_patch"]]
    rows += [params["w_m2"][l] for l in range(DEPTH)]
    rows += [params["w_o"][l] for l in range(DEPTH)]
    rows += [params["pos"][0]]
    w_rows = jnp.concatenate(rows, axis=0).astype(f32)
    assert w_rows.shape == (W_ROWS_TOTAL, D)

    w_m1s = params["w_m1"].astype(f32)                       # (DEPTH, D, MLP)

    # (VECS_ROWS, 128): one 128-lane padded vector per row + zero-padded w_head.
    vecs = jnp.zeros((VECS_ROWS, LANES), f32)

    def put(vs, row, v):
        v = jnp.ravel(v).astype(f32)
        return vs.at[row, :v.shape[0]].set(v)

    vecs = put(vecs, ROW_B_PATCH, params["b_patch"])
    vecs = put(vecs, ROW_LNF_G, params["lnf_g"])
    vecs = put(vecs, ROW_LNF_B, params["lnf_b"])
    vecs = put(vecs, ROW_B_HEAD, params["b_head"])
    for l in range(DEPTH):
        vecs = put(vecs, _row_ln1g(l), params["ln1_g"][l])
        vecs = put(vecs, _row_ln1b(l), params["ln1_b"][l])
        vecs = put(vecs, _row_ln2g(l), params["ln2_g"][l])
        vecs = put(vecs, _row_ln2b(l), params["ln2_b"][l])
        vecs = put(vecs, _row_bo(l), params["b_o"][l])
        vecs = put(vecs, _row_bm1(l), params["b_m1"][l])
        vecs = put(vecs, _row_bm2(l), params["b_m2"][l])
        bq = params["b_qkv"][l][0]
        for hd in range(HEADS):
            vecs = put(vecs, _row_bq(l, hd), bq[hd * DH:(hd + 1) * DH] * scale)
            vecs = put(vecs, _row_bk(l, hd), bq[D + hd * DH:D + (hd + 1) * DH])
            vecs = put(vecs, _row_bv(l, hd),
                       bq[2 * D + hd * DH:2 * D + (hd + 1) * DH])
    w_head_p = jnp.zeros((D, LANES), f32).at[:, :NUM_CLASSES].set(params["w_head"])
    vecs = vecs.at[W_HEAD_ROW:W_HEAD_ROW + D, :].set(w_head_p)

    return w_qkvh, w_rows, w_m1s, vecs


def recorder_forward(packed, img, gt_img):
    """Mirrors Recorder.forward: returns (pred, attns)."""
    w_qkvh, w_rows, w_m1s, vecs = packed
    # both images' patches concatenated -> one token matrix per batch element.
    patches = jnp.concatenate([patchify(img), patchify(gt_img)], axis=1)
    patches = patches.reshape(B * N_TOK, PATCH_DIM)

    bb = _batches_per_grid_step()
    kern = functools.partial(_fused_kernel, bb=bb)

    pred_pad, probs_flat = pl.pallas_call(
        kern,
        out_shape=(
            jax.ShapeDtypeStruct((B, 1, LANES), jnp.float32),
            jax.ShapeDtypeStruct((B * N_TOK, ATT_SLAB), jnp.float32),
        ),
        grid=(B // bb,),
        in_specs=[
            pl.BlockSpec((bb * N_TOK, PATCH_DIM), lambda i: (i, 0)),
            pl.BlockSpec(w_qkvh.shape, lambda i: (0, 0, 0)),
            pl.BlockSpec(w_rows.shape, lambda i: (0, 0)),
            pl.BlockSpec(w_m1s.shape, lambda i: (0, 0, 0)),
            pl.BlockSpec(vecs.shape, lambda i: (0, 0)),
        ],
        out_specs=(
            pl.BlockSpec((bb, 1, LANES), lambda i: (i, 0, 0)),
            pl.BlockSpec((bb * N_TOK, ATT_SLAB), lambda i: (i, 0)),
        ),
        compiler_params=pltpu.CompilerParams(
            dimension_semantics=("parallel",),
        ),
    )(patches, w_qkvh, w_rows, w_m1s, vecs)

    pred = pred_pad.reshape(B, LANES)[:, :NUM_CLASSES]
    # lane-dense slab -> (B, depth, H, N, N), matching torch.stack(recordings, 1)
    attns = probs_flat.reshape(B, N_TOK, DEPTH, HEADS, N_TOK)
    attns = attns.transpose(0, 2, 3, 1, 4)
    return pred, attns


def init_params(key):
    ks = iter(jax.random.split(key, 16))

    def nrm(shape):
        return 0.02 * jax.random.normal(next(ks), shape, jnp.float32)

    return {
        "w_patch": nrm((PATCH_DIM, D)),
        "b_patch": jnp.zeros((1, D), jnp.float32),
        "pos": nrm((1, N_TOK, D)),
        "ln1_g": jnp.ones((DEPTH, 1, D), jnp.float32),
        "ln1_b": jnp.zeros((DEPTH, 1, D), jnp.float32),
        "w_qkv": nrm((DEPTH, D, 3 * D)),
        "b_qkv": jnp.zeros((DEPTH, 1, 3 * D), jnp.float32),
        "w_o": nrm((DEPTH, D, D)),
        "b_o": jnp.zeros((DEPTH, 1, D), jnp.float32),
        "ln2_g": jnp.ones((DEPTH, 1, D), jnp.float32),
        "ln2_b": jnp.zeros((DEPTH, 1, D), jnp.float32),
        "w_m1": nrm((DEPTH, D, MLP)),
        "b_m1": jnp.zeros((DEPTH, 1, MLP), jnp.float32),
        "w_m2": nrm((DEPTH, MLP, D)),
        "b_m2": jnp.zeros((DEPTH, 1, D), jnp.float32),
        "lnf_g": jnp.ones((1, D), jnp.float32),
        "lnf_b": jnp.zeros((1, D), jnp.float32),
        "w_head": nrm((D, NUM_CLASSES)),
        "b_head": jnp.zeros((1, NUM_CLASSES), jnp.float32),
    }


def reference_forward(params, img, gt_img):
    """Pure-JAX reference of the same encoder (exact softmax)."""
    def ln(x, g, b, eps=1e-5):
        mu = x.mean(-1, keepdims=True)
        var = ((x - mu) ** 2).mean(-1, keepdims=True)
        return (x - mu) * lax.rsqrt(var + eps) * g + b

    patches = jnp.concatenate([patchify(img), patchify(gt_img)], axis=1)
    x = patches @ params["w_patch"] + params["b_patch"] + params["pos"]
    scale = DH ** -0.5
    recs = []
    for l in range(DEPTH):
        h = ln(x, params["ln1_g"][l], params["ln1_b"][l])
        qkv = h @ params["w_qkv"][l] + params["b_qkv"][l]
        q, k, v = jnp.split(qkv, 3, axis=-1)
        q = q.reshape(B, N_TOK, HEADS, DH).transpose(0, 2, 1, 3)
        k = k.reshape(B, N_TOK, HEADS, DH).transpose(0, 2, 1, 3)
        v = v.reshape(B, N_TOK, HEADS, DH).transpose(0, 2, 1, 3)
        s = jnp.einsum("bhqd,bhkd->bhqk", q, k) * scale
        p = jax.nn.softmax(s, axis=-1)
        recs.append(p)
        o = jnp.einsum("bhqk,bhkd->bhqd", p, v)
        o = o.transpose(0, 2, 1, 3).reshape(B, N_TOK, D)
        x = x + o @ params["w_o"][l] + params["b_o"][l]
        h2 = ln(x, params["ln2_g"][l], params["ln2_b"][l])
        m = jax.nn.gelu(h2 @ params["w_m1"][l] + params["b_m1"][l])
        x = x + m @ params["w_m2"][l] + params["b_m2"][l]
    x = ln(x, params["lnf_g"], params["lnf_b"])
    pred = x.mean(axis=1) @ params["w_head"] + params["b_head"]
    return pred, jnp.stack(recs, axis=1)


# --------------------------------- main -------------------------------------
if __name__ == "__main__":
    key = jax.random.PRNGKey(0)
    k_img, k_gt = jax.random.split(key)
    img = jax.random.normal(k_img, (B, C, IMG, IMG), jnp.float32)      # NCHW
    gt_img = jax.random.normal(k_gt, (B, C, IMG, IMG), jnp.float32)    # NCHW

    params = init_params(jax.random.PRNGKey(42))
    packed = pack_params(params)            # packed ONCE at init (scale folded)

    fwd = jax.jit(recorder_forward)
    pred, attns = fwd(packed, img, gt_img)
    jax.block_until_ready((pred, attns))

    assert pred.shape == (B, NUM_CLASSES), pred.shape
    assert attns.shape == (B, DEPTH, HEADS, N_TOK, N_TOK), attns.shape

    # attention rows are exact probability distributions now (exact softmax div)
    row_sums = attns.sum(axis=-1)
    assert bool(jnp.allclose(row_sums, 1.0, atol=1e-3)), \
        float(jnp.abs(row_sums - 1.0).max())

    # compare against a pure-JAX reference of the same model
    ref_pred, ref_attns = reference_forward(params, img, gt_img)
    assert bool(jnp.allclose(pred, ref_pred, atol=1e-2, rtol=2e-2)), \
        float(jnp.abs(pred - ref_pred).max())
    assert bool(jnp.allclose(attns, ref_attns, atol=2e-3)), \
        float(jnp.abs(attns - ref_attns).max())

    print("KERNEL_OK")
</pallas_src>

<mosaic_0001>
module attributes {stable_mosaic.version = 11 : i64} {
  func.func @_fused_kernel(%arg0: i32, %arg1: memref<64x64xf32, #tpu.memory_space<vmem>>, %arg2: memref<12x32x16xf32, #tpu.memory_space<vmem>>, %arg3: memref<288x32xf32, #tpu.memory_space<vmem>>, %arg4: memref<2x32x64xf32, #tpu.memory_space<vmem>>, %arg5: memref<64x128xf32, #tpu.memory_space<vmem>>, %arg6: memref<2x1x128xf32, #tpu.memory_space<vmem>>, %arg7: memref<64x128xf32, #tpu.memory_space<vmem>>) attributes {dimension_semantics = [#tpu.dimension_semantics<parallel>], iteration_bounds = array<i64: 1>, scalar_prefetch = 0 : i64, scratch_operands = 0 : i64, tpu.core_type = #tpu.core_type<tc>, window_params = [{transform_indices = @transform_0, window_bounds = array<i64: 64, 64>}, {pipeline_mode = #tpu.pipeline_mode<synchronous>, transform_indices = @transform_1, window_bounds = array<i64: 12, 32, 16>}, {pipeline_mode = #tpu.pipeline_mode<synchronous>, transform_indices = @transform_2, window_bounds = array<i64: 288, 32>}, {pipeline_mode = #tpu.pipeline_mode<synchronous>, transform_indices = @transform_3, window_bounds = array<i64: 2, 32, 64>}, {pipeline_mode = #tpu.pipeline_mode<synchronous>, transform_indices = @transform_4, window_bounds = array<i64: 64, 128>}, {transform_indices = @transform_5, window_bounds = array<i64: 2, 1, 128>}, {transform_indices = @transform_6, window_bounds = array<i64: 64, 128>}]} {
    %c0 = arith.constant 0 : index
    %c0_0 = arith.constant 0 : index
    %0 = vector.load %arg3[%c0, %c0_0] : memref<288x32xf32, #tpu.memory_space<vmem>>, vector<64x32xf32>
    %c256 = arith.constant 256 : index
    %c0_1 = arith.constant 0 : index
    %1 = vector.load %arg3[%c256, %c0_1] : memref<288x32xf32, #tpu.memory_space<vmem>>, vector<32x32xf32>
    %c0_2 = arith.constant 0 : index
    %c0_3 = arith.constant 0 : index
    %2 = vector.load %arg1[%c0_2, %c0_3] : memref<64x64xf32, #tpu.memory_space<vmem>>, vector<64x64xf32>
    %cst = arith.constant dense<0.000000e+00> : vector<64x32xf32>
    %3 = tpu.matmul %2, %0, %cst {dimension_numbers = #tpu.dot_dimension_numbers<[1], [0], [0], [1], [0, 0, 1, 1], [], []>} : vector<64x64xf32>, vector<64x32xf32>, vector<64x32xf32> -> vector<64x32xf32>
    %c0_4 = arith.constant 0 : index
    %c0_5 = arith.constant 0 : index
    %4 = vector.load %arg5[%c0_4, %c0_5] : memref<64x128xf32, #tpu.memory_space<vmem>>, vector<1x32xf32>
    %5 = vector.broadcast %4 : vector<1x32xf32> to vector<64x32xf32>
    %6 = arith.addf %3, %5 : vector<64x32xf32>
    %7 = tpu.concatenate %1, %1 in 0 : vector<32x32xf32>, vector<32x32xf32> -> vector<64x32xf32>
    %8 = arith.addf %6, %7 : vector<64x32xf32>
    %cst_6 = arith.constant dense<0.000000e+00> : vector<64xf32>
    %9 = vector.multi_reduction <add>, %8, %cst_6 [1] : vector<64x32xf32> to vector<64xf32>
    %10 = vector.shape_cast %9 : vector<64xf32> to vector<64x1xf32>
    %cst_7 = arith.constant 3.200000e+01 : f32
    %11 = vector.broadcast %cst_7 : f32 to vector<64x1xf32>
    %12 = arith.divf %10, %11 : vector<64x1xf32>
    %13 = vector.broadcast %12 : vector<64x1xf32> to vector<64x32xf32>
    %14 = arith.subf %8, %13 : vector<64x32xf32>
    %15 = arith.mulf %14, %14 : vector<64x32xf32>
    %cst_8 = arith.constant dense<0.000000e+00> : vector<64xf32>
    %16 = vector.multi_reduction <add>, %15, %cst_8 [1] : vector<64x32xf32> to vector<64xf32>
    %17 = vector.shape_cast %16 : vector<64xf32> to vector<64x1xf32>
    %cst_9 = arith.constant 3.200000e+01 : f32
    %18 = vector.broadcast %cst_9 : f32 to vector<64x1xf32>
    %19 = arith.divf %17, %18 : vector<64x1xf32>
    %20 = vector.broadcast %12 : vector<64x1xf32> to vector<64x32xf32>
    %21 = arith.subf %8, %20 : vector<64x32xf32>
    %cst_10 = arith.constant 9.99999974E-6 : f32
    %22 = vector.broadcast %cst_10 : f32 to vector<64x1xf32>
    %23 = arith.addf %19, %22 : vector<64x1xf32>
    %24 = math.rsqrt %23 : vector<64x1xf32>
    %25 = vector.broadcast %24 : vector<64x1xf32> to vector<64x32xf32>
    %26 = arith.mulf %21, %25 : vector<64x32xf32>
    %c4 = arith.constant 4 : index
    %c0_11 = arith.constant 0 : index
    %27 = vector.load %arg5[%c4, %c0_11] : memref<64x128xf32, #tpu.memory_space<vmem>>, vector<1x32xf32>
    %28 = vector.broadcast %27 : vector<1x32xf32> to vector<64x32xf32>
    %29 = arith.mulf %26, %28 : vector<64x32xf32>
    %c5 = arith.constant 5 : index
    %c0_12 = arith.constant 0 : index
    %30 = vector.load %arg5[%c5, %c0_12] : memref<64x128xf32, #tpu.memory_space<vmem>>, vector<1x32xf32>
    %31 = vector.broadcast %30 : vector<1x32xf32> to vector<64x32xf32>
    %32 = arith.addf %29, %31 : vector<64x32xf32>
    %c0_13 = arith.constant 0 : index
    %c0_14 = arith.constant 0 : index
    %c0_15 = arith.constant 0 : index
    %33 = vector.load %arg2[%c0_13, %c0_14, %c0_15] : memref<12x32x16xf32, #tpu.memory_space<vmem>>, vector<1x32x16xf32>
    %34 = vector.shape_cast %33 : vector<1x32x16xf32> to vector<32x16xf32>
    %cst_16 = arith.constant dense<0.000000e+00> : vector<64x16xf32>
    %35 = tpu.matmul %32, %34, %cst_16 {dimension_numbers = #tpu.dot_dimension_numbers<[1], [0], [0], [1], [0, 0, 1, 1], [], []>} : vector<64x32xf32>, vector<32x16xf32>, vector<64x16xf32> -> vector<64x16xf32>
    %c11 = arith.constant 11 : index
    %c0_17 = arith.constant 0 : index
    %36 = vector.load %arg5[%c11, %c0_17] : memref<64x128xf32, #tpu.memory_space<vmem>>, vector<1x16xf32>
    %37 = vector.broadcast %36 : vector<1x16xf32> to vector<64x16xf32>
    %38 = arith.addf %35, %37 : vector<64x16xf32>
    %c1 = arith.constant 1 : index
    %c0_18 = arith.constant 0 : index
    %c0_19 = arith.constant 0 : index
    %39 = vector.load %arg2[%c1, %c0_18, %c0_19] : memref<12x32x16xf32, #tpu.memory_space<vmem>>, vector<1x32x16xf32>
    %40 = vector.shape_cast %39 : vector<1x32x16xf32> to vector<32x16xf32>
    %cst_20 = arith.constant dense<0.000000e+00> : vector<64x16xf32>
    %41 = tpu.matmul %32, %40, %cst_20 {dimension_numbers = #tpu.dot_dimension_numbers<[1], [0], [0], [1], [0, 0, 1, 1], [], []>} : vector<64x32xf32>, vector<32x16xf32>, vector<64x16xf32> -> vector<64x16xf32>
    %c12 = arith.constant 12 : index
    %c0_21 = arith.constant 0 : index
    %42 = vector.load %arg5[%c12, %c0_21] : memref<64x128xf32, #tpu.memory_space<vmem>>, vector<1x16xf32>
    %43 = vector.broadcast %42 : vector<1x16xf32> to vector<64x16xf32>
    %44 = arith.addf %41, %43 : vector<64x16xf32>
    %c2 = arith.constant 2 : index
    %c0_22 = arith.constant 0 : index
    %c0_23 = arith.constant 0 : index
    %45 = vector.load %arg2[%c2, %c0_22, %c0_23] : memref<12x32x16xf32, #tpu.memory_space<vmem>>, vector<1x32x16xf32>
    %46 = vector.shape_cast %45 : vector<1x32x16xf32> to vector<32x16xf32>
    %cst_24 = arith.constant dense<0.000000e+00> : vector<64x16xf32>
    %47 = tpu.matmul %32, %46, %cst_24 {dimension_numbers = #tpu.dot_dimension_numbers<[1], [0], [0], [1], [0, 0, 1, 1], [], []>} : vector<64x32xf32>, vector<32x16xf32>, vector<64x16xf32> -> vector<64x16xf32>
    %c13 = arith.constant 13 : index
    %c0_25 = arith.constant 0 : index
    %48 = vector.load %arg5[%c13, %c0_25] : memref<64x128xf32, #tpu.memory_space<vmem>>, vector<1x16xf32>
    %49 = vector.broadcast %48 : vector<1x16xf32> to vector<64x16xf32>
    %50 = arith.addf %47, %49 : vector<64x16xf32>
    %c192 = arith.constant 192 : index
    %c0_26 = arith.constant 0 : index
    %51 = vector.load %arg3[%c192, %c0_26] : memref<288x32xf32, #tpu.memory_space<vmem>>, vector<16x32xf32>
    %52 = vector.extract_strided_slice %38 {offsets = [0, 0], sizes = [32, 16], strides = [1, 1]} : vector<64x16xf32> to vector<32x16xf32>
    %53 = vector.extract_strided_slice %44 {offsets = [0, 0], sizes = [32, 16], strides = [1, 1]} : vector<64x16xf32> to vector<32x16xf32>
    %54 = vector.extract_strided_slice %50 {offsets = [0, 0], sizes = [32, 16], strides = [1, 1]} : vector<64x16xf32> to vector<32x16xf32>
    %cst_27 = arith.constant dense<0.000000e+00> : vector<32x32xf32>
    %55 = tpu.matmul %52, %53, %cst_27 {dimension_numbers = #tpu.dot_dimension_numbers<[1], [1], [0], [0], [0, 0, 1, 0], [], []>} : vector<32x16xf32>, vector<32x16xf32>, vector<32x32xf32> -> vector<32x32xf32>
    %cst_28 = arith.constant dense<0xFF800000> : vector<32xf32>
    %56 = vector.multi_reduction <maximumf>, %55, %cst_28 [1] : vector<32x32xf32> to vector<32xf32>
    %57 = vector.shape_cast %56 : vector<32xf32> to vector<32x1xf32>
    %58 = vector.broadcast %57 : vector<32x1xf32> to vector<32x32xf32>
    %59 = arith.subf %55, %58 : vector<32x32xf32>
    %60 = math.exp %59 : vector<32x32xf32>
    %cst_29 = arith.constant dense<0.000000e+00> : vector<32xf32>
    %61 = vector.multi_reduction <add>, %60, %cst_29 [1] : vector<32x32xf32> to vector<32xf32>
    %62 = vector.shape_cast %61 : vector<32xf32> to vector<32x1xf32>
    %63 = vector.broadcast %62 : vector<32x1xf32> to vector<32x32xf32>
    %64 = arith.divf %60, %63 : vector<32x32xf32>
    %cst_30 = arith.constant dense<0.000000e+00> : vector<32x16xf32>
    %65 = tpu.matmul %64, %54, %cst_30 {dimension_numbers = #tpu.dot_dimension_numbers<[1], [0], [0], [1], [0, 0, 1, 1], [], []>} : vector<32x32xf32>, vector<32x16xf32>, vector<32x16xf32> -> vector<32x16xf32>
    %cst_31 = arith.constant dense<0.000000e+00> : vector<32x32xf32>
    %66 = tpu.matmul %65, %51, %cst_31 {dimension_numbers = #tpu.dot_dimension_numbers<[1], [0], [0], [1], [0, 0, 1, 1], [], []>} : vector<32x16xf32>, vector<16x32xf32>, vector<32x32xf32> -> vector<32x32xf32>
    %67 = vector.extract_strided_slice %38 {offsets = [32, 0], sizes = [32, 16], strides = [1, 1]} : vector<64x16xf32> to vector<32x16xf32>
    %68 = vector.extract_strided_slice %44 {offsets = [32, 0], sizes = [32, 16], strides = [1, 1]} : vector<64x16xf32> to vector<32x16xf32>
    %69 = vector.extract_strided_slice %50 {offsets = [32, 0], sizes = [32, 16], strides = [1, 1]} : vector<64x16xf32> to vector<32x16xf32>
    %cst_32 = arith.constant dense<0.000000e+00> : vector<32x32xf32>
    %70 = tpu.matmul %67, %68, %cst_32 {dimension_numbers = #tpu.dot_dimension_numbers<[1], [1], [0], [0], [0, 0, 1, 0], [], []>} : vector<32x16xf32>, vector<32x16xf32>, vector<32x32xf32> -> vector<32x32xf32>
    %cst_33 = arith.constant dense<0xFF800000> : vector<32xf32>
    %71 = vector.multi_reduction <maximumf>, %70, %cst_33 [1] : vector<32x32xf32> to vector<32xf32>
    %72 = vector.shape_cast %71 : vector<32xf32> to vector<32x1xf32>
    %73 = vector.broadcast %72 : vector<32x1xf32> to vector<32x32xf32>
    %74 = arith.subf %70, %73 : vector<32x32xf32>
    %75 = math.exp %74 : vector<32x32xf32>
    %cst_34 = arith.constant dense<0.000000e+00> : vector<32xf32>
    %76 = vector.multi_reduction <add>, %75, %cst_34 [1] : vector<32x32xf32> to vector<32xf32>
    %77 = vector.shape_cast %76 : vector<32xf32> to vector<32x1xf32>
    %78 = vector.broadcast %77 : vector<32x1xf32> to vector<32x32xf32>
    %79 = arith.divf %75, %78 : vector<32x32xf32>
    %cst_35 = arith.constant dense<0.000000e+00> : vector<32x16xf32>
    %80 = tpu.matmul %79, %69, %cst_35 {dimension_numbers = #tpu.dot_dimension_numbers<[1], [0], [0], [1], [0, 0, 1, 1], [], []>} : vector<32x32xf32>, vector<32x16xf32>, vector<32x16xf32> -> vector<32x16xf32>
    %cst_36 = arith.constant dense<0.000000e+00> : vector<32x32xf32>
    %81 = tpu.matmul %80, %51, %cst_36 {dimension_numbers = #tpu.dot_dimension_numbers<[1], [0], [0], [1], [0, 0, 1, 1], [], []>} : vector<32x16xf32>, vector<16x32xf32>, vector<32x32xf32> -> vector<32x32xf32>
    %c3 = arith.constant 3 : index
    %c0_37 = arith.constant 0 : index
    %c0_38 = arith.constant 0 : index
    %82 = vector.load %arg2[%c3, %c0_37, %c0_38] : memref<12x32x16xf32, #tpu.memory_space<vmem>>, vector<1x32x16xf32>
    %83 = vector.shape_cast %82 : vector<1x32x16xf32> to vector<32x16xf32>
    %cst_39 = arith.constant dense<0.000000e+00> : vector<64x16xf32>
    %84 = tpu.matmul %32, %83, %cst_39 {dimension_numbers = #tpu.dot_dimension_numbers<[1], [0], [0], [1], [0, 0, 1, 1], [], []>} : vector<64x32xf32>, vector<32x16xf32>, vector<64x16xf32> -> vector<64x16xf32>
    %c14 = arith.constant 14 : index
    %c0_40 = arith.constant 0 : index
    %85 = vector.load %arg5[%c14, %c0_40] : memref<64x128xf32, #tpu.memory_space<vmem>>, vector<1x16xf32>
    %86 = vector.broadcast %85 : vector<1x16xf32> to vector<64x16xf32>
    %87 = arith.addf %84, %86 : vector<64x16xf32>
    %c4_41 = arith.constant 4 : index
    %c0_42 = arith.constant 0 : index
    %c0_43 = arith.constant 0 : index
    %88 = vector.load %arg2[%c4_41, %c0_42, %c0_43] : memref<12x32x16xf32, #tpu.memory_space<vmem>>, vector<1x32x16xf32>
    %89 = vector.shape_cast %88 : vector<1x32x16xf32> to vector<32x16xf32>
    %cst_44 = arith.constant dense<0.000000e+00> : vector<64x16xf32>
    %90 = tpu.matmul %32, %89, %cst_44 {dimension_numbers = #tpu.dot_dimension_numbers<[1], [0], [0], [1], [0, 0, 1, 1], [], []>} : vector<64x32xf32>, vector<32x16xf32>, vector<64x16xf32> -> vector<64x16xf32>
    %c15 = arith.constant 15 : index
    %c0_45 = arith.constant 0 : index
    %91 = vector.load %arg5[%c15, %c0_45] : memref<64x128xf32, #tpu.memory_space<vmem>>, vector<1x16xf32>
    %92 = vector.broadcast %91 : vector<1x16xf32> to vector<64x16xf32>
    %93 = arith.addf %90, %92 : vector<64x16xf32>
    %c5_46 = arith.constant 5 : index
    %c0_47 = arith.constant 0 : index
    %c0_48 = arith.constant 0 : index
    %94 = vector.load %arg2[%c5_46, %c0_47, %c0_48] : memref<12x32x16xf32, #tpu.memory_space<vmem>>, vector<1x32x16xf32>
    %95 = vector.shape_cast %94 : vector<1x32x16xf32> to vector<32x16xf32>
    %cst_49 = arith.constant dense<0.000000e+00> : vector<64x16xf32>
    %96 = tpu.matmul %32, %95, %cst_49 {dimension_numbers = #tpu.dot_dimension_numbers<[1], [0], [0], [1], [0, 0, 1, 1], [], []>} : vector<64x32xf32>, vector<32x16xf32>, vector<64x16xf32> -> vector<64x16xf32>
    %c16 = arith.constant 16 : index
    %c0_50 = arith.constant 0 : index
    %97 = vector.load %arg5[%c16, %c0_50] : memref<64x128xf32, #tpu.memory_space<vmem>>, vector<1x16xf32>
    %98 = vector.broadcast %97 : vector<1x16xf32> to vector<64x16xf32>
    %99 = arith.addf %96, %98 : vector<64x16xf32>
    %c208 = arith.constant 208 : index
    %c0_51 = arith.constant 0 : index
    %100 = vector.load %arg3[%c208, %c0_51] : memref<288x32xf32, #tpu.memory_space<vmem>>, vector<16x32xf32>
    %101 = vector.extract_strided_slice %87 {offsets = [0, 0], sizes = [32, 16], strides = [1, 1]} : vector<64x16xf32> to vector<32x16xf32>
    %102 = vector.extract_strided_slice %93 {offsets = [0, 0], sizes = [32, 16], strides = [1, 1]} : vector<64x16xf32> to vector<32x16xf32>
    %103 = vector.extract_strided_slice %99 {offsets = [0, 0], sizes = [32, 16], strides = [1, 1]} : vector<64x16xf32> to vector<32x16xf32>
    %cst_52 = arith.constant dense<0.000000e+00> : vector<32x32xf32>
    %104 = tpu.matmul %101, %102, %cst_52 {dimension_numbers = #tpu.dot_dimension_numbers<[1], [1], [0], [0], [0, 0, 1, 0], [], []>} : vector<32x16xf32>, vector<32x16xf32>, vector<32x32xf32> -> vector<32x32xf32>
    %cst_53 = arith.constant dense<0xFF800000> : vector<32xf32>
    %105 = vector.multi_reduction <maximumf>, %104, %cst_53 [1] : vector<32x32xf32> to vector<32xf32>
    %106 = vector.shape_cast %105 : vector<32xf32> to vector<32x1xf32>
    %107 = vector.broadcast %106 : vector<32x1xf32> to vector<32x32xf32>
    %108 = arith.subf %104, %107 : vector<32x32xf32>
    %109 = math.exp %108 : vector<32x32xf32>
    %cst_54 = arith.constant dense<0.000000e+00> : vector<32xf32>
    %110 = vector.multi_reduction <add>, %109, %cst_54 [1] : vector<32x32xf32> to vector<32xf32>
    %111 = vector.shape_cast %110 : vector<32xf32> to vector<32x1xf32>
    %112 = vector.broadcast %111 : vector<32x1xf32> to vector<32x32xf32>
    %113 = arith.divf %109, %112 : vector<32x32xf32>
    %cst_55 = arith.constant dense<0.000000e+00> : vector<32x16xf32>
    %114 = tpu.matmul %113, %103, %cst_55 {dimension_numbers = #tpu.dot_dimension_numbers<[1], [0], [0], [1], [0, 0, 1, 1], [], []>} : vector<32x32xf32>, vector<32x16xf32>, vector<32x16xf32> -> vector<32x16xf32>
    %cst_56 = arith.constant dense<0.000000e+00> : vector<32x32xf32>
    %115 = tpu.matmul %114, %100, %cst_56 {dimension_numbers = #tpu.dot_dimension_numbers<[1], [0], [0], [1], [0, 0, 1, 1], [], []>} : vector<32x16xf32>, vector<16x32xf32>, vector<32x32xf32> -> vector<32x32xf32>
    %116 = arith.addf %66, %115 : vector<32x32xf32>
    %117 = vector.extract_strided_slice %87 {offsets = [32, 0], sizes = [32, 16], strides = [1, 1]} : vector<64x16xf32> to vector<32x16xf32>
    %118 = vector.extract_strided_slice %93 {offsets = [32, 0], sizes = [32, 16], strides = [1, 1]} : vector<64x16xf32> to vector<32x16xf32>
    %119 = vector.extract_strided_slice %99 {offsets = [32, 0], sizes = [32, 16], strides = [1, 1]} : vector<64x16xf32> to vector<32x16xf32>
    %cst_57 = arith.constant dense<0.000000e+00> : vector<32x32xf32>
    %120 = tpu.matmul %117, %118, %cst_57 {dimension_numbers = #tpu.dot_dimension_numbers<[1], [1], [0], [0], [0, 0, 1, 0], [], []>} : vector<32x16xf32>, vector<32x16xf32>, vector<32x32xf32> -> vector<32x32xf32>
    %cst_58 = arith.constant dense<0xFF800000> : vector<32xf32>
    %121 = vector.multi_reduction <maximumf>, %120, %cst_58 [1] : vector<32x32xf32> to vector<32xf32>
    %122 = vector.shape_cast %121 : vector<32xf32> to vector<32x1xf32>
    %123 = vector.broadcast %122 : vector<32x1xf32> to vector<32x32xf32>
    %124 = arith.subf %120, %123 : vector<32x32xf32>
    %125 = math.exp %124 : vector<32x32xf32>
    %cst_59 = arith.constant dense<0.000000e+00> : vector<32xf32>
    %126 = vector.multi_reduction <add>, %125, %cst_59 [1] : vector<32x32xf32> to vector<32xf32>
    %127 = vector.shape_cast %126 : vector<32xf32> to vector<32x1xf32>
    %128 = vector.broadcast %127 : vector<32x1xf32> to vector<32x32xf32>
    %129 = arith.divf %125, %128 : vector<32x32xf32>
    %cst_60 = arith.constant dense<0.000000e+00> : vector<32x16xf32>
    %130 = tpu.matmul %129, %119, %cst_60 {dimension_numbers = #tpu.dot_dimension_numbers<[1], [0], [0], [1], [0, 0, 1, 1], [], []>} : vector<32x32xf32>, vector<32x16xf32>, vector<32x16xf32> -> vector<32x16xf32>
    %cst_61 = arith.constant dense<0.000000e+00> : vector<32x32xf32>
    %131 = tpu.matmul %130, %100, %cst_61 {dimension_numbers = #tpu.dot_dimension_numbers<[1], [0], [0], [1], [0, 0, 1, 1], [], []>} : vector<32x16xf32>, vector<16x32xf32>, vector<32x32xf32> -> vector<32x32xf32>
    %132 = arith.addf %81, %131 : vector<32x32xf32>
    %133 = tpu.concatenate %116, %132 in 0 : vector<32x32xf32>, vector<32x32xf32> -> vector<64x32xf32>
    %134 = arith.addf %8, %133 : vector<64x32xf32>
    %c8 = arith.constant 8 : index
    %c0_62 = arith.constant 0 : index
    %135 = vector.load %arg5[%c8, %c0_62] : memref<64x128xf32, #tpu.memory_space<vmem>>, vector<1x32xf32>
    %136 = vector.broadcast %135 : vector<1x32xf32> to vector<64x32xf32>
    %137 = arith.addf %134, %136 : vector<64x32xf32>
    %cst_63 = arith.constant dense<0.000000e+00> : vector<64xf32>
    %138 = vector.multi_reduction <add>, %137, %cst_63 [1] : vector<64x32xf32> to vector<64xf32>
    %139 = vector.shape_cast %138 : vector<64xf32> to vector<64x1xf32>
    %cst_64 = arith.constant 3.200000e+01 : f32
    %140 = vector.broadcast %cst_64 : f32 to vector<64x1xf32>
    %141 = arith.divf %139, %140 : vector<64x1xf32>
    %142 = vector.broadcast %141 : vector<64x1xf32> to vector<64x32xf32>
    %143 = arith.subf %137, %142 : vector<64x32xf32>
    %144 = arith.mulf %143, %143 : vector<64x32xf32>
    %cst_65 = arith.constant dense<0.000000e+00> : vector<64xf32>
    %145 = vector.multi_reduction <add>, %144, %cst_65 [1] : vector<64x32xf32> to vector<64xf32>
    %146 = vector.shape_cast %145 : vector<64xf32> to vector<64x1xf32>
    %cst_66 = arith.constant 3.200000e+01 : f32
    %147 = vector.broadcast %cst_66 : f32 to vector<64x1xf32>
    %148 = arith.divf %146, %147 : vector<64x1xf32>
    %149 = vector.broadcast %141 : vector<64x1xf32> to vector<64x32xf32>
    %150 = arith.subf %137, %149 : vector<64x32xf32>
    %cst_67 = arith.constant 9.99999974E-6 : f32
    %151 = vector.broadcast %cst_67 : f32 to vector<64x1xf32>
    %152 = arith.addf %148, %151 : vector<64x1xf32>
    %153 = math.rsqrt %152 : vector<64x1xf32>
    %154 = vector.broadcast %153 : vector<64x1xf32> to vector<64x32xf32>
    %155 = arith.mulf %150, %154 : vector<64x32xf32>
    %c6 = arith.constant 6 : index
    %c0_68 = arith.constant 0 : index
    %156 = vector.load %arg5[%c6, %c0_68] : memref<64x128xf32, #tpu.memory_space<vmem>>, vector<1x32xf32>
    %157 = vector.broadcast %156 : vector<1x32xf32> to vector<64x32xf32>
    %158 = arith.mulf %155, %157 : vector<64x32xf32>
    %c7 = arith.constant 7 : index
    %c0_69 = arith.constant 0 : index
    %159 = vector.load %arg5[%c7, %c0_69] : memref<64x128xf32, #tpu.memory_space<vmem>>, vector<1x32xf32>
    %160 = vector.broadcast %159 : vector<1x32xf32> to vector<64x32xf32>
    %161 = arith.addf %158, %160 : vector<64x32xf32>
    %c0_70 = arith.constant 0 : index
    %c0_71 = arith.constant 0 : index
    %c0_72 = arith.constant 0 : index
    %162 = vector.load %arg4[%c0_70, %c0_71, %c0_72] : memref<2x32x64xf32, #tpu.memory_space<vmem>>, vector<1x32x64xf32>
    %163 = vector.shape_cast %162 : vector<1x32x64xf32> to vector<32x64xf32>
    %cst_73 = arith.constant dense<0.000000e+00> : vector<64x64xf32>
    %164 = tpu.matmul %161, %163, %cst_73 {dimension_numbers = #tpu.dot_dimension_numbers<[1], [0], [0], [1], [0, 0, 1, 1], [], []>} : vector<64x32xf32>, vector<32x64xf32>, vector<64x64xf32> -> vector<64x64xf32>
    %c9 = arith.constant 9 : index
    %c0_74 = arith.constant 0 : index
    %165 = vector.load %arg5[%c9, %c0_74] : memref<64x128xf32, #tpu.memory_space<vmem>>, vector<1x64xf32>
    %166 = vector.broadcast %165 : vector<1x64xf32> to vector<64x64xf32>
    %167 = arith.addf %164, %166 : vector<64x64xf32>
    %168 = arith.mulf %167, %167 : vector<64x64xf32>
    %169 = arith.mulf %167, %168 : vector<64x64xf32>
    %cst_75 = arith.constant 4.471500e-02 : f32
    %170 = vector.broadcast %cst_75 : f32 to vector<64x64xf32>
    %171 = arith.mulf %170, %169 : vector<64x64xf32>
    %172 = arith.addf %167, %171 : vector<64x64xf32>
    %cst_76 = arith.constant 0.797884583 : f32
    %173 = vector.broadcast %cst_76 : f32 to vector<64x64xf32>
    %174 = arith.mulf %173, %172 : vector<64x64xf32>
    %175 = math.tanh %174 : vector<64x64xf32>
    %cst_77 = arith.constant 1.000000e+00 : f32
    %176 = vector.broadcast %cst_77 : f32 to vector<64x64xf32>
    %177 = arith.addf %176, %175 : vector<64x64xf32>
    %cst_78 = arith.constant 5.000000e-01 : f32
    %178 = vector.broadcast %cst_78 : f32 to vector<64x64xf32>
    %179 = arith.mulf %178, %177 : vector<64x64xf32>
    %180 = arith.mulf %167, %179 : vector<64x64xf32>
    %c64 = arith.constant 64 : index
    %c0_79 = arith.constant 0 : index
    %181 = vector.load %arg3[%c64, %c0_79] : memref<288x32xf32, #tpu.memory_space<vmem>>, vector<64x32xf32>
    %cst_80 = arith.constant dense<0.000000e+00> : vector<64x32xf32>
    %182 = tpu.matmul %180, %181, %cst_80 {dimension_numbers = #tpu.dot_dimension_numbers<[1], [0], [0], [1], [0, 0, 1, 1], [], []>} : vector<64x64xf32>, vector<64x32xf32>, vector<64x32xf32> -> vector<64x32xf32>
    %183 = arith.addf %137, %182 : vector<64x32xf32>
    %c10 = arith.constant 10 : index
    %c0_81 = arith.constant 0 : index
    %184 = vector.load %arg5[%c10, %c0_81] : memref<64x128xf32, #tpu.memory_space<vmem>>, vector<1x32xf32>
    %185 = vector.broadcast %184 : vector<1x32xf32> to vector<64x32xf32>
    %186 = arith.addf %183, %185 : vector<64x32xf32>
    %cst_82 = arith.constant dense<0.000000e+00> : vector<64xf32>
    %187 = vector.multi_reduction <add>, %186, %cst_82 [1] : vector<64x32xf32> to vector<64xf32>
    %188 = vector.shape_cast %187 : vector<64xf32> to vector<64x1xf32>
    %cst_83 = arith.constant 3.200000e+01 : f32
    %189 = vector.broadcast %cst_83 : f32 to vector<64x1xf32>
    %190 = arith.divf %188, %189 : vector<64x1xf32>
    %191 = vector.broadcast %190 : vector<64x1xf32> to vector<64x32xf32>
    %192 = arith.subf %186, %191 : vector<64x32xf32>
    %193 = arith.mulf %192, %192 : vector<64x32xf32>
    %cst_84 = arith.constant dense<0.000000e+00> : vector<64xf32>
    %194 = vector.multi_reduction <add>, %193, %cst_84 [1] : vector<64x32xf32> to vector<64xf32>
    %195 = vector.shape_cast %194 : vector<64xf32> to vector<64x1xf32>
    %cst_85 = arith.constant 3.200000e+01 : f32
    %196 = vector.broadcast %cst_85 : f32 to vector<64x1xf32>
    %197 = arith.divf %195, %196 : vector<64x1xf32>
    %198 = vector.broadcast %190 : vector<64x1xf32> to vector<64x32xf32>
    %199 = arith.subf %186, %198 : vector<64x32xf32>
    %cst_86 = arith.constant 9.99999974E-6 : f32
    %200 = vector.broadcast %cst_86 : f32 to vector<64x1xf32>
    %201 = arith.addf %197, %200 : vector<64x1xf32>
    %202 = math.rsqrt %201 : vector<64x1xf32>
    %203 = vector.broadcast %202 : vector<64x1xf32> to vector<64x32xf32>
    %204 = arith.mulf %199, %203 : vector<64x32xf32>
    %c17 = arith.constant 17 : index
    %c0_87 = arith.constant 0 : index
    %205 = vector.load %arg5[%c17, %c0_87] : memref<64x128xf32, #tpu.memory_space<vmem>>, vector<1x32xf32>
    %206 = vector.broadcast %205 : vector<1x32xf32> to vector<64x32xf32>
    %207 = arith.mulf %204, %206 : vector<64x32xf32>
    %c18 = arith.constant 18 : index
    %c0_88 = arith.constant 0 : index
    %208 = vector.load %arg5[%c18, %c0_88] : memref<64x128xf32, #tpu.memory_space<vmem>>, vector<1x32xf32>
    %209 = vector.broadcast %208 : vector<1x32xf32> to vector<64x32xf32>
    %210 = arith.addf %207, %209 : vector<64x32xf32>
    %c6_89 = arith.constant 6 : index
    %c0_90 = arith.constant 0 : index
    %c0_91 = arith.constant 0 : index
    %211 = vector.load %arg2[%c6_89, %c0_90, %c0_91] : memref<12x32x16xf32, #tpu.memory_space<vmem>>, vector<1x32x16xf32>
    %212 = vector.shape_cast %211 : vector<1x32x16xf32> to vector<32x16xf32>
    %cst_92 = arith.constant dense<0.000000e+00> : vector<64x16xf32>
    %213 = tpu.matmul %210, %212, %cst_92 {dimension_numbers = #tpu.dot_dimension_numbers<[1], [0], [0], [1], [0, 0, 1, 1], [], []>} : vector<64x32xf32>, vector<32x16xf32>, vector<64x16xf32> -> vector<64x16xf32>
    %c24 = arith.constant 24 : index
    %c0_93 = arith.constant 0 : index
    %214 = vector.load %arg5[%c24, %c0_93] : memref<64x128xf32, #tpu.memory_space<vmem>>, vector<1x16xf32>
    %215 = vector.broadcast %214 : vector<1x16xf32> to vector<64x16xf32>
    %216 = arith.addf %213, %215 : vector<64x16xf32>
    %c7_94 = arith.constant 7 : index
    %c0_95 = arith.constant 0 : index
    %c0_96 = arith.constant 0 : index
    %217 = vector.load %arg2[%c7_94, %c0_95, %c0_96] : memref<12x32x16xf32, #tpu.memory_space<vmem>>, vector<1x32x16xf32>
    %218 = vector.shape_cast %217 : vector<1x32x16xf32> to vector<32x16xf32>
    %cst_97 = arith.constant dense<0.000000e+00> : vector<64x16xf32>
    %219 = tpu.matmul %210, %218, %cst_97 {dimension_numbers = #tpu.dot_dimension_numbers<[1], [0], [0], [1], [0, 0, 1, 1], [], []>} : vector<64x32xf32>, vector<32x16xf32>, vector<64x16xf32> -> vector<64x16xf32>
    %c25 = arith.constant 25 : index
    %c0_98 = arith.constant 0 : index
    %220 = vector.load %arg5[%c25, %c0_98] : memref<64x128xf32, #tpu.memory_space<vmem>>, vector<1x16xf32>
    %221 = vector.broadcast %220 : vector<1x16xf32> to vector<64x16xf32>
    %222 = arith.addf %219, %221 : vector<64x16xf32>
    %c8_99 = arith.constant 8 : index
    %c0_100 = arith.constant 0 : index
    %c0_101 = arith.constant 0 : index
    %223 = vector.load %arg2[%c8_99, %c0_100, %c0_101] : memref<12x32x16xf32, #tpu.memory_space<vmem>>, vector<1x32x16xf32>
    %224 = vector.shape_cast %223 : vector<1x32x16xf32> to vector<32x16xf32>
    %cst_102 = arith.constant dense<0.000000e+00> : vector<64x16xf32>
    %225 = tpu.matmul %210, %224, %cst_102 {dimension_numbers = #tpu.dot_dimension_numbers<[1], [0], [0], [1], [0, 0, 1, 1], [], []>} : vector<64x32xf32>, vector<32x16xf32>, vector<64x16xf32> -> vector<64x16xf32>
    %c26 = arith.constant 26 : index
    %c0_103 = arith.constant 0 : index
    %226 = vector.load %arg5[%c26, %c0_103] : memref<64x128xf32, #tpu.memory_space<vmem>>, vector<1x16xf32>
    %227 = vector.broadcast %226 : vector<1x16xf32> to vector<64x16xf32>
    %228 = arith.addf %225, %227 : vector<64x16xf32>
    %c224 = arith.constant 224 : index
    %c0_104 = arith.constant 0 : index
    %229 = vector.load %arg3[%c224, %c0_104] : memref<288x32xf32, #tpu.memory_space<vmem>>, vector<16x32xf32>
    %230 = vector.extract_strided_slice %216 {offsets = [0, 0], sizes = [32, 16], strides = [1, 1]} : vector<64x16xf32> to vector<32x16xf32>
    %231 = vector.extract_strided_slice %222 {offsets = [0, 0], sizes = [32, 16], strides = [1, 1]} : vector<64x16xf32> to vector<32x16xf32>
    %232 = vector.extract_strided_slice %228 {offsets = [0, 0], sizes = [32, 16], strides = [1, 1]} : vector<64x16xf32> to vector<32x16xf32>
    %cst_105 = arith.constant dense<0.000000e+00> : vector<32x32xf32>
    %233 = tpu.matmul %230, %231, %cst_105 {dimension_numbers = #tpu.dot_dimension_numbers<[1], [1], [0], [0], [0, 0, 1, 0], [], []>} : vector<32x16xf32>, vector<32x16xf32>, vector<32x32xf32> -> vector<32x32xf32>
    %cst_106 = arith.constant dense<0xFF800000> : vector<32xf32>
    %234 = vector.multi_reduction <maximumf>, %233, %cst_106 [1] : vector<32x32xf32> to vector<32xf32>
    %235 = vector.shape_cast %234 : vector<32xf32> to vector<32x1xf32>
    %236 = vector.broadcast %235 : vector<32x1xf32> to vector<32x32xf32>
    %237 = arith.subf %233, %236 : vector<32x32xf32>
    %238 = math.exp %237 : vector<32x32xf32>
    %cst_107 = arith.constant dense<0.000000e+00> : vector<32xf32>
    %239 = vector.multi_reduction <add>, %238, %cst_107 [1] : vector<32x32xf32> to vector<32xf32>
    %240 = vector.shape_cast %239 : vector<32xf32> to vector<32x1xf32>
    %241 = vector.broadcast %240 : vector<32x1xf32> to vector<32x32xf32>
    %242 = arith.divf %238, %241 : vector<32x32xf32>
    %cst_108 = arith.constant dense<0.000000e+00> : vector<32x16xf32>
    %243 = tpu.matmul %242, %232, %cst_108 {dimension_numbers = #tpu.dot_dimension_numbers<[1], [0], [0], [1], [0, 0, 1, 1], [], []>} : vector<32x32xf32>, vector<32x16xf32>, vector<32x16xf32> -> vector<32x16xf32>
    %cst_109 = arith.constant dense<0.000000e+00> : vector<32x32xf32>
    %244 = tpu.matmul %243, %229, %cst_109 {dimension_numbers = #tpu.dot_dimension_numbers<[1], [0], [0], [1], [0, 0, 1, 1], [], []>} : vector<32x16xf32>, vector<16x32xf32>, vector<32x32xf32> -> vector<32x32xf32>
    %245 = vector.extract_strided_slice %216 {offsets = [32, 0], sizes = [32, 16], strides = [1, 1]} : vector<64x16xf32> to vector<32x16xf32>
    %246 = vector.extract_strided_slice %222 {offsets = [32, 0], sizes = [32, 16], strides = [1, 1]} : vector<64x16xf32> to vector<32x16xf32>
    %247 = vector.extract_strided_slice %228 {offsets = [32, 0], sizes = [32, 16], strides = [1, 1]} : vector<64x16xf32> to vector<32x16xf32>
    %cst_110 = arith.constant dense<0.000000e+00> : vector<32x32xf32>
    %248 = tpu.matmul %245, %246, %cst_110 {dimension_numbers = #tpu.dot_dimension_numbers<[1], [1], [0], [0], [0, 0, 1, 0], [], []>} : vector<32x16xf32>, vector<32x16xf32>, vector<32x32xf32> -> vector<32x32xf32>
    %cst_111 = arith.constant dense<0xFF800000> : vector<32xf32>
    %249 = vector.multi_reduction <maximumf>, %248, %cst_111 [1] : vector<32x32xf32> to vector<32xf32>
    %250 = vector.shape_cast %249 : vector<32xf32> to vector<32x1xf32>
    %251 = vector.broadcast %250 : vector<32x1xf32> to vector<32x32xf32>
    %252 = arith.subf %248, %251 : vector<32x32xf32>
    %253 = math.exp %252 : vector<32x32xf32>
    %cst_112 = arith.constant dense<0.000000e+00> : vector<32xf32>
    %254 = vector.multi_reduction <add>, %253, %cst_112 [1] : vector<32x32xf32> to vector<32xf32>
    %255 = vector.shape_cast %254 : vector<32xf32> to vector<32x1xf32>
    %256 = vector.broadcast %255 : vector<32x1xf32> to vector<32x32xf32>
    %257 = arith.divf %253, %256 : vector<32x32xf32>
    %cst_113 = arith.constant dense<0.000000e+00> : vector<32x16xf32>
    %258 = tpu.matmul %257, %247, %cst_113 {dimension_numbers = #tpu.dot_dimension_numbers<[1], [0], [0], [1], [0, 0, 1, 1], [], []>} : vector<32x32xf32>, vector<32x16xf32>, vector<32x16xf32> -> vector<32x16xf32>
    %cst_114 = arith.constant dense<0.000000e+00> : vector<32x32xf32>
    %259 = tpu.matmul %258, %229, %cst_114 {dimension_numbers = #tpu.dot_dimension_numbers<[1], [0], [0], [1], [0, 0, 1, 1], [], []>} : vector<32x16xf32>, vector<16x32xf32>, vector<32x32xf32> -> vector<32x32xf32>
    %c9_115 = arith.constant 9 : index
    %c0_116 = arith.constant 0 : index
    %c0_117 = arith.constant 0 : index
    %260 = vector.load %arg2[%c9_115, %c0_116, %c0_117] : memref<12x32x16xf32, #tpu.memory_space<vmem>>, vector<1x32x16xf32>
    %261 = vector.shape_cast %260 : vector<1x32x16xf32> to vector<32x16xf32>
    %cst_118 = arith.constant dense<0.000000e+00> : vector<64x16xf32>
    %262 = tpu.matmul %210, %261, %cst_118 {dimension_numbers = #tpu.dot_dimension_numbers<[1], [0], [0], [1], [0, 0, 1, 1], [], []>} : vector<64x32xf32>, vector<32x16xf32>, vector<64x16xf32> -> vector<64x16xf32>
    %c27 = arith.constant 27 : index
    %c0_119 = arith.constant 0 : index
    %263 = vector.load %arg5[%c27, %c0_119] : memref<64x128xf32, #tpu.memory_space<vmem>>, vector<1x16xf32>
    %264 = vector.broadcast %263 : vector<1x16xf32> to vector<64x16xf32>
    %265 = arith.addf %262, %264 : vector<64x16xf32>
    %c10_120 = arith.constant 10 : index
    %c0_121 = arith.constant 0 : index
    %c0_122 = arith.constant 0 : index
    %266 = vector.load %arg2[%c10_120, %c0_121, %c0_122] : memref<12x32x16xf32, #tpu.memory_space<vmem>>, vector<1x32x16xf32>
    %267 = vector.shape_cast %266 : vector<1x32x16xf32> to vector<32x16xf32>
    %cst_123 = arith.constant dense<0.000000e+00> : vector<64x16xf32>
    %268 = tpu.matmul %210, %267, %cst_123 {dimension_numbers = #tpu.dot_dimension_numbers<[1], [0], [0], [1], [0, 0, 1, 1], [], []>} : vector<64x32xf32>, vector<32x16xf32>, vector<64x16xf32> -> vector<64x16xf32>
    %c28 = arith.constant 28 : index
    %c0_124 = arith.constant 0 : index
    %269 = vector.load %arg5[%c28, %c0_124] : memref<64x128xf32, #tpu.memory_space<vmem>>, vector<1x16xf32>
    %270 = vector.broadcast %269 : vector<1x16xf32> to vector<64x16xf32>
    %271 = arith.addf %268, %270 : vector<64x16xf32>
    %c11_125 = arith.constant 11 : index
    %c0_126 = arith.constant 0 : index
    %c0_127 = arith.constant 0 : index
    %272 = vector.load %arg2[%c11_125, %c0_126, %c0_127] : memref<12x32x16xf32, #tpu.memory_space<vmem>>, vector<1x32x16xf32>
    %273 = vector.shape_cast %272 : vector<1x32x16xf32> to vector<32x16xf32>
    %cst_128 = arith.constant dense<0.000000e+00> : vector<64x16xf32>
    %274 = tpu.matmul %210, %273, %cst_128 {dimension_numbers = #tpu.dot_dimension_numbers<[1], [0], [0], [1], [0, 0, 1, 1], [], []>} : vector<64x32xf32>, vector<32x16xf32>, vector<64x16xf32> -> vector<64x16xf32>
    %c29 = arith.constant 29 : index
    %c0_129 = arith.constant 0 : index
    %275 = vector.load %arg5[%c29, %c0_129] : memref<64x128xf32, #tpu.memory_space<vmem>>, vector<1x16xf32>
    %276 = vector.broadcast %275 : vector<1x16xf32> to vector<64x16xf32>
    %277 = arith.addf %274, %276 : vector<64x16xf32>
    %c240 = arith.constant 240 : index
    %c0_130 = arith.constant 0 : index
    %278 = vector.load %arg3[%c240, %c0_130] : memref<288x32xf32, #tpu.memory_space<vmem>>, vector<16x32xf32>
    %279 = vector.extract_strided_slice %265 {offsets = [0, 0], sizes = [32, 16], strides = [1, 1]} : vector<64x16xf32> to vector<32x16xf32>
    %280 = vector.extract_strided_slice %271 {offsets = [0, 0], sizes = [32, 16], strides = [1, 1]} : vector<64x16xf32> to vector<32x16xf32>
    %281 = vector.extract_strided_slice %277 {offsets = [0, 0], sizes = [32, 16], strides = [1, 1]} : vector<64x16xf32> to vector<32x16xf32>
    %cst_131 = arith.constant dense<0.000000e+00> : vector<32x32xf32>
    %282 = tpu.matmul %279, %280, %cst_131 {dimension_numbers = #tpu.dot_dimension_numbers<[1], [1], [0], [0], [0, 0, 1, 0], [], []>} : vector<32x16xf32>, vector<32x16xf32>, vector<32x32xf32> -> vector<32x32xf32>
    %cst_132 = arith.constant dense<0xFF800000> : vector<32xf32>
    %283 = vector.multi_reduction <maximumf>, %282, %cst_132 [1] : vector<32x32xf32> to vector<32xf32>
    %284 = vector.shape_cast %283 : vector<32xf32> to vector<32x1xf32>
    %285 = vector.broadcast %284 : vector<32x1xf32> to vector<32x32xf32>
    %286 = arith.subf %282, %285 : vector<32x32xf32>
    %287 = math.exp %286 : vector<32x32xf32>
    %cst_133 = arith.constant dense<0.000000e+00> : vector<32xf32>
    %288 = vector.multi_reduction <add>, %287, %cst_133 [1] : vector<32x32xf32> to vector<32xf32>
    %289 = vector.shape_cast %288 : vector<32xf32> to vector<32x1xf32>
    %290 = vector.broadcast %289 : vector<32x1xf32> to vector<32x32xf32>
    %291 = arith.divf %287, %290 : vector<32x32xf32>
    %cst_134 = arith.constant dense<0.000000e+00> : vector<32x16xf32>
    %292 = tpu.matmul %291, %281, %cst_134 {dimension_numbers = #tpu.dot_dimension_numbers<[1], [0], [0], [1], [0, 0, 1, 1], [], []>} : vector<32x32xf32>, vector<32x16xf32>, vector<32x16xf32> -> vector<32x16xf32>
    %cst_135 = arith.constant dense<0.000000e+00> : vector<32x32xf32>
    %293 = tpu.matmul %292, %278, %cst_135 {dimension_numbers = #tpu.dot_dimension_numbers<[1], [0], [0], [1], [0, 0, 1, 1], [], []>} : vector<32x16xf32>, vector<16x32xf32>, vector<32x32xf32> -> vector<32x32xf32>
    %294 = arith.addf %244, %293 : vector<32x32xf32>
    %295 = vector.extract_strided_slice %265 {offsets = [32, 0], sizes = [32, 16], strides = [1, 1]} : vector<64x16xf32> to vector<32x16xf32>
    %296 = vector.extract_strided_slice %271 {offsets = [32, 0], sizes = [32, 16], strides = [1, 1]} : vector<64x16xf32> to vector<32x16xf32>
    %297 = vector.extract_strided_slice %277 {offsets = [32, 0], sizes = [32, 16], strides = [1, 1]} : vector<64x16xf32> to vector<32x16xf32>
    %cst_136 = arith.constant dense<0.000000e+00> : vector<32x32xf32>
    %298 = tpu.matmul %295, %296, %cst_136 {dimension_numbers = #tpu.dot_dimension_numbers<[1], [1], [0], [0], [0, 0, 1, 0], [], []>} : vector<32x16xf32>, vector<32x16xf32>, vector<32x32xf32> -> vector<32x32xf32>
    %cst_137 = arith.constant dense<0xFF800000> : vector<32xf32>
    %299 = vector.multi_reduction <maximumf>, %298, %cst_137 [1] : vector<32x32xf32> to vector<32xf32>
    %300 = vector.shape_cast %299 : vector<32xf32> to vector<32x1xf32>
    %301 = vector.broadcast %300 : vector<32x1xf32> to vector<32x32xf32>
    %302 = arith.subf %298, %301 : vector<32x32xf32>
    %303 = math.exp %302 : vector<32x32xf32>
    %cst_138 = arith.constant dense<0.000000e+00> : vector<32xf32>
    %304 = vector.multi_reduction <add>, %303, %cst_138 [1] : vector<32x32xf32> to vector<32xf32>
    %305 = vector.shape_cast %304 : vector<32xf32> to vector<32x1xf32>
    %306 = vector.broadcast %305 : vector<32x1xf32> to vector<32x32xf32>
    %307 = arith.divf %303, %306 : vector<32x32xf32>
    %cst_139 = arith.constant dense<0.000000e+00> : vector<32x16xf32>
    %308 = tpu.matmul %307, %297, %cst_139 {dimension_numbers = #tpu.dot_dimension_numbers<[1], [0], [0], [1], [0, 0, 1, 1], [], []>} : vector<32x32xf32>, vector<32x16xf32>, vector<32x16xf32> -> vector<32x16xf32>
    %cst_140 = arith.constant dense<0.000000e+00> : vector<32x32xf32>
    %309 = tpu.matmul %308, %278, %cst_140 {dimension_numbers = #tpu.dot_dimension_numbers<[1], [0], [0], [1], [0, 0, 1, 1], [], []>} : vector<32x16xf32>, vector<16x32xf32>, vector<32x32xf32> -> vector<32x32xf32>
    %310 = arith.addf %259, %309 : vector<32x32xf32>
    %311 = tpu.concatenate %294, %310 in 0 : vector<32x32xf32>, vector<32x32xf32> -> vector<64x32xf32>
    %312 = arith.addf %186, %311 : vector<64x32xf32>
    %c21 = arith.constant 21 : index
    %c0_141 = arith.constant 0 : index
    %313 = vector.load %arg5[%c21, %c0_141] : memref<64x128xf32, #tpu.memory_space<vmem>>, vector<1x32xf32>
    %314 = vector.broadcast %313 : vector<1x32xf32> to vector<64x32xf32>
    %315 = arith.addf %312, %314 : vector<64x32xf32>
    %cst_142 = arith.constant dense<0.000000e+00> : vector<64xf32>
    %316 = vector.multi_reduction <add>, %315, %cst_142 [1] : vector<64x32xf32> to vector<64xf32>
    %317 = vector.shape_cast %316 : vector<64xf32> to vector<64x1xf32>
    %cst_143 = arith.constant 3.200000e+01 : f32
    %318 = vector.broadcast %cst_143 : f32 to vector<64x1xf32>
    %319 = arith.divf %317, %318 : vector<64x1xf32>
    %320 = vector.broadcast %319 : vector<64x1xf32> to vector<64x32xf32>
    %321 = arith.subf %315, %320 : vector<64x32xf32>
    %322 = arith.mulf %321, %321 : vector<64x32xf32>
    %cst_144 = arith.constant dense<0.000000e+00> : vector<64xf32>
    %323 = vector.multi_reduction <add>, %322, %cst_144 [1] : vector<64x32xf32> to vector<64xf32>
    %324 = vector.shape_cast %323 : vector<64xf32> to vector<64x1xf32>
    %cst_145 = arith.constant 3.200000e+01 : f32
    %325 = vector.broadcast %cst_145 : f32 to vector<64x1xf32>
    %326 = arith.divf %324, %325 : vector<64x1xf32>
    %327 = vector.broadcast %319 : vector<64x1xf32> to vector<64x32xf32>
    %328 = arith.subf %315, %327 : vector<64x32xf32>
    %cst_146 = arith.constant 9.99999974E-6 : f32
    %329 = vector.broadcast %cst_146 : f32 to vector<64x1xf32>
    %330 = arith.addf %326, %329 : vector<64x1xf32>
    %331 = math.rsqrt %330 : vector<64x1xf32>
    %332 = vector.broadcast %331 : vector<64x1xf32> to vector<64x32xf32>
    %333 = arith.mulf %328, %332 : vector<64x32xf32>
    %c19 = arith.constant 19 : index
    %c0_147 = arith.constant 0 : index
    %334 = vector.load %arg5[%c19, %c0_147] : memref<64x128xf32, #tpu.memory_space<vmem>>, vector<1x32xf32>
    %335 = vector.broadcast %334 : vector<1x32xf32> to vector<64x32xf32>
    %336 = arith.mulf %333, %335 : vector<64x32xf32>
    %c20 = arith.constant 20 : index
    %c0_148 = arith.constant 0 : index
    %337 = vector.load %arg5[%c20, %c0_148] : memref<64x128xf32, #tpu.memory_space<vmem>>, vector<1x32xf32>
    %338 = vector.broadcast %337 : vector<1x32xf32> to vector<64x32xf32>
    %339 = arith.addf %336, %338 : vector<64x32xf32>
    %c1_149 = arith.constant 1 : index
    %c0_150 = arith.constant 0 : index
    %c0_151 = arith.constant 0 : index
    %340 = vector.load %arg4[%c1_149, %c0_150, %c0_151] : memref<2x32x64xf32, #tpu.memory_space<vmem>>, vector<1x32x64xf32>
    %341 = vector.shape_cast %340 : vector<1x32x64xf32> to vector<32x64xf32>
    %cst_152 = arith.constant dense<0.000000e+00> : vector<64x64xf32>
    %342 = tpu.matmul %339, %341, %cst_152 {dimension_numbers = #tpu.dot_dimension_numbers<[1], [0], [0], [1], [0, 0, 1, 1], [], []>} : vector<64x32xf32>, vector<32x64xf32>, vector<64x64xf32> -> vector<64x64xf32>
    %c22 = arith.constant 22 : index
    %c0_153 = arith.constant 0 : index
    %343 = vector.load %arg5[%c22, %c0_153] : memref<64x128xf32, #tpu.memory_space<vmem>>, vector<1x64xf32>
    %344 = vector.broadcast %343 : vector<1x64xf32> to vector<64x64xf32>
    %345 = arith.addf %342, %344 : vector<64x64xf32>
    %346 = arith.mulf %345, %345 : vector<64x64xf32>
    %347 = arith.mulf %345, %346 : vector<64x64xf32>
    %cst_154 = arith.constant 4.471500e-02 : f32
    %348 = vector.broadcast %cst_154 : f32 to vector<64x64xf32>
    %349 = arith.mulf %348, %347 : vector<64x64xf32>
    %350 = arith.addf %345, %349 : vector<64x64xf32>
    %cst_155 = arith.constant 0.797884583 : f32
    %351 = vector.broadcast %cst_155 : f32 to vector<64x64xf32>
    %352 = arith.mulf %351, %350 : vector<64x64xf32>
    %353 = math.tanh %352 : vector<64x64xf32>
    %cst_156 = arith.constant 1.000000e+00 : f32
    %354 = vector.broadcast %cst_156 : f32 to vector<64x64xf32>
    %355 = arith.addf %354, %353 : vector<64x64xf32>
    %cst_157 = arith.constant 5.000000e-01 : f32
    %356 = vector.broadcast %cst_157 : f32 to vector<64x64xf32>
    %357 = arith.mulf %356, %355 : vector<64x64xf32>
    %358 = arith.mulf %345, %357 : vector<64x64xf32>
    %c128 = arith.constant 128 : index
    %c0_158 = arith.constant 0 : index
    %359 = vector.load %arg3[%c128, %c0_158] : memref<288x32xf32, #tpu.memory_space<vmem>>, vector<64x32xf32>
    %cst_159 = arith.constant dense<0.000000e+00> : vector<64x32xf32>
    %360 = tpu.matmul %358, %359, %cst_159 {dimension_numbers = #tpu.dot_dimension_numbers<[1], [0], [0], [1], [0, 0, 1, 1], [], []>} : vector<64x64xf32>, vector<64x32xf32>, vector<64x32xf32> -> vector<64x32xf32>
    %361 = arith.addf %315, %360 : vector<64x32xf32>
    %c23 = arith.constant 23 : index
    %c0_160 = arith.constant 0 : index
    %362 = vector.load %arg5[%c23, %c0_160] : memref<64x128xf32, #tpu.memory_space<vmem>>, vector<1x32xf32>
    %363 = vector.broadcast %362 : vector<1x32xf32> to vector<64x32xf32>
    %364 = arith.addf %361, %363 : vector<64x32xf32>
    %cst_161 = arith.constant dense<0.000000e+00> : vector<64xf32>
    %365 = vector.multi_reduction <add>, %364, %cst_161 [1] : vector<64x32xf32> to vector<64xf32>
    %366 = vector.shape_cast %365 : vector<64xf32> to vector<64x1xf32>
    %cst_162 = arith.constant 3.200000e+01 : f32
    %367 = vector.broadcast %cst_162 : f32 to vector<64x1xf32>
    %368 = arith.divf %366, %367 : vector<64x1xf32>
    %369 = vector.broadcast %368 : vector<64x1xf32> to vector<64x32xf32>
    %370 = arith.subf %364, %369 : vector<64x32xf32>
    %371 = arith.mulf %370, %370 : vector<64x32xf32>
    %cst_163 = arith.constant dense<0.000000e+00> : vector<64xf32>
    %372 = vector.multi_reduction <add>, %371, %cst_163 [1] : vector<64x32xf32> to vector<64xf32>
    %373 = vector.shape_cast %372 : vector<64xf32> to vector<64x1xf32>
    %cst_164 = arith.constant 3.200000e+01 : f32
    %374 = vector.broadcast %cst_164 : f32 to vector<64x1xf32>
    %375 = arith.divf %373, %374 : vector<64x1xf32>
    %376 = vector.broadcast %368 : vector<64x1xf32> to vector<64x32xf32>
    %377 = arith.subf %364, %376 : vector<64x32xf32>
    %cst_165 = arith.constant 9.99999974E-6 : f32
    %378 = vector.broadcast %cst_165 : f32 to vector<64x1xf32>
    %379 = arith.addf %375, %378 : vector<64x1xf32>
    %380 = math.rsqrt %379 : vector<64x1xf32>
    %381 = vector.broadcast %380 : vector<64x1xf32> to vector<64x32xf32>
    %382 = arith.mulf %377, %381 : vector<64x32xf32>
    %c1_166 = arith.constant 1 : index
    %c0_167 = arith.constant 0 : index
    %383 = vector.load %arg5[%c1_166, %c0_167] : memref<64x128xf32, #tpu.memory_space<vmem>>, vector<1x32xf32>
    %384 = vector.broadcast %383 : vector<1x32xf32> to vector<64x32xf32>
    %385 = arith.mulf %382, %384 : vector<64x32xf32>
    %c2_168 = arith.constant 2 : index
    %c0_169 = arith.constant 0 : index
    %386 = vector.load %arg5[%c2_168, %c0_169] : memref<64x128xf32, #tpu.memory_space<vmem>>, vector<1x32xf32>
    %387 = vector.broadcast %386 : vector<1x32xf32> to vector<64x32xf32>
    %388 = arith.addf %385, %387 : vector<64x32xf32>
    %389 = vector.extract_strided_slice %388 {offsets = [0, 0], sizes = [32, 32], strides = [1, 1]} : vector<64x32xf32> to vector<32x32xf32>
    %cst_170 = arith.constant dense<0.000000e+00> : vector<32xf32>
    %390 = vector.multi_reduction <add>, %389, %cst_170 [0] : vector<32x32xf32> to vector<32xf32>
    %391 = vector.shape_cast %390 : vector<32xf32> to vector<1x32xf32>
    %cst_171 = arith.constant 3.200000e+01 : f32
    %392 = vector.broadcast %cst_171 : f32 to vector<1x32xf32>
    %393 = arith.divf %391, %392 : vector<1x32xf32>
    %394 = vector.extract_strided_slice %388 {offsets = [32, 0], sizes = [32, 32], strides = [1, 1]} : vector<64x32xf32> to vector<32x32xf32>
    %cst_172 = arith.constant dense<0.000000e+00> : vector<32xf32>
    %395 = vector.multi_reduction <add>, %394, %cst_172 [0] : vector<32x32xf32> to vector<32xf32>
    %396 = vector.shape_cast %395 : vector<32xf32> to vector<1x32xf32>
    %cst_173 = arith.constant 3.200000e+01 : f32
    %397 = vector.broadcast %cst_173 : f32 to vector<1x32xf32>
    %398 = arith.divf %396, %397 : vector<1x32xf32>
    %399 = tpu.concatenate %393, %398 in 0 : vector<1x32xf32>, vector<1x32xf32> -> vector<2x32xf32>
    %c32 = arith.constant 32 : index
    %c0_174 = arith.constant 0 : index
    %400 = vector.load %arg5[%c32, %c0_174] : memref<64x128xf32, #tpu.memory_space<vmem>>, vector<32x128xf32>
    %cst_175 = arith.constant dense<0.000000e+00> : vector<2x128xf32>
    %401 = tpu.matmul %399, %400, %cst_175 {dimension_numbers = #tpu.dot_dimension_numbers<[1], [0], [0], [1], [0, 0, 1, 1], [], []>} : vector<2x32xf32>, vector<32x128xf32>, vector<2x128xf32> -> vector<2x128xf32>
    %c3_176 = arith.constant 3 : index
    %c0_177 = arith.constant 0 : index
    %402 = vector.load %arg5[%c3_176, %c0_177] : memref<64x128xf32, #tpu.memory_space<vmem>>, vector<1x128xf32>
    %403 = vector.broadcast %402 : vector<1x128xf32> to vector<2x128xf32>
    %404 = arith.addf %401, %403 : vector<2x128xf32>
    %405 = vector.shape_cast %404 : vector<2x128xf32> to vector<2x1x128xf32>
    %c0_178 = arith.constant 0 : index
    %c0_179 = arith.constant 0 : index
    %c0_180 = arith.constant 0 : index
    %406 = vector.load %arg6[%c0_178, %c0_179, %c0_180] : memref<2x1x128xf32, #tpu.memory_space<vmem>>, vector<2x1x128xf32>
    tpu.vector_store %arg6[%c0_178, %c0_179, %c0_180], %405 {strides = array<i32>} : memref<2x1x128xf32, #tpu.memory_space<vmem>>, vector<2x1x128xf32>,
    %407 = tpu.concatenate %64, %113, %242, %291 in 1 : vector<32x32xf32>, vector<32x32xf32>, vector<32x32xf32>, vector<32x32xf32> -> vector<32x128xf32>
    %c0_181 = arith.constant 0 : index
    %c0_182 = arith.constant 0 : index
    %408 = vector.load %arg7[%c0_181, %c0_182] : memref<64x128xf32, #tpu.memory_space<vmem>>, vector<32x128xf32>
    tpu.vector_store %arg7[%c0_181, %c0_182], %407 {strides = array<i32>} : memref<64x128xf32, #tpu.memory_space<vmem>>, vector<32x128xf32>,
    %409 = tpu.concatenate %79, %129, %257, %307 in 1 : vector<32x32xf32>, vector<32x32xf32>, vector<32x32xf32>, vector<32x32xf32> -> vector<32x128xf32>
    %c32_183 = arith.constant 32 : index
    %c0_184 = arith.constant 0 : index
    %410 = vector.load %arg7[%c32_183, %c0_184] : memref<64x128xf32, #tpu.memory_space<vmem>>, vector<32x128xf32>
    tpu.vector_store %arg7[%c32_183, %c0_184], %409 {strides = array<i32>} : memref<64x128xf32, #tpu.memory_space<vmem>>, vector<32x128xf32>,
    return
  }
  func.func @transform_0(%arg0: i32) -> (i32, i32) {
    %c0_i32 = arith.constant 0 : i32
    %c0_i32_0 = arith.constant 0 : i32
    return %arg0, %c0_i32 : i32, i32
  }
  func.func @transform_1(%arg0: i32) -> (i32, i32, i32) {
    %c0_i32 = arith.constant 0 : i32
    %c0_i32_0 = arith.constant 0 : i32
    %c0_i32_1 = arith.constant 0 : i32
    %c0_i32_2 = arith.constant 0 : i32
    return %c0_i32, %c0_i32_0, %c0_i32_1 : i32, i32, i32
  }
  func.func @transform_2(%arg0: i32) -> (i32, i32) {
    %c0_i32 = arith.constant 0 : i32
    %c0_i32_0 = arith.constant 0 : i32
    %c0_i32_1 = arith.constant 0 : i32
    return %c0_i32, %c0_i32_0 : i32, i32
  }
  func.func @transform_3(%arg0: i32) -> (i32, i32, i32) {
    %c0_i32 = arith.constant 0 : i32
    %c0_i32_0 = arith.constant 0 : i32
    %c0_i32_1 = arith.constant 0 : i32
    %c0_i32_2 = arith.constant 0 : i32
    return %c0_i32, %c0_i32_0, %c0_i32_1 : i32, i32, i32
  }
  func.func @transform_4(%arg0: i32) -> (i32, i32) {
    %c0_i32 = arith.constant 0 : i32
    %c0_i32_0 = arith.constant 0 : i32
    %c0_i32_1 = arith.constant 0 : i32
    return %c0_i32, %c0_i32_0 : i32, i32
  }
  func.func @transform_5(%arg0: i32) -> (i32, i32, i32) {
    %c0_i32 = arith.constant 0 : i32
    %c0_i32_0 = arith.constant 0 : i32
    %c0_i32_1 = arith.constant 0 : i32
    return %arg0, %c0_i32, %c0_i32_0 : i32, i32, i32
  }
  func.func @transform_6(%arg0: i32) -> (i32, i32) {
    %c0_i32 = arith.constant 0 : i32
    %c0_i32_0 = arith.constant 0 : i32
    return %arg0, %c0_i32 : i32, i32
  }
}

</mosaic_0001>

<llo_original>
// kernel: recorder_forward.1
$region0: #{recorder_forward.1}
  #allocation0 [shape = 'u32[]', space=smem, size = 0x4, offset = 0x4, fixed_abs, tag = 'smem constant byte address 0x4 - core index']
  #allocation1 [shape = 'u32[72,128]{1,0:T(1,128)}', space=vmem, size = 0x9000, scoped, tag = 'internal scratch']
  %s0 = inlined_call_operand.vmem [shape: f32[64,64], index: 0, kind: input, shape index: {}]
  %s1 = inlined_call_operand.vmem [shape: f32[12,32,16], index: 1, kind: input, shape index: {}]
  %s2 = inlined_call_operand.vmem [shape: f32[288,32], index: 2, kind: input, shape index: {}]
  %s3 = inlined_call_operand.vmem [shape: f32[2,32,64], index: 3, kind: input, shape index: {}]
  %s4 = inlined_call_operand.vmem [shape: f32[64,128], index: 4, kind: input, shape index: {}]
  %s5 = inlined_call_operand.hbm [shape: f32[2,1,128], index: 5, kind: output, shape index: {0}]
  %s6 = inlined_call_operand.vmem [shape: f32[64,128], index: 6, kind: output, shape index: {1}]
  %7 = xla_tuple %s5, %s6
  %s8 = sld [smem:[#allocation0]]
  $region38: #{recorder_forward.1} parent=0
    _
  %s10 = ssub.s32 1, %s8
  %s11 = scalar_select 0, %s10, %s8
  $region1: #{recorder_forward.1} parent=0
    #allocation2 [shape = 'u8[1024]{0}', space=vmem, size = 0x400, scoped, tag = 'output window, operand 0, single buffered']
    #allocation3 [shape = 's32[1]{0}', space=sflag, size = 0x4, scoped, tag = 'scoped memory for recorder_forward.1']
    %12 = vsyncpa [#allocation3], 0
    // Predicated region
    $region2: #{recorder_forward.1} parent=1 // pred_check
      _
    $region3: #{recorder_forward.1} parent=1 // pred_check_branch
      %14 = sbr.rel (0) target = $region5
    $region4: #{recorder_forward.1} parent=1 // pred_region
      _
    $region5: #{recorder_forward.1} parent=1 // pred_fallthru
      _
    // Predicated region
    $region6: #{recorder_forward.1} parent=1 // pred_check
      _
    $region7: #{recorder_forward.1} parent=1 // pred_check_branch
      %16 = sbr.rel (0) target = $region9
    $region8: #{recorder_forward.1} parent=1 // pred_region
      _
    $region9: #{recorder_forward.1} parent=1 // pred_fallthru
      _
    // Predicated region
    $region10: #{recorder_forward.1} parent=1 // pred_check
      _
    $region11: #{recorder_forward.1} parent=1 // pred_check_branch
      %18 = sbr.rel (0) target = $region13
    $region12: #{recorder_forward.1} parent=1 // pred_region
      _
    $region13: #{recorder_forward.1} parent=1 // pred_fallthru
      _
    // Predicated region
    $region14: #{recorder_forward.1} parent=1 // pred_check
      _
    $region15: #{recorder_forward.1} parent=1 // pred_check_branch
      %20 = sbr.rel (0) target = $region17
    $region16: #{recorder_forward.1} parent=1 // pred_region
      _
    $region17: #{recorder_forward.1} parent=1 // pred_fallthru
      _
    // Predicated region
    $region18: #{recorder_forward.1} parent=1 // pred_check
      _
    $region19: #{recorder_forward.1} parent=1 // pred_check_branch
      %22 = sbr.rel (0) target = $region21
    $region20: #{recorder_forward.1} parent=1 // pred_region
      _
    $region21: #{recorder_forward.1} parent=1 // pred_fallthru
      _
    %v23 = vld [vmem:[%s2] sm:$0xff]
    %v24 = vld [vmem:[%s2 + $0x8] sm:$0xff]
    %v25 = vld [vmem:[%s2 + $0x10] sm:$0xff]
    %v26 = vld [vmem:[%s2 + $0x18] sm:$0xff]
    %v27 = vld [vmem:[%s2 + $0x20] sm:$0xff]
    %v28 = vld [vmem:[%s2 + $0x28] sm:$0xff]
    %v29 = vld [vmem:[%s2 + $0x30] sm:$0xff]
    %v30 = vld [vmem:[%s2 + $0x38] sm:$0xff]
    %v31 = vld [vmem:[%s2 + $0x100] sm:$0xff]
    %v32 = vld [vmem:[%s2 + $0x108] sm:$0xff]
    %v33 = vld [vmem:[%s2 + $0x110] sm:$0xff]
    %v34 = vld [vmem:[%s2 + $0x118] sm:$0xff]
    %v35 = vld [vmem:[%s0] sm:$0xff]
    %v36 = vld [vmem:[%s0 + $0x8] sm:$0xff]
    %v37 = vld [vmem:[%s0 + $0x10] sm:$0xff]
    %v38 = vld [vmem:[%s0 + $0x18] sm:$0xff]
    %v39 = vld [vmem:[%s0 + $0x20] sm:$0xff]
    %v40 = vld [vmem:[%s0 + $0x28] sm:$0xff]
    %v41 = vld [vmem:[%s0 + $0x30] sm:$0xff]
    %v42 = vld [vmem:[%s0 + $0x38] sm:$0xff]
    %v43 = vld [vmem:[%s4] sm:$0x1]
    %v44 = vperm.slane %v43, 0
    %vm45 = vcmask 523264
    %v47 = vsel %vm45, %v35, 0
    %v50 = vsel %vm45, %v36, 0
    %v53 = vsel %vm45, %v37, 0
    %v56 = vsel %vm45, %v38, 0
    %v59 = vsel %vm45, %v39, 0
    %v62 = vsel %vm45, %v40, 0
    %v65 = vsel %vm45, %v41, 0
    %v68 = vsel %vm45, %v42, 0
    %70 = vmatpush.msra.mxu0 0.0
    %71 = vmatpush.msra.mxu0 0.0
    %72 = vmatpush.msra.mxu0 0.0
    %73 = vmatpush.msra.mxu0 0.0
    %74 = vmatpush.msra.mxu0 0.0
    %75 = vmatpush.msra.mxu0 0.0
    %76 = vmatpush.msra.mxu0 0.0
    %77 = vmatpush.msra.mxu0 0.0
    %78 = vmatpush.msra.mxu0 %v30
    %79 = vmatpush.msra.mxu0 %v29
    %80 = vmatpush.msra.mxu0 %v28
    %81 = vmatpush.msra.mxu0 %v27
    %82 = vmatpush.msra.mxu0 %v26
    %83 = vmatpush.msra.mxu0 %v25
    %84 = vmatpush.msra.mxu0 %v24
    %85 = vmatpush.msra.mxu0 %v23
    %86 = vmatmul.f32.gmra.mxu0 %v47
    %v87 = vpop.f32.mrf.mxu0
    %v88 = vadd.f32 %v44, %v87
    %89 = vmatmul.f32.gmra.mxu0 %v50
    %v90 = vpop.f32.mrf.mxu0
    %v91 = vadd.f32 %v44, %v90
    %92 = vmatmul.f32.gmra.mxu0 %v53
    %v93 = vpop.f32.mrf.mxu0
    %v94 = vadd.f32 %v44, %v93
    %95 = vmatmul.f32.gmra.mxu0 %v56
    %v96 = vpop.f32.mrf.mxu0
    %v97 = vadd.f32 %v44, %v96
    %98 = vmatmul.f32.gmra.mxu0 %v59
    %v99 = vpop.f32.mrf.mxu0
    %v100 = vadd.f32 %v44, %v99
    %101 = vmatmul.f32.gmra.mxu0 %v62
    %v102 = vpop.f32.mrf.mxu0
    %v103 = vadd.f32 %v44, %v102
    %104 = vmatmul.f32.gmra.mxu0 %v65
    %v105 = vpop.f32.mrf.mxu0
    %v106 = vadd.f32 %v44, %v105
    %107 = vmatmul.f32.gmra.mxu0 %v68
    %v108 = vpop.f32.mrf.mxu0
    %v109 = vadd.f32 %v44, %v108
    %110 = vdwg.mxu0
    %v111 = vadd.f32 %v88, %v31
    %v112 = vadd.f32 %v91, %v32
    %v113 = vadd.f32 %v94, %v33
    %v114 = vadd.f32 %v97, %v34
    %v115 = vadd.f32 %v100, %v31
    %v116 = vadd.f32 %v103, %v32
    %v117 = vadd.f32 %v106, %v33
    %v118 = vadd.f32 %v109, %v34
    %vm119 = vcmask 261120
    %v120 = vsel %vm119, %v111, 0.0
    %121 = vadd.xlane.f32.xlu0 %v120
    %v122 = vpop.xlane.xlu0 %121
    %v123 = vsel %vm119, %v112, 0.0
    %124 = vadd.xlane.f32.xlu0 %v123
    %v125 = vpop.xlane.xlu0 %124
    %v126 = vsel %vm119, %v113, 0.0
    %127 = vadd.xlane.f32.xlu0 %v126
    %v128 = vpop.xlane.xlu0 %127
    %v129 = vsel %vm119, %v114, 0.0
    %130 = vadd.xlane.f32.xlu0 %v129
    %v131 = vpop.xlane.xlu0 %130
    %v132 = vsel %vm119, %v115, 0.0
    %133 = vadd.xlane.f32.xlu0 %v132
    %v134 = vpop.xlane.xlu0 %133
    %v135 = vsel %vm119, %v116, 0.0
    %136 = vadd.xlane.f32.xlu0 %v135
    %v137 = vpop.xlane.xlu0 %136
    %v138 = vsel %vm119, %v117, 0.0
    %139 = vadd.xlane.f32.xlu0 %v138
    %v140 = vpop.xlane.xlu0 %139
    %v141 = vsel %vm119, %v118, 0.0
    %142 = vadd.xlane.f32.xlu0 %v141
    %v143 = vpop.xlane.xlu0 %142
    %v144 = vrcp.pop 32.0
    %v145 = vmul.f32 32.0, %v144
    %v146 = vsub.f32 1.0, %v145
    %v147 = vmul.f32 %v144, %v146
    %v148 = vadd.f32 %v144, %v147
    %vm149 = vweird.f32 %v144
    %v150 = vsel %vm149, %v144, %v148
    %v151 = vmul.f32 %v122, %v150
    %v152 = vmul.f32 %v125, %v150
    %v153 = vmul.f32 %v128, %v150
    %v154 = vmul.f32 %v131, %v150
    %v155 = vmul.f32 %v134, %v150
    %v156 = vmul.f32 %v137, %v150
    %v157 = vmul.f32 %v140, %v150
    %v158 = vmul.f32 %v143, %v150
    %v159 = vsub.f32 %v111, %v151
    %v160 = vsub.f32 %v112, %v152
    %v161 = vsub.f32 %v113, %v153
    %v162 = vsub.f32 %v114, %v154
    %v163 = vsub.f32 %v115, %v155
    %v164 = vsub.f32 %v116, %v156
    %v165 = vsub.f32 %v117, %v157
    %v166 = vsub.f32 %v118, %v158
    %v167 = vmul.f32 %v159, %v159
    %v168 = vmul.f32 %v160, %v160
    %v169 = vmul.f32 %v161, %v161
    %v170 = vmul.f32 %v162, %v162
    %v171 = vmul.f32 %v163, %v163
    %v172 = vmul.f32 %v164, %v164
    %v173 = vmul.f32 %v165, %v165
    %v174 = vmul.f32 %v166, %v166
    %v175 = vsel %vm119, %v167, 0.0
    %176 = vadd.xlane.f32.xlu0 %v175
    %v177 = vpop.xlane.xlu0 %176
    %v178 = vsel %vm119, %v168, 0.0
    %179 = vadd.xlane.f32.xlu0 %v178
    %v180 = vpop.xlane.xlu0 %179
    %v181 = vsel %vm119, %v169, 0.0
    %182 = vadd.xlane.f32.xlu0 %v181
    %v183 = vpop.xlane.xlu0 %182
    %v184 = vsel %vm119, %v170, 0.0
    %185 = vadd.xlane.f32.xlu0 %v184
    %v186 = vpop.xlane.xlu0 %185
    %v187 = vsel %vm119, %v171, 0.0
    %188 = vadd.xlane.f32.xlu0 %v187
    %v189 = vpop.xlane.xlu0 %188
    %v190 = vsel %vm119, %v172, 0.0
    %191 = vadd.xlane.f32.xlu0 %v190
    %v192 = vpop.xlane.xlu0 %191
    %v193 = vsel %vm119, %v173, 0.0
    %194 = vadd.xlane.f32.xlu0 %v193
    %v195 = vpop.xlane.xlu0 %194
    %v196 = vsel %vm119, %v174, 0.0
    %197 = vadd.xlane.f32.xlu0 %v196
    %v198 = vpop.xlane.xlu0 %197
    %v199 = vmul.f32 %v177, %v150
    %v200 = vmul.f32 %v180, %v150
    %v201 = vmul.f32 %v183, %v150
    %v202 = vmul.f32 %v186, %v150
    %v203 = vmul.f32 %v189, %v150
    %v204 = vmul.f32 %v192, %v150
    %v205 = vmul.f32 %v195, %v150
    %v206 = vmul.f32 %v198, %v150
    %v207 = vadd.f32 %v199, 1e-05
    %v208 = vadd.f32 %v200, 1e-05
    %v209 = vadd.f32 %v201, 1e-05
    %v210 = vadd.f32 %v202, 1e-05
    %v211 = vadd.f32 %v203, 1e-05
    %v212 = vadd.f32 %v204, 1e-05
    %v213 = vadd.f32 %v205, 1e-05
    %v214 = vadd.f32 %v206, 1e-05
    %v215 = vrsqrt.pop %v207
    %v216 = vmul.f32 %v215, %v207
    %v217 = vmul.f32 %v216, %v215
    %v218 = vmul.f32 0.5, %v217
    %v219 = vsub.f32 1.5, %v218
    %v220 = vmul.f32 %v215, %v219
    %vm221 = vweird.f32 %v207
    %vm222 = vweird.f32 %v215
    %vm223 = vmor %vm221, %vm222
    %v224 = vsel %vm223, %v215, %v220
    %v225 = vrsqrt.pop %v208
    %v226 = vmul.f32 %v225, %v208
    %v227 = vmul.f32 %v226, %v225
    %v228 = vmul.f32 0.5, %v227
    %v229 = vsub.f32 1.5, %v228
    %v230 = vmul.f32 %v225, %v229
    %vm231 = vweird.f32 %v208
    %vm232 = vweird.f32 %v225
    %vm233 = vmor %vm231, %vm232
    %v234 = vsel %vm233, %v225, %v230
    %v235 = vrsqrt.pop %v209
    %v236 = vmul.f32 %v235, %v209
    %v237 = vmul.f32 %v236, %v235
    %v238 = vmul.f32 0.5, %v237
    %v239 = vsub.f32 1.5, %v238
    %v240 = vmul.f32 %v235, %v239
    %vm241 = vweird.f32 %v209
    %vm242 = vweird.f32 %v235
    %vm243 = vmor %vm241, %vm242
    %v244 = vsel %vm243, %v235, %v240
    %v245 = vrsqrt.pop %v210
    %v246 = vmul.f32 %v245, %v210
    %v247 = vmul.f32 %v246, %v245
    %v248 = vmul.f32 0.5, %v247
    %v249 = vsub.f32 1.5, %v248
    %v250 = vmul.f32 %v245, %v249
    %vm251 = vweird.f32 %v210
    %vm252 = vweird.f32 %v245
    %vm253 = vmor %vm251, %vm252
    %v254 = vsel %vm253, %v245, %v250
    %v255 = vrsqrt.pop %v211
    %v256 = vmul.f32 %v255, %v211
    %v257 = vmul.f32 %v256, %v255
    %v258 = vmul.f32 0.5, %v257
    %v259 = vsub.f32 1.5, %v258
    %v260 = vmul.f32 %v255, %v259
    %vm261 = vweird.f32 %v211
    %vm262 = vweird.f32 %v255
    %vm263 = vmor %vm261, %vm262
    %v264 = vsel %vm263, %v255, %v260
    %v265 = vrsqrt.pop %v212
    %v266 = vmul.f32 %v265, %v212
    %v267 = vmul.f32 %v266, %v265
    %v268 = vmul.f32 0.5, %v267
    %v269 = vsub.f32 1.5, %v268
    %v270 = vmul.f32 %v265, %v269
    %vm271 = vweird.f32 %v212
    %vm272 = vweird.f32 %v265
    %vm273 = vmor %vm271, %vm272
    %v274 = vsel %vm273, %v265, %v270
    %v275 = vrsqrt.pop %v213
    %v276 = vmul.f32 %v275, %v213
    %v277 = vmul.f32 %v276, %v275
    %v278 = vmul.f32 0.5, %v277
    %v279 = vsub.f32 1.5, %v278
    %v280 = vmul.f32 %v275, %v279
    %vm281 = vweird.f32 %v213
    %vm282 = vweird.f32 %v275
    %vm283 = vmor %vm281, %vm282
    %v284 = vsel %vm283, %v275, %v280
    %v285 = vrsqrt.pop %v214
    %v286 = vmul.f32 %v285, %v214
    %v287 = vmul.f32 %v286, %v285
    %v288 = vmul.f32 0.5, %v287
    %v289 = vsub.f32 1.5, %v288
    %v290 = vmul.f32 %v285, %v289
    %vm291 = vweird.f32 %v214
    %vm292 = vweird.f32 %v285
    %vm293 = vmor %vm291, %vm292
    %v294 = vsel %vm293, %v285, %v290
    %v295 = vmul.f32 %v159, %v224
    %v296 = vmul.f32 %v160, %v234
    %v297 = vmul.f32 %v161, %v244
    %v298 = vmul.f32 %v162, %v254
    %v299 = vmul.f32 %v163, %v264
    %v300 = vmul.f32 %v164, %v274
    %v301 = vmul.f32 %v165, %v284
    %v302 = vmul.f32 %v166, %v294
    %v303 = vld [vmem:[%s4 + $0x4] sm:$0x1]
    %v304 = vperm.slane %v303, 0
    %v305 = vmul.f32 %v295, %v304
    %v306 = vmul.f32 %v296, %v304
    %v307 = vmul.f32 %v297, %v304
    %v308 = vmul.f32 %v298, %v304
    %v309 = vmul.f32 %v299, %v304
    %v310 = vmul.f32 %v300, %v304
    %v311 = vmul.f32 %v301, %v304
    %v312 = vmul.f32 %v302, %v304
    %v313 = vld [vmem:[%s4 + $0x5] sm:$0x1]
    %v314 = vperm.slane %v313, 0
    %v315 = vadd.f32 %v305, %v314
    %v316 = vadd.f32 %v306, %v314
    %v317 = vadd.f32 %v307, %v314
    %v318 = vadd.f32 %v308, %v314
    %v319 = vadd.f32 %v309, %v314
    %v320 = vadd.f32 %v310, %v314
    %v321 = vadd.f32 %v311, %v314
    %v322 = vadd.f32 %v312, %v314
    %v323 = vld [vmem:[%s1] sm:$0xff]
    %v324 = vld [vmem:[%s1 + $0x8] sm:$0xff]
    %v325 = vld [vmem:[%s1 + $0x10] sm:$0xff]
    %v326 = vld [vmem:[%s1 + $0x18] sm:$0xff]
    %v327 = vld [vmem:[%s4 + $0xb] sm:$0x1]
    %v328 = vperm.slane %v327, 0
    %v330 = vsel %vm119, %v315, 0
    %v333 = vsel %vm119, %v316, 0
    %v336 = vsel %vm119, %v317, 0
    %v339 = vsel %vm119, %v318, 0
    %v342 = vsel %vm119, %v319, 0
    %v345 = vsel %vm119, %v320, 0
    %v348 = vsel %vm119, %v321, 0
    %v351 = vsel %vm119, %v322, 0
    %353 = vmatpush.msra.mxu0 0.0
    %354 = vmatpush.msra.mxu0 0.0
    %355 = vmatpush.msra.mxu0 0.0
    %356 = vmatpush.msra.mxu0 0.0
    %357 = vmatpush.msra.mxu0 0.0
    %358 = vmatpush.msra.mxu0 0.0
    %359 = vmatpush.msra.mxu0 0.0
    %360 = vmatpush.msra.mxu0 0.0
    %361 = vmatpush.msra.mxu0 0.0
    %362 = vmatpush.msra.mxu0 0.0
    %363 = vmatpush.msra.mxu0 0.0
    %364 = vmatpush.msra.mxu0 0.0
    %365 = vmatpush.msra.mxu0 %v326
    %366 = vmatpush.msra.mxu0 %v325
    %367 = vmatpush.msra.mxu0 %v324
    %368 = vmatpush.msra.mxu0 %v323
    %369 = vmatmul.f32.gmra.mxu0 %v330
    %v370 = vpop.f32.mrf.mxu0
    %v371 = vadd.f32 %v328, %v370
    %372 = vmatmul.f32.gmra.mxu0 %v333
    %v373 = vpop.f32.mrf.mxu0
    %v374 = vadd.f32 %v328, %v373
    %375 = vmatmul.f32.gmra.mxu0 %v336
    %v376 = vpop.f32.mrf.mxu0
    %v377 = vadd.f32 %v328, %v376
    %378 = vmatmul.f32.gmra.mxu0 %v339
    %v379 = vpop.f32.mrf.mxu0
    %v380 = vadd.f32 %v328, %v379
    %381 = vmatmul.f32.gmra.mxu0 %v342
    %v382 = vpop.f32.mrf.mxu0
    %v383 = vadd.f32 %v328, %v382
    %384 = vmatmul.f32.gmra.mxu0 %v345
    %v385 = vpop.f32.mrf.mxu0
    %v386 = vadd.f32 %v328, %v385
    %387 = vmatmul.f32.gmra.mxu0 %v348
    %v388 = vpop.f32.mrf.mxu0
    %v389 = vadd.f32 %v328, %v388
    %390 = vmatmul.f32.gmra.mxu0 %v351
    %v391 = vpop.f32.mrf.mxu0
    %v392 = vadd.f32 %v328, %v391
    %393 = vdwg.mxu0
    %s394 = scalar_lea.vmem %s1, 32
    %v395 = vld [vmem:[%s394] sm:$0xff]
    %v396 = vld [vmem:[%s394 + $0x8] sm:$0xff]
    %v397 = vld [vmem:[%s394 + $0x10] sm:$0xff]
    %v398 = vld [vmem:[%s394 + $0x18] sm:$0xff]
    %v399 = vld [vmem:[%s4 + $0xc] sm:$0x1]
    %v400 = vperm.slane %v399, 0
    %401 = vmatpush.msra.mxu0 0.0
    %402 = vmatpush.msra.mxu0 0.0
    %403 = vmatpush.msra.mxu0 0.0
    %404 = vmatpush.msra.mxu0 0.0
    %405 = vmatpush.msra.mxu0 0.0
    %406 = vmatpush.msra.mxu0 0.0
    %407 = vmatpush.msra.mxu0 0.0
    %408 = vmatpush.msra.mxu0 0.0
    %409 = vmatpush.msra.mxu0 0.0
    %410 = vmatpush.msra.mxu0 0.0
    %411 = vmatpush.msra.mxu0 0.0
    %412 = vmatpush.msra.mxu0 0.0
    %413 = vmatpush.msra.mxu0 %v398
    %414 = vmatpush.msra.mxu0 %v397
    %415 = vmatpush.msra.mxu0 %v396
    %416 = vmatpush.msra.mxu0 %v395
    %417 = vmatmul.f32.gmra.mxu0 %v330
    %v418 = vpop.f32.mrf.mxu0
    %v419 = vadd.f32 %v400, %v418
    %420 = vmatmul.f32.gmra.mxu0 %v333
    %v421 = vpop.f32.mrf.mxu0
    %v422 = vadd.f32 %v400, %v421
    %423 = vmatmul.f32.gmra.mxu0 %v336
    %v424 = vpop.f32.mrf.mxu0
    %v425 = vadd.f32 %v400, %v424
    %426 = vmatmul.f32.gmra.mxu0 %v339
    %v427 = vpop.f32.mrf.mxu0
    %v428 = vadd.f32 %v400, %v427
    %429 = vmatmul.f32.gmra.mxu0 %v342
    %v430 = vpop.f32.mrf.mxu0
    %v431 = vadd.f32 %v400, %v430
    %432 = vmatmul.f32.gmra.mxu0 %v345
    %v433 = vpop.f32.mrf.mxu0
    %v434 = vadd.f32 %v400, %v433
    %435 = vmatmul.f32.gmra.mxu0 %v348
    %v436 = vpop.f32.mrf.mxu0
    %v437 = vadd.f32 %v400, %v436
    %438 = vmatmul.f32.gmra.mxu0 %v351
    %v439 = vpop.f32.mrf.mxu0
    %v440 = vadd.f32 %v400, %v439
    %441 = vdwg.mxu0
    %s442 = scalar_lea.vmem %s1, 64
    %v443 = vld [vmem:[%s442] sm:$0xff]
    %v444 = vld [vmem:[%s442 + $0x8] sm:$0xff]
    %v445 = vld [vmem:[%s442 + $0x10] sm:$0xff]
    %v446 = vld [vmem:[%s442 + $0x18] sm:$0xff]
    %v447 = vld [vmem:[%s4 + $0xd] sm:$0x1]
    %v448 = vperm.slane %v447, 0
    %449 = vmatpush.msra.mxu0 0.0
    %450 = vmatpush.msra.mxu0 0.0
    %451 = vmatpush.msra.mxu0 0.0
    %452 = vmatpush.msra.mxu0 0.0
    %453 = vmatpush.msra.mxu0 0.0
    %454 = vmatpush.msra.mxu0 0.0
    %455 = vmatpush.msra.mxu0 0.0
    %456 = vmatpush.msra.mxu0 0.0
    %457 = vmatpush.msra.mxu0 0.0
    %458 = vmatpush.msra.mxu0 0.0
    %459 = vmatpush.msra.mxu0 0.0
    %460 = vmatpush.msra.mxu0 0.0
    %461 = vmatpush.msra.mxu0 %v446
    %462 = vmatpush.msra.mxu0 %v445
    %463 = vmatpush.msra.mxu0 %v444
    %464 = vmatpush.msra.mxu0 %v443
    %465 = vmatmul.f32.gmra.mxu0 %v330
    %v466 = vpop.f32.mrf.mxu0
    %v467 = vadd.f32 %v448, %v466
    %468 = vmatmul.f32.gmra.mxu0 %v333
    %v469 = vpop.f32.mrf.mxu0
    %v470 = vadd.f32 %v448, %v469
    %471 = vmatmul.f32.gmra.mxu0 %v336
    %v472 = vpop.f32.mrf.mxu0
    %v473 = vadd.f32 %v448, %v472
    %474 = vmatmul.f32.gmra.mxu0 %v339
    %v475 = vpop.f32.mrf.mxu0
    %v476 = vadd.f32 %v448, %v475
    %477 = vmatmul.f32.gmra.mxu0 %v342
    %v478 = vpop.f32.mrf.mxu0
    %v479 = vadd.f32 %v448, %v478
    %480 = vmatmul.f32.gmra.mxu0 %v345
    %v481 = vpop.f32.mrf.mxu0
    %v482 = vadd.f32 %v448, %v481
    %483 = vmatmul.f32.gmra.mxu0 %v348
    %v484 = vpop.f32.mrf.mxu0
    %v485 = vadd.f32 %v448, %v484
    %486 = vmatmul.f32.gmra.mxu0 %v351
    %v487 = vpop.f32.mrf.mxu0
    %v488 = vadd.f32 %v448, %v487
    %489 = vdwg.mxu0
    %v490 = vld [vmem:[%s2 + $0xc0] sm:$0xff]
    %v491 = vld [vmem:[%s2 + $0xc8] sm:$0xff]
    %vm492 = vcmask 130048
    %v494 = vsel %vm492, %v371, 0
    %v497 = vsel %vm492, %v374, 0
    %v500 = vsel %vm492, %v377, 0
    %v503 = vsel %vm492, %v380, 0
    %v506 = vsel %vm492, %v419, 0
    %v509 = vsel %vm492, %v422, 0
    %v512 = vsel %vm492, %v425, 0
    %v515 = vsel %vm492, %v428, 0
    %517 = vmatpush.xpose.msra.mxu0 0.0
    %518 = vmatpush.xpose.msra.mxu0 0.0
    %519 = vmatpush.xpose.msra.mxu0 0.0
    %520 = vmatpush.xpose.msra.mxu0 0.0
    %521 = vmatpush.xpose.msra.mxu0 0.0
    %522 = vmatpush.xpose.msra.mxu0 0.0
    %523 = vmatpush.xpose.msra.mxu0 0.0
    %524 = vmatpush.xpose.msra.mxu0 0.0
    %525 = vmatpush.xpose.msra.mxu0 0.0
    %526 = vmatpush.xpose.msra.mxu0 0.0
    %527 = vmatpush.xpose.msra.mxu0 0.0
    %528 = vmatpush.xpose.msra.mxu0 0.0
    %529 = vmatpush.xpose.msra.mxu0 %v515
    %530 = vmatpush.xpose.msra.mxu0 %v512
    %531 = vmatpush.xpose.msra.mxu0 %v509
    %532 = vmatpush.xpose.msra.mxu0 %v506
    %533 = vmatmul.f32.gmra.mxu0 %v494
    %v534 = vpop.f32.mrf.mxu0
    %v535 = vadd.f32 0.0, %v534
    %536 = vmatmul.f32.gmra.mxu0 %v497
    %v537 = vpop.f32.mrf.mxu0
    %v538 = vadd.f32 0.0, %v537
    %539 = vmatmul.f32.gmra.mxu0 %v500
    %v540 = vpop.f32.mrf.mxu0
    %v541 = vadd.f32 0.0, %v540
    %542 = vmatmul.f32.gmra.mxu0 %v503
    %v543 = vpop.f32.mrf.mxu0
    %v544 = vadd.f32 0.0, %v543
    %545 = vdwg.mxu0
    %v546 = vsel %vm119, %v535, -inf
    %547 = vmax.xlane.f32.xlu0 %v546
    %v548 = vpop.xlane.xlu0 %547
    %v549 = vsel %vm119, %v538, -inf
    %550 = vmax.xlane.f32.xlu0 %v549
    %v551 = vpop.xlane.xlu0 %550
    %v552 = vsel %vm119, %v541, -inf
    %553 = vmax.xlane.f32.xlu0 %v552
    %v554 = vpop.xlane.xlu0 %553
    %v555 = vsel %vm119, %v544, -inf
    %556 = vmax.xlane.f32.xlu0 %v555
    %v557 = vpop.xlane.xlu0 %556
    %v558 = vsub.f32 %v535, %v548
    %v559 = vsub.f32 %v538, %v551
    %v560 = vsub.f32 %v541, %v554
    %v561 = vsub.f32 %v544, %v557
    %v562 = vmul.f32 %v558, 1.442695
    %v563 = vpow.pop %v562
    %v564 = vmul.f32 %v559, 1.442695
    %v565 = vpow.pop %v564
    %v566 = vmul.f32 %v560, 1.442695
    %v567 = vpow.pop %v566
    %v568 = vmul.f32 %v561, 1.442695
    %v569 = vpow.pop %v568
    %v570 = vsel %vm119, %v563, 0.0
    %571 = vadd.xlane.f32.xlu0 %v570
    %v572 = vpop.xlane.xlu0 %571
    %v573 = vsel %vm119, %v565, 0.0
    %574 = vadd.xlane.f32.xlu0 %v573
    %v575 = vpop.xlane.xlu0 %574
    %v576 = vsel %vm119, %v567, 0.0
    %577 = vadd.xlane.f32.xlu0 %v576
    %v578 = vpop.xlane.xlu0 %577
    %v579 = vsel %vm119, %v569, 0.0
    %580 = vadd.xlane.f32.xlu0 %v579
    %v581 = vpop.xlane.xlu0 %580
    %v582 = vrcp.pop %v572
    %v583 = vmul.f32 %v572, %v582
    %v584 = vsub.f32 1.0, %v583
    %v585 = vmul.f32 %v582, %v584
    %v586 = vadd.f32 %v582, %v585
    %vm587 = vweird.f32 %v572
    %vm588 = vweird.f32 %v582
    %vm589 = vmor %vm587, %vm588
    %v590 = vsel %vm589, %v582, %v586
    %v591 = vand.u32 2147483647, %v572
    %vm592 = vcmp.eq.f32.partialorder %v591, 8.507059e+37
    %v593 = vand.u32 %v572, 2147483648
    %v594 = vor.u32 1.1754944e-38, %v593
    %v595 = vsel %vm592, %v594, %v590
    %v596 = vmul.f32 %v563, %v595
    %v597 = vrcp.pop %v575
    %v598 = vmul.f32 %v575, %v597
    %v599 = vsub.f32 1.0, %v598
    %v600 = vmul.f32 %v597, %v599
    %v601 = vadd.f32 %v597, %v600
    %vm602 = vweird.f32 %v575
    %vm603 = vweird.f32 %v597
    %vm604 = vmor %vm602, %vm603
    %v605 = vsel %vm604, %v597, %v601
    %v606 = vand.u32 2147483647, %v575
    %vm607 = vcmp.eq.f32.partialorder %v606, 8.507059e+37
    %v608 = vand.u32 %v575, 2147483648
    %v609 = vor.u32 1.1754944e-38, %v608
    %v610 = vsel %vm607, %v609, %v605
    %v611 = vmul.f32 %v565, %v610
    %v612 = vrcp.pop %v578
    %v613 = vmul.f32 %v578, %v612
    %v614 = vsub.f32 1.0, %v613
    %v615 = vmul.f32 %v612, %v614
    %v616 = vadd.f32 %v612, %v615
    %vm617 = vweird.f32 %v578
    %vm618 = vweird.f32 %v612
    %vm619 = vmor %vm617, %vm618
    %v620 = vsel %vm619, %v612, %v616
    %v621 = vand.u32 2147483647, %v578
    %vm622 = vcmp.eq.f32.partialorder %v621, 8.507059e+37
    %v623 = vand.u32 %v578, 2147483648
    %v624 = vor.u32 1.1754944e-38, %v623
    %v625 = vsel %vm622, %v624, %v620
    %v626 = vmul.f32 %v567, %v625
    %v627 = vrcp.pop %v581
    %v628 = vmul.f32 %v581, %v627
    %v629 = vsub.f32 1.0, %v628
    %v630 = vmul.f32 %v627, %v629
    %v631 = vadd.f32 %v627, %v630
    %vm632 = vweird.f32 %v581
    %vm633 = vweird.f32 %v627
    %vm634 = vmor %vm632, %vm633
    %v635 = vsel %vm634, %v627, %v631
    %v636 = vand.u32 2147483647, %v581
    %vm637 = vcmp.eq.f32.partialorder %v636, 8.507059e+37
    %v638 = vand.u32 %v581, 2147483648
    %v639 = vor.u32 1.1754944e-38, %v638
    %v640 = vsel %vm637, %v639, %v635
    %v641 = vmul.f32 %v569, %v640
    %v643 = vsel %vm119, %v596, 0
    %v646 = vsel %vm119, %v611, 0
    %v649 = vsel %vm119, %v626, 0
    %v652 = vsel %vm119, %v641, 0
    %654 = vmatpush.msra.mxu0 0.0
    %655 = vmatpush.msra.mxu0 0.0
    %656 = vmatpush.msra.mxu0 0.0
    %657 = vmatpush.msra.mxu0 0.0
    %658 = vmatpush.msra.mxu0 0.0
    %659 = vmatpush.msra.mxu0 0.0
    %660 = vmatpush.msra.mxu0 0.0
    %661 = vmatpush.msra.mxu0 0.0
    %662 = vmatpush.msra.mxu0 0.0
    %663 = vmatpush.msra.mxu0 0.0
    %664 = vmatpush.msra.mxu0 0.0
    %665 = vmatpush.msra.mxu0 0.0
    %666 = vmatpush.msra.mxu0 %v476
    %667 = vmatpush.msra.mxu0 %v473
    %668 = vmatpush.msra.mxu0 %v470
    %669 = vmatpush.msra.mxu0 %v467
    %670 = vmatmul.f32.gmra.mxu0 %v643
    %v671 = vpop.f32.mrf.mxu0
    %v672 = vadd.f32 0.0, %v671
    %673 = vmatmul.f32.gmra.mxu0 %v646
    %v674 = vpop.f32.mrf.mxu0
    %v675 = vadd.f32 0.0, %v674
    %676 = vmatmul.f32.gmra.mxu0 %v649
    %v677 = vpop.f32.mrf.mxu0
    %v678 = vadd.f32 0.0, %v677
    %679 = vmatmul.f32.gmra.mxu0 %v652
    %v680 = vpop.f32.mrf.mxu0
    %v681 = vadd.f32 0.0, %v680
    %682 = vdwg.mxu0
    %v684 = vsel %vm492, %v383, 0
    %v687 = vsel %vm492, %v386, 0
    %v690 = vsel %vm492, %v389, 0
    %v693 = vsel %vm492, %v392, 0
    %v696 = vsel %vm492, %v431, 0
    %v699 = vsel %vm492, %v434, 0
    %v702 = vsel %vm492, %v437, 0
    %v705 = vsel %vm492, %v440, 0
    %707 = vmatpush.xpose.msra.mxu0 0.0
    %708 = vmatpush.xpose.msra.mxu0 0.0
    %709 = vmatpush.xpose.msra.mxu0 0.0
    %710 = vmatpush.xpose.msra.mxu0 0.0
    %711 = vmatpush.xpose.msra.mxu0 0.0
    %712 = vmatpush.xpose.msra.mxu0 0.0
    %713 = vmatpush.xpose.msra.mxu0 0.0
    %714 = vmatpush.xpose.msra.mxu0 0.0
    %715 = vmatpush.xpose.msra.mxu0 0.0
    %716 = vmatpush.xpose.msra.mxu0 0.0
    %717 = vmatpush.xpose.msra.mxu0 0.0
    %718 = vmatpush.xpose.msra.mxu0 0.0
    %719 = vmatpush.xpose.msra.mxu0 %v705
    %720 = vmatpush.xpose.msra.mxu0 %v702
    %721 = vmatpush.xpose.msra.mxu0 %v699
    %722 = vmatpush.xpose.msra.mxu0 %v696
    %723 = vmatmul.f32.gmra.mxu0 %v684
    %v724 = vpop.f32.mrf.mxu0
    %v725 = vadd.f32 0.0, %v724
    %726 = vmatmul.f32.gmra.mxu0 %v687
    %v727 = vpop.f32.mrf.mxu0
    %v728 = vadd.f32 0.0, %v727
    %729 = vmatmul.f32.gmra.mxu0 %v690
    %v730 = vpop.f32.mrf.mxu0
    %v731 = vadd.f32 0.0, %v730
    %732 = vmatmul.f32.gmra.mxu0 %v693
    %v733 = vpop.f32.mrf.mxu0
    %v734 = vadd.f32 0.0, %v733
    %735 = vdwg.mxu0
    %v736 = vsel %vm119, %v725, -inf
    %737 = vmax.xlane.f32.xlu0 %v736
    %v738 = vpop.xlane.xlu0 %737
    %v739 = vsel %vm119, %v728, -inf
    %740 = vmax.xlane.f32.xlu0 %v739
    %v741 = vpop.xlane.xlu0 %740
    %v742 = vsel %vm119, %v731, -inf
    %743 = vmax.xlane.f32.xlu0 %v742
    %v744 = vpop.xlane.xlu0 %743
    %v745 = vsel %vm119, %v734, -inf
    %746 = vmax.xlane.f32.xlu0 %v745
    %v747 = vpop.xlane.xlu0 %746
    %v748 = vsub.f32 %v725, %v738
    %v749 = vsub.f32 %v728, %v741
    %v750 = vsub.f32 %v731, %v744
    %v751 = vsub.f32 %v734, %v747
    %v752 = vmul.f32 %v748, 1.442695
    %v753 = vpow.pop %v752
    %v754 = vmul.f32 %v749, 1.442695
    %v755 = vpow.pop %v754
    %v756 = vmul.f32 %v750, 1.442695
    %v757 = vpow.pop %v756
    %v758 = vmul.f32 %v751, 1.442695
    %v759 = vpow.pop %v758
    %v760 = vsel %vm119, %v753, 0.0
    %761 = vadd.xlane.f32.xlu0 %v760
    %v762 = vpop.xlane.xlu0 %761
    %v763 = vsel %vm119, %v755, 0.0
    %764 = vadd.xlane.f32.xlu0 %v763
    %v765 = vpop.xlane.xlu0 %764
    %v766 = vsel %vm119, %v757, 0.0
    %767 = vadd.xlane.f32.xlu0 %v766
    %v768 = vpop.xlane.xlu0 %767
    %v769 = vsel %vm119, %v759, 0.0
    %770 = vadd.xlane.f32.xlu0 %v769
    %v771 = vpop.xlane.xlu0 %770
    %v772 = vrcp.pop %v762
    %v773 = vmul.f32 %v762, %v772
    %v774 = vsub.f32 1.0, %v773
    %v775 = vmul.f32 %v772, %v774
    %v776 = vadd.f32 %v772, %v775
    %vm777 = vweird.f32 %v762
    %vm778 = vweird.f32 %v772
    %vm779 = vmor %vm777, %vm778
    %v780 = vsel %vm779, %v772, %v776
    %v781 = vand.u32 2147483647, %v762
    %vm782 = vcmp.eq.f32.partialorder %v781, 8.507059e+37
    %v783 = vand.u32 %v762, 2147483648
    %v784 = vor.u32 1.1754944e-38, %v783
    %v785 = vsel %vm782, %v784, %v780
    %v786 = vmul.f32 %v753, %v785
    %v787 = vrcp.pop %v765
    %v788 = vmul.f32 %v765, %v787
    %v789 = vsub.f32 1.0, %v788
    %v790 = vmul.f32 %v787, %v789
    %v791 = vadd.f32 %v787, %v790
    %vm792 = vweird.f32 %v765
    %vm793 = vweird.f32 %v787
    %vm794 = vmor %vm792, %vm793
    %v795 = vsel %vm794, %v787, %v791
    %v796 = vand.u32 2147483647, %v765
    %vm797 = vcmp.eq.f32.partialorder %v796, 8.507059e+37
    %v798 = vand.u32 %v765, 2147483648
    %v799 = vor.u32 1.1754944e-38, %v798
    %v800 = vsel %vm797, %v799, %v795
    %v801 = vmul.f32 %v755, %v800
    %v802 = vrcp.pop %v768
    %v803 = vmul.f32 %v768, %v802
    %v804 = vsub.f32 1.0, %v803
    %v805 = vmul.f32 %v802, %v804
    %v806 = vadd.f32 %v802, %v805
    %vm807 = vweird.f32 %v768
    %vm808 = vweird.f32 %v802
    %vm809 = vmor %vm807, %vm808
    %v810 = vsel %vm809, %v802, %v806
    %v811 = vand.u32 2147483647, %v768
    %vm812 = vcmp.eq.f32.partialorder %v811, 8.507059e+37
    %v813 = vand.u32 %v768, 2147483648
    %v814 = vor.u32 1.1754944e-38, %v813
    %v815 = vsel %vm812, %v814, %v810
    %v816 = vmul.f32 %v757, %v815
    %v817 = vrcp.pop %v771
    %v818 = vmul.f32 %v771, %v817
    %v819 = vsub.f32 1.0, %v818
    %v820 = vmul.f32 %v817, %v819
    %v821 = vadd.f32 %v817, %v820
    %vm822 = vweird.f32 %v771
    %vm823 = vweird.f32 %v817
    %vm824 = vmor %vm822, %vm823
    %v825 = vsel %vm824, %v817, %v821
    %v826 = vand.u32 2147483647, %v771
    %vm827 = vcmp.eq.f32.partialorder %v826, 8.507059e+37
    %v828 = vand.u32 %v771, 2147483648
    %v829 = vor.u32 1.1754944e-38, %v828
    %v830 = vsel %vm827, %v829, %v825
    %v831 = vmul.f32 %v759, %v830
    %v833 = vsel %vm119, %v786, 0
    %v836 = vsel %vm119, %v801, 0
    %v839 = vsel %vm119, %v816, 0
    %v842 = vsel %vm119, %v831, 0
    %844 = vmatpush.msra.mxu0 0.0
    %845 = vmatpush.msra.mxu0 0.0
    %846 = vmatpush.msra.mxu0 0.0
    %847 = vmatpush.msra.mxu0 0.0
    %848 = vmatpush.msra.mxu0 0.0
    %849 = vmatpush.msra.mxu0 0.0
    %850 = vmatpush.msra.mxu0 0.0
    %851 = vmatpush.msra.mxu0 0.0
    %852 = vmatpush.msra.mxu0 0.0
    %853 = vmatpush.msra.mxu0 0.0
    %854 = vmatpush.msra.mxu0 0.0
    %855 = vmatpush.msra.mxu0 0.0
    %856 = vmatpush.msra.mxu0 %v488
    %857 = vmatpush.msra.mxu0 %v485
    %858 = vmatpush.msra.mxu0 %v482
    %859 = vmatpush.msra.mxu0 %v479
    %860 = vmatmul.f32.gmra.mxu0 %v833
    %v861 = vpop.f32.mrf.mxu0
    %v862 = vadd.f32 0.0, %v861
    %863 = vmatmul.f32.gmra.mxu0 %v836
    %v864 = vpop.f32.mrf.mxu0
    %v865 = vadd.f32 0.0, %v864
    %866 = vmatmul.f32.gmra.mxu0 %v839
    %v867 = vpop.f32.mrf.mxu0
    %v868 = vadd.f32 0.0, %v867
    %869 = vmatmul.f32.gmra.mxu0 %v842
    %v870 = vpop.f32.mrf.mxu0
    %v871 = vadd.f32 0.0, %v870
    %872 = vdwg.mxu0
    %s873 = scalar_lea.vmem %s1, 96
    %v874 = vld [vmem:[%s873] sm:$0xff]
    %v875 = vld [vmem:[%s873 + $0x8] sm:$0xff]
    %v876 = vld [vmem:[%s873 + $0x10] sm:$0xff]
    %v877 = vld [vmem:[%s873 + $0x18] sm:$0xff]
    %v878 = vld [vmem:[%s4 + $0xe] sm:$0x1]
    %v879 = vperm.slane %v878, 0
    %880 = vmatpush.msra.mxu0 0.0
    %881 = vmatpush.msra.mxu0 0.0
    %882 = vmatpush.msra.mxu0 0.0
    %883 = vmatpush.msra.mxu0 0.0
    %884 = vmatpush.msra.mxu0 0.0
    %885 = vmatpush.msra.mxu0 0.0
    %886 = vmatpush.msra.mxu0 0.0
    %887 = vmatpush.msra.mxu0 0.0
    %888 = vmatpush.msra.mxu0 0.0
    %889 = vmatpush.msra.mxu0 0.0
    %890 = vmatpush.msra.mxu0 0.0
    %891 = vmatpush.msra.mxu0 0.0
    %892 = vmatpush.msra.mxu0 %v877
    %893 = vmatpush.msra.mxu0 %v876
    %894 = vmatpush.msra.mxu0 %v875
    %895 = vmatpush.msra.mxu0 %v874
    %896 = vmatmul.f32.gmra.mxu0 %v330
    %v897 = vpop.f32.mrf.mxu0
    %v898 = vadd.f32 %v879, %v897
    %899 = vmatmul.f32.gmra.mxu0 %v333
    %v900 = vpop.f32.mrf.mxu0
    %v901 = vadd.f32 %v879, %v900
    %902 = vmatmul.f32.gmra.mxu0 %v336
    %v903 = vpop.f32.mrf.mxu0
    %v904 = vadd.f32 %v879, %v903
    %905 = vmatmul.f32.gmra.mxu0 %v339
    %v906 = vpop.f32.mrf.mxu0
    %v907 = vadd.f32 %v879, %v906
    %908 = vmatmul.f32.gmra.mxu0 %v342
    %v909 = vpop.f32.mrf.mxu0
    %v910 = vadd.f32 %v879, %v909
    %911 = vmatmul.f32.gmra.mxu0 %v345
    %v912 = vpop.f32.mrf.mxu0
    %v913 = vadd.f32 %v879, %v912
    %914 = vmatmul.f32.gmra.mxu0 %v348
    %v915 = vpop.f32.mrf.mxu0
    %v916 = vadd.f32 %v879, %v915
    %917 = vmatmul.f32.gmra.mxu0 %v351
    %v918 = vpop.f32.mrf.mxu0
    %v919 = vadd.f32 %v879, %v918
    %920 = vdwg.mxu0
    %s921 = scalar_lea.vmem %s1, 128
    %v922 = vld [vmem:[%s921] sm:$0xff]
    %v923 = vld [vmem:[%s921 + $0x8] sm:$0xff]
    %v924 = vld [vmem:[%s921 + $0x10] sm:$0xff]
    %v925 = vld [vmem:[%s921 + $0x18] sm:$0xff]
    %v926 = vld [vmem:[%s4 + $0xf] sm:$0x1]
    %v927 = vperm.slane %v926, 0
    %928 = vmatpush.msra.mxu0 0.0
    %929 = vmatpush.msra.mxu0 0.0
    %930 = vmatpush.msra.mxu0 0.0
    %931 = vmatpush.msra.mxu0 0.0
    %932 = vmatpush.msra.mxu0 0.0
    %933 = vmatpush.msra.mxu0 0.0
    %934 = vmatpush.msra.mxu0 0.0
    %935 = vmatpush.msra.mxu0 0.0
    %936 = vmatpush.msra.mxu0 0.0
    %937 = vmatpush.msra.mxu0 0.0
    %938 = vmatpush.msra.mxu0 0.0
    %939 = vmatpush.msra.mxu0 0.0
    %940 = vmatpush.msra.mxu0 %v925
    %941 = vmatpush.msra.mxu0 %v924
    %942 = vmatpush.msra.mxu0 %v923
    %943 = vmatpush.msra.mxu0 %v922
    %944 = vmatmul.f32.gmra.mxu0 %v330
    %v945 = vpop.f32.mrf.mxu0
    %v946 = vadd.f32 %v927, %v945
    %947 = vmatmul.f32.gmra.mxu0 %v333
    %v948 = vpop.f32.mrf.mxu0
    %v949 = vadd.f32 %v927, %v948
    %950 = vmatmul.f32.gmra.mxu0 %v336
    %v951 = vpop.f32.mrf.mxu0
    %v952 = vadd.f32 %v927, %v951
    %953 = vmatmul.f32.gmra.mxu0 %v339
    %v954 = vpop.f32.mrf.mxu0
    %v955 = vadd.f32 %v927, %v954
    %956 = vmatmul.f32.gmra.mxu0 %v342
    %v957 = vpop.f32.mrf.mxu0
    %v958 = vadd.f32 %v927, %v957
    %959 = vmatmul.f32.gmra.mxu0 %v345
    %v960 = vpop.f32.mrf.mxu0
    %v961 = vadd.f32 %v927, %v960
    %962 = vmatmul.f32.gmra.mxu0 %v348
    %v963 = vpop.f32.mrf.mxu0
    %v964 = vadd.f32 %v927, %v963
    %965 = vmatmul.f32.gmra.mxu0 %v351
    %v966 = vpop.f32.mrf.mxu0
    %v967 = vadd.f32 %v927, %v966
    %968 = vdwg.mxu0
    %s969 = scalar_lea.vmem %s1, 160
    %v970 = vld [vmem:[%s969] sm:$0xff]
    %v971 = vld [vmem:[%s969 + $0x8] sm:$0xff]
    %v972 = vld [vmem:[%s969 + $0x10] sm:$0xff]
    %v973 = vld [vmem:[%s969 + $0x18] sm:$0xff]
    %v974 = vld [vmem:[%s4 + $0x10] sm:$0x1]
    %v975 = vperm.slane %v974, 0
    %976 = vmatpush.msra.mxu0 0.0
    %977 = vmatpush.msra.mxu0 0.0
    %978 = vmatpush.msra.mxu0 0.0
    %979 = vmatpush.msra.mxu0 0.0
    %980 = vmatpush.msra.mxu0 0.0
    %981 = vmatpush.msra.mxu0 0.0
    %982 = vmatpush.msra.mxu0 0.0
    %983 = vmatpush.msra.mxu0 0.0
    %984 = vmatpush.msra.mxu0 0.0
    %985 = vmatpush.msra.mxu0 0.0
    %986 = vmatpush.msra.mxu0 0.0
    %987 = vmatpush.msra.mxu0 0.0
    %988 = vmatpush.msra.mxu0 %v973
    %989 = vmatpush.msra.mxu0 %v972
    %990 = vmatpush.msra.mxu0 %v971
    %991 = vmatpush.msra.mxu0 %v970
    %992 = vmatmul.f32.gmra.mxu0 %v330
    %v993 = vpop.f32.mrf.mxu0
    %v994 = vadd.f32 %v975, %v993
    %995 = vmatmul.f32.gmra.mxu0 %v333
    %v996 = vpop.f32.mrf.mxu0
    %v997 = vadd.f32 %v975, %v996
    %998 = vmatmul.f32.gmra.mxu0 %v336
    %v999 = vpop.f32.mrf.mxu0
    %v1000 = vadd.f32 %v975, %v999
    %1001 = vmatmul.f32.gmra.mxu0 %v339
    %v1002 = vpop.f32.mrf.mxu0
    %v1003 = vadd.f32 %v975, %v1002
    %1004 = vmatmul.f32.gmra.mxu0 %v342
    %v1005 = vpop.f32.mrf.mxu0
    %v1006 = vadd.f32 %v975, %v1005
    %1007 = vmatmul.f32.gmra.mxu0 %v345
    %v1008 = vpop.f32.mrf.mxu0
    %v1009 = vadd.f32 %v975, %v1008
    %1010 = vmatmul.f32.gmra.mxu0 %v348
    %v1011 = vpop.f32.mrf.mxu0
    %v1012 = vadd.f32 %v975, %v1011
    %1013 = vmatmul.f32.gmra.mxu0 %v351
    %v1014 = vpop.f32.mrf.mxu0
    %v1015 = vadd.f32 %v975, %v1014
    %1016 = vdwg.mxu0
    %v1017 = vld [vmem:[%s2 + $0xd0] sm:$0xff]
    %v1018 = vld [vmem:[%s2 + $0xd8] sm:$0xff]
    %v1020 = vsel %vm492, %v898, 0
    %v1023 = vsel %vm492, %v901, 0
    %v1026 = vsel %vm492, %v904, 0
    %v1029 = vsel %vm492, %v907, 0
    %v1032 = vsel %vm492, %v946, 0
    %v1035 = vsel %vm492, %v949, 0
    %v1038 = vsel %vm492, %v952, 0
    %v1041 = vsel %vm492, %v955, 0
    %1043 = vmatpush.xpose.msra.mxu0 0.0
    %1044 = vmatpush.xpose.msra.mxu0 0.0
    %1045 = vmatpush.xpose.msra.mxu0 0.0
    %1046 = vmatpush.xpose.msra.mxu0 0.0
    %1047 = vmatpush.xpose.msra.mxu0 0.0
    %1048 = vmatpush.xpose.msra.mxu0 0.0
    %1049 = vmatpush.xpose.msra.mxu0 0.0
    %1050 = vmatpush.xpose.msra.mxu0 0.0
    %1051 = vmatpush.xpose.msra.mxu0 0.0
    %1052 = vmatpush.xpose.msra.mxu0 0.0
    %1053 = vmatpush.xpose.msra.mxu0 0.0
    %1054 = vmatpush.xpose.msra.mxu0 0.0
    %1055 = vmatpush.xpose.msra.mxu0 %v1041
    %1056 = vmatpush.xpose.msra.mxu0 %v1038
    %1057 = vmatpush.xpose.msra.mxu0 %v1035
    %1058 = vmatpush.xpose.msra.mxu0 %v1032
    %1059 = vmatmul.f32.gmra.mxu0 %v1020
    %v1060 = vpop.f32.mrf.mxu0
    %v1061 = vadd.f32 0.0, %v1060
    %1062 = vmatmul.f32.gmra.mxu0 %v1023
    %v1063 = vpop.f32.mrf.mxu0
    %v1064 = vadd.f32 0.0, %v1063
    %1065 = vmatmul.f32.gmra.mxu0 %v1026
    %v1066 = vpop.f32.mrf.mxu0
    %v1067 = vadd.f32 0.0, %v1066
    %1068 = vmatmul.f32.gmra.mxu0 %v1029
    %v1069 = vpop.f32.mrf.mxu0
    %v1070 = vadd.f32 0.0, %v1069
    %1071 = vdwg.mxu0
    %v1072 = vsel %vm119, %v1061, -inf
    %1073 = vmax.xlane.f32.xlu0 %v1072
    %v1074 = vpop.xlane.xlu0 %1073
    %v1075 = vsel %vm119, %v1064, -inf
    %1076 = vmax.xlane.f32.xlu0 %v1075
    %v1077 = vpop.xlane.xlu0 %1076
    %v1078 = vsel %vm119, %v1067, -inf
    %1079 = vmax.xlane.f32.xlu0 %v1078
    %v1080 = vpop.xlane.xlu0 %1079
    %v1081 = vsel %vm119, %v1070, -inf
    %1082 = vmax.xlane.f32.xlu0 %v1081
    %v1083 = vpop.xlane.xlu0 %1082
    %v1084 = vsub.f32 %v1061, %v1074
    %v1085 = vsub.f32 %v1064, %v1077
    %v1086 = vsub.f32 %v1067, %v1080
    %v1087 = vsub.f32 %v1070, %v1083
    %v1088 = vmul.f32 %v1084, 1.442695
    %v1089 = vpow.pop %v1088
    %v1090 = vmul.f32 %v1085, 1.442695
    %v1091 = vpow.pop %v1090
    %v1092 = vmul.f32 %v1086, 1.442695
    %v1093 = vpow.pop %v1092
    %v1094 = vmul.f32 %v1087, 1.442695
    %v1095 = vpow.pop %v1094
    %v1096 = vsel %vm119, %v1089, 0.0
    %1097 = vadd.xlane.f32.xlu0 %v1096
    %v1098 = vpop.xlane.xlu0 %1097
    %v1099 = vsel %vm119, %v1091, 0.0
    %1100 = vadd.xlane.f32.xlu0 %v1099
    %v1101 = vpop.xlane.xlu0 %1100
    %v1102 = vsel %vm119, %v1093, 0.0
    %1103 = vadd.xlane.f32.xlu0 %v1102
    %v1104 = vpop.xlane.xlu0 %1103
    %v1105 = vsel %vm119, %v1095, 0.0
    %1106 = vadd.xlane.f32.xlu0 %v1105
    %v1107 = vpop.xlane.xlu0 %1106
    %v1108 = vrcp.pop %v1098
    %v1109 = vmul.f32 %v1098, %v1108
    %v1110 = vsub.f32 1.0, %v1109
    %v1111 = vmul.f32 %v1108, %v1110
    %v1112 = vadd.f32 %v1108, %v1111
    %vm1113 = vweird.f32 %v1098
    %vm1114 = vweird.f32 %v1108
    %vm1115 = vmor %vm1113, %vm1114
    %v1116 = vsel %vm1115, %v1108, %v1112
    %v1117 = vand.u32 2147483647, %v1098
    %vm1118 = vcmp.eq.f32.partialorder %v1117, 8.507059e+37
    %v1119 = vand.u32 %v1098, 2147483648
    %v1120 = vor.u32 1.1754944e-38, %v1119
    %v1121 = vsel %vm1118, %v1120, %v1116
    %v1122 = vmul.f32 %v1089, %v1121
    %v1123 = vrcp.pop %v1101
    %v1124 = vmul.f32 %v1101, %v1123
    %v1125 = vsub.f32 1.0, %v1124
    %v1126 = vmul.f32 %v1123, %v1125
    %v1127 = vadd.f32 %v1123, %v1126
    %vm1128 = vweird.f32 %v1101
    %vm1129 = vweird.f32 %v1123
    %vm1130 = vmor %vm1128, %vm1129
    %v1131 = vsel %vm1130, %v1123, %v1127
    %v1132 = vand.u32 2147483647, %v1101
    %vm1133 = vcmp.eq.f32.partialorder %v1132, 8.507059e+37
    %v1134 = vand.u32 %v1101, 2147483648
    %v1135 = vor.u32 1.1754944e-38, %v1134
    %v1136 = vsel %vm1133, %v1135, %v1131
    %v1137 = vmul.f32 %v1091, %v1136
    %v1138 = vrcp.pop %v1104
    %v1139 = vmul.f32 %v1104, %v1138
    %v1140 = vsub.f32 1.0, %v1139
    %v1141 = vmul.f32 %v1138, %v1140
    %v1142 = vadd.f32 %v1138, %v1141
    %vm1143 = vweird.f32 %v1104
    %vm1144 = vweird.f32 %v1138
    %vm1145 = vmor %vm1143, %vm1144
    %v1146 = vsel %vm1145, %v1138, %v1142
    %v1147 = vand.u32 2147483647, %v1104
    %vm1148 = vcmp.eq.f32.partialorder %v1147, 8.507059e+37
    %v1149 = vand.u32 %v1104, 2147483648
    %v1150 = vor.u32 1.1754944e-38, %v1149
    %v1151 = vsel %vm1148, %v1150, %v1146
    %v1152 = vmul.f32 %v1093, %v1151
    %v1153 = vrcp.pop %v1107
    %v1154 = vmul.f32 %v1107, %v1153
    %v1155 = vsub.f32 1.0, %v1154
    %v1156 = vmul.f32 %v1153, %v1155
    %v1157 = vadd.f32 %v1153, %v1156
    %vm1158 = vweird.f32 %v1107
    %vm1159 = vweird.f32 %v1153
    %vm1160 = vmor %vm1158, %vm1159
    %v1161 = vsel %vm1160, %v1153, %v1157
    %v1162 = vand.u32 2147483647, %v1107
    %vm1163 = vcmp.eq.f32.partialorder %v1162, 8.507059e+37
    %v1164 = vand.u32 %v1107, 2147483648
    %v1165 = vor.u32 1.1754944e-38, %v1164
    %v1166 = vsel %vm1163, %v1165, %v1161
    %v1167 = vmul.f32 %v1095, %v1166
    %v1169 = vsel %vm119, %v1122, 0
    %v1172 = vsel %vm119, %v1137, 0
    %v1175 = vsel %vm119, %v1152, 0
    %v1178 = vsel %vm119, %v1167, 0
    %1180 = vmatpush.msra.mxu0 0.0
    %1181 = vmatpush.msra.mxu0 0.0
    %1182 = vmatpush.msra.mxu0 0.0
    %1183 = vmatpush.msra.mxu0 0.0
    %1184 = vmatpush.msra.mxu0 0.0
    %1185 = vmatpush.msra.mxu0 0.0
    %1186 = vmatpush.msra.mxu0 0.0
    %1187 = vmatpush.msra.mxu0 0.0
    %1188 = vmatpush.msra.mxu0 0.0
    %1189 = vmatpush.msra.mxu0 0.0
    %1190 = vmatpush.msra.mxu0 0.0
    %1191 = vmatpush.msra.mxu0 0.0
    %1192 = vmatpush.msra.mxu0 %v1003
    %1193 = vmatpush.msra.mxu0 %v1000
    %1194 = vmatpush.msra.mxu0 %v997
    %1195 = vmatpush.msra.mxu0 %v994
    %1196 = vmatmul.f32.gmra.mxu0 %v1169
    %v1197 = vpop.f32.mrf.mxu0
    %v1198 = vadd.f32 0.0, %v1197
    %1199 = vmatmul.f32.gmra.mxu0 %v1172
    %v1200 = vpop.f32.mrf.mxu0
    %v1201 = vadd.f32 0.0, %v1200
    %1202 = vmatmul.f32.gmra.mxu0 %v1175
    %v1203 = vpop.f32.mrf.mxu0
    %v1204 = vadd.f32 0.0, %v1203
    %1205 = vmatmul.f32.gmra.mxu0 %v1178
    %v1206 = vpop.f32.mrf.mxu0
    %v1207 = vadd.f32 0.0, %v1206
    %1208 = vdwg.mxu0
    %v1210 = vsel %vm492, %v1198, 0
    %v1213 = vsel %vm492, %v1201, 0
    %v1216 = vsel %vm492, %v1204, 0
    %v1219 = vsel %vm492, %v1207, 0
    %1221 = vmatpush.msra.mxu0 0.0
    %1222 = vmatpush.msra.mxu0 0.0
    %1223 = vmatpush.msra.mxu0 0.0
    %1224 = vmatpush.msra.mxu0 0.0
    %1225 = vmatpush.msra.mxu0 0.0
    %1226 = vmatpush.msra.mxu0 0.0
    %1227 = vmatpush.msra.mxu0 0.0
    %1228 = vmatpush.msra.mxu0 0.0
    %1229 = vmatpush.msra.mxu0 0.0
    %1230 = vmatpush.msra.mxu0 0.0
    %1231 = vmatpush.msra.mxu0 0.0
    %1232 = vmatpush.msra.mxu0 0.0
    %1233 = vmatpush.msra.mxu0 0.0
    %1234 = vmatpush.msra.mxu0 0.0
    %1235 = vmatpush.msra.mxu0 %v1018
    %1236 = vmatpush.msra.mxu0 %v1017
    %1237 = vmatmul.f32.gmra.mxu0 %v1210
    %v1238 = vpop.f32.mrf.mxu0
    %v1239 = vadd.f32 0.0, %v1238
    %1240 = vmatmul.f32.gmra.mxu0 %v1213
    %v1241 = vpop.f32.mrf.mxu0
    %v1242 = vadd.f32 0.0, %v1241
    %1243 = vmatmul.f32.gmra.mxu0 %v1216
    %v1244 = vpop.f32.mrf.mxu0
    %v1245 = vadd.f32 0.0, %v1244
    %1246 = vmatmul.f32.gmra.mxu0 %v1219
    %v1247 = vpop.f32.mrf.mxu0
    %v1248 = vadd.f32 0.0, %v1247
    %1249 = vdwg.mxu0
    %v1251 = vsel %vm492, %v672, 0
    %v1254 = vsel %vm492, %v675, 0
    %v1257 = vsel %vm492, %v678, 0
    %v1260 = vsel %vm492, %v681, 0
    %1262 = vmatpush.msra.mxu0 0.0
    %1263 = vmatpush.msra.mxu0 0.0
    %1264 = vmatpush.msra.mxu0 0.0
    %1265 = vmatpush.msra.mxu0 0.0
    %1266 = vmatpush.msra.mxu0 0.0
    %1267 = vmatpush.msra.mxu0 0.0
    %1268 = vmatpush.msra.mxu0 0.0
    %1269 = vmatpush.msra.mxu0 0.0
    %1270 = vmatpush.msra.mxu0 0.0
    %1271 = vmatpush.msra.mxu0 0.0
    %1272 = vmatpush.msra.mxu0 0.0
    %1273 = vmatpush.msra.mxu0 0.0
    %1274 = vmatpush.msra.mxu0 0.0
    %1275 = vmatpush.msra.mxu0 0.0
    %1276 = vmatpush.msra.mxu0 %v491
    %1277 = vmatpush.msra.mxu0 %v490
    %1278 = vmatmul.f32.gmra.mxu0 %v1251
    %v1279 = vpop.f32.mrf.mxu0
    %v1280 = vadd.f32 %v1239, %v1279
    %1281 = vmatmul.f32.gmra.mxu0 %v1254
    %v1282 = vpop.f32.mrf.mxu0
    %v1283 = vadd.f32 %v1242, %v1282
    %1284 = vmatmul.f32.gmra.mxu0 %v1257
    %v1285 = vpop.f32.mrf.mxu0
    %v1286 = vadd.f32 %v1245, %v1285
    %1287 = vmatmul.f32.gmra.mxu0 %v1260
    %v1288 = vpop.f32.mrf.mxu0
    %v1289 = vadd.f32 %v1248, %v1288
    %1290 = vdwg.mxu0
    %v1292 = vsel %vm492, %v910, 0
    %v1295 = vsel %vm492, %v913, 0
    %v1298 = vsel %vm492, %v916, 0
    %v1301 = vsel %vm492, %v919, 0
    %v1304 = vsel %vm492, %v958, 0
    %v1307 = vsel %vm492, %v961, 0
    %v1310 = vsel %vm492, %v964, 0
    %v1313 = vsel %vm492, %v967, 0
    %1315 = vmatpush.xpose.msra.mxu0 0.0
    %1316 = vmatpush.xpose.msra.mxu0 0.0
    %1317 = vmatpush.xpose.msra.mxu0 0.0
    %1318 = vmatpush.xpose.msra.mxu0 0.0
    %1319 = vmatpush.xpose.msra.mxu0 0.0
    %1320 = vmatpush.xpose.msra.mxu0 0.0
    %1321 = vmatpush.xpose.msra.mxu0 0.0
    %1322 = vmatpush.xpose.msra.mxu0 0.0
    %1323 = vmatpush.xpose.msra.mxu0 0.0
    %1324 = vmatpush.xpose.msra.mxu0 0.0
    %1325 = vmatpush.xpose.msra.mxu0 0.0
    %1326 = vmatpush.xpose.msra.mxu0 0.0
    %1327 = vmatpush.xpose.msra.mxu0 %v1313
    %1328 = vmatpush.xpose.msra.mxu0 %v1310
    %1329 = vmatpush.xpose.msra.mxu0 %v1307
    %1330 = vmatpush.xpose.msra.mxu0 %v1304
    %1331 = vmatmul.f32.gmra.mxu0 %v1292
    %v1332 = vpop.f32.mrf.mxu0
    %v1333 = vadd.f32 0.0, %v1332
    %1334 = vmatmul.f32.gmra.mxu0 %v1295
    %v1335 = vpop.f32.mrf.mxu0
    %v1336 = vadd.f32 0.0, %v1335
    %1337 = vmatmul.f32.gmra.mxu0 %v1298
    %v1338 = vpop.f32.mrf.mxu0
    %v1339 = vadd.f32 0.0, %v1338
    %1340 = vmatmul.f32.gmra.mxu0 %v1301
    %v1341 = vpop.f32.mrf.mxu0
    %v1342 = vadd.f32 0.0, %v1341
    %1343 = vdwg.mxu0
    %v1344 = vsel %vm119, %v1333, -inf
    %1345 = vmax.xlane.f32.xlu0 %v1344
    %v1346 = vpop.xlane.xlu0 %1345
    %v1347 = vsel %vm119, %v1336, -inf
    %1348 = vmax.xlane.f32.xlu0 %v1347
    %v1349 = vpop.xlane.xlu0 %1348
    %v1350 = vsel %vm119, %v1339, -inf
    %1351 = vmax.xlane.f32.xlu0 %v1350
    %v1352 = vpop.xlane.xlu0 %1351
    %v1353 = vsel %vm119, %v1342, -inf
    %1354 = vmax.xlane.f32.xlu0 %v1353
    %v1355 = vpop.xlane.xlu0 %1354
    %v1356 = vsub.f32 %v1333, %v1346
    %v1357 = vsub.f32 %v1336, %v1349
    %v1358 = vsub.f32 %v1339, %v1352
    %v1359 = vsub.f32 %v1342, %v1355
    %v1360 = vmul.f32 %v1356, 1.442695
    %v1361 = vpow.pop %v1360
    %v1362 = vmul.f32 %v1357, 1.442695
    %v1363 = vpow.pop %v1362
    %v1364 = vmul.f32 %v1358, 1.442695
    %v1365 = vpow.pop %v1364
    %v1366 = vmul.f32 %v1359, 1.442695
    %v1367 = vpow.pop %v1366
    %v1368 = vsel %vm119, %v1361, 0.0
    %1369 = vadd.xlane.f32.xlu0 %v1368
    %v1370 = vpop.xlane.xlu0 %1369
    %v1371 = vsel %vm119, %v1363, 0.0
    %1372 = vadd.xlane.f32.xlu0 %v1371
    %v1373 = vpop.xlane.xlu0 %1372
    %v1374 = vsel %vm119, %v1365, 0.0
    %1375 = vadd.xlane.f32.xlu0 %v1374
    %v1376 = vpop.xlane.xlu0 %1375
    %v1377 = vsel %vm119, %v1367, 0.0
    %1378 = vadd.xlane.f32.xlu0 %v1377
    %v1379 = vpop.xlane.xlu0 %1378
    %v1380 = vrcp.pop %v1370
    %v1381 = vmul.f32 %v1370, %v1380
    %v1382 = vsub.f32 1.0, %v1381
    %v1383 = vmul.f32 %v1380, %v1382
    %v1384 = vadd.f32 %v1380, %v1383
    %vm1385 = vweird.f32 %v1370
    %vm1386 = vweird.f32 %v1380
    %vm1387 = vmor %vm1385, %vm1386
    %v1388 = vsel %vm1387, %v1380, %v1384
    %v1389 = vand.u32 2147483647, %v1370
    %vm1390 = vcmp.eq.f32.partialorder %v1389, 8.507059e+37
    %v1391 = vand.u32 %v1370, 2147483648
    %v1392 = vor.u32 1.1754944e-38, %v1391
    %v1393 = vsel %vm1390, %v1392, %v1388
    %v1394 = vmul.f32 %v1361, %v1393
    %v1395 = vrcp.pop %v1373
    %v1396 = vmul.f32 %v1373, %v1395
    %v1397 = vsub.f32 1.0, %v1396
    %v1398 = vmul.f32 %v1395, %v1397
    %v1399 = vadd.f32 %v1395, %v1398
    %vm1400 = vweird.f32 %v1373
    %vm1401 = vweird.f32 %v1395
    %vm1402 = vmor %vm1400, %vm1401
    %v1403 = vsel %vm1402, %v1395, %v1399
    %v1404 = vand.u32 2147483647, %v1373
    %vm1405 = vcmp.eq.f32.partialorder %v1404, 8.507059e+37
    %v1406 = vand.u32 %v1373, 2147483648
    %v1407 = vor.u32 1.1754944e-38, %v1406
    %v1408 = vsel %vm1405, %v1407, %v1403
    %v1409 = vmul.f32 %v1363, %v1408
    %v1410 = vrcp.pop %v1376
    %v1411 = vmul.f32 %v1376, %v1410
    %v1412 = vsub.f32 1.0, %v1411
    %v1413 = vmul.f32 %v1410, %v1412
    %v1414 = vadd.f32 %v1410, %v1413
    %vm1415 = vweird.f32 %v1376
    %vm1416 = vweird.f32 %v1410
    %vm1417 = vmor %vm1415, %vm1416
    %v1418 = vsel %vm1417, %v1410, %v1414
    %v1419 = vand.u32 2147483647, %v1376
    %vm1420 = vcmp.eq.f32.partialorder %v1419, 8.507059e+37
    %v1421 = vand.u32 %v1376, 2147483648
    %v1422 = vor.u32 1.1754944e-38, %v1421
    %v1423 = vsel %vm1420, %v1422, %v1418
    %v1424 = vmul.f32 %v1365, %v1423
    %v1425 = vrcp.pop %v1379
    %v1426 = vmul.f32 %v1379, %v1425
    %v1427 = vsub.f32 1.0, %v1426
    %v1428 = vmul.f32 %v1425, %v1427
    %v1429 = vadd.f32 %v1425, %v1428
    %vm1430 = vweird.f32 %v1379
    %vm1431 = vweird.f32 %v1425
    %vm1432 = vmor %vm1430, %vm1431
    %v1433 = vsel %vm1432, %v1425, %v1429
    %v1434 = vand.u32 2147483647, %v1379
    %vm1435 = vcmp.eq.f32.partialorder %v1434, 8.507059e+37
    %v1436 = vand.u32 %v1379, 2147483648
    %v1437 = vor.u32 1.1754944e-38, %v1436
    %v1438 = vsel %vm1435, %v1437, %v1433
    %v1439 = vmul.f32 %v1367, %v1438
    %v1441 = vsel %vm119, %v1394, 0
    %v1444 = vsel %vm119, %v1409, 0
    %v1447 = vsel %vm119, %v1424, 0
    %v1450 = vsel %vm119, %v1439, 0
    %1452 = vmatpush.msra.mxu0 0.0
    %1453 = vmatpush.msra.mxu0 0.0
    %1454 = vmatpush.msra.mxu0 0.0
    %1455 = vmatpush.msra.mxu0 0.0
    %1456 = vmatpush.msra.mxu0 0.0
    %1457 = vmatpush.msra.mxu0 0.0
    %1458 = vmatpush.msra.mxu0 0.0
    %1459 = vmatpush.msra.mxu0 0.0
    %1460 = vmatpush.msra.mxu0 0.0
    %1461 = vmatpush.msra.mxu0 0.0
    %1462 = vmatpush.msra.mxu0 0.0
    %1463 = vmatpush.msra.mxu0 0.0
    %1464 = vmatpush.msra.mxu0 %v1015
    %1465 = vmatpush.msra.mxu0 %v1012
    %1466 = vmatpush.msra.mxu0 %v1009
    %1467 = vmatpush.msra.mxu0 %v1006
    %1468 = vmatmul.f32.gmra.mxu0 %v1441
    %v1469 = vpop.f32.mrf.mxu0
    %v1470 = vadd.f32 0.0, %v1469
    %1471 = vmatmul.f32.gmra.mxu0 %v1444
    %v1472 = vpop.f32.mrf.mxu0
    %v1473 = vadd.f32 0.0, %v1472
    %1474 = vmatmul.f32.gmra.mxu0 %v1447
    %v1475 = vpop.f32.mrf.mxu0
    %v1476 = vadd.f32 0.0, %v1475
    %1477 = vmatmul.f32.gmra.mxu0 %v1450
    %v1478 = vpop.f32.mrf.mxu0
    %v1479 = vadd.f32 0.0, %v1478
    %1480 = vdwg.mxu0
    %v1482 = vsel %vm492, %v1470, 0
    %v1485 = vsel %vm492, %v1473, 0
    %v1488 = vsel %vm492, %v1476, 0
    %v1491 = vsel %vm492, %v1479, 0
    %1493 = vmatpush.msra.mxu0 0.0
    %1494 = vmatpush.msra.mxu0 0.0
    %1495 = vmatpush.msra.mxu0 0.0
    %1496 = vmatpush.msra.mxu0 0.0
    %1497 = vmatpush.msra.mxu0 0.0
    %1498 = vmatpush.msra.mxu0 0.0
    %1499 = vmatpush.msra.mxu0 0.0
    %1500 = vmatpush.msra.mxu0 0.0
    %1501 = vmatpush.msra.mxu0 0.0
    %1502 = vmatpush.msra.mxu0 0.0
    %1503 = vmatpush.msra.mxu0 0.0
    %1504 = vmatpush.msra.mxu0 0.0
    %1505 = vmatpush.msra.mxu0 0.0
    %1506 = vmatpush.msra.mxu0 0.0
    %1507 = vmatpush.msra.mxu0 %v1018
    %1508 = vmatpush.msra.mxu0 %v1017
    %1509 = vmatmul.f32.gmra.mxu0 %v1482
    %v1510 = vpop.f32.mrf.mxu0
    %v1511 = vadd.f32 0.0, %v1510
    %1512 = vmatmul.f32.gmra.mxu0 %v1485
    %v1513 = vpop.f32.mrf.mxu0
    %v1514 = vadd.f32 0.0, %v1513
    %1515 = vmatmul.f32.gmra.mxu0 %v1488
    %v1516 = vpop.f32.mrf.mxu0
    %v1517 = vadd.f32 0.0, %v1516
    %1518 = vmatmul.f32.gmra.mxu0 %v1491
    %v1519 = vpop.f32.mrf.mxu0
    %v1520 = vadd.f32 0.0, %v1519
    %1521 = vdwg.mxu0
    %v1523 = vsel %vm492, %v862, 0
    %v1526 = vsel %vm492, %v865, 0
    %v1529 = vsel %vm492, %v868, 0
    %v1532 = vsel %vm492, %v871, 0
    %1534 = vmatpush.msra.mxu0 0.0
    %1535 = vmatpush.msra.mxu0 0.0
    %1536 = vmatpush.msra.mxu0 0.0
    %1537 = vmatpush.msra.mxu0 0.0
    %1538 = vmatpush.msra.mxu0 0.0
    %1539 = vmatpush.msra.mxu0 0.0
    %1540 = vmatpush.msra.mxu0 0.0
    %1541 = vmatpush.msra.mxu0 0.0
    %1542 = vmatpush.msra.mxu0 0.0
    %1543 = vmatpush.msra.mxu0 0.0
    %1544 = vmatpush.msra.mxu0 0.0
    %1545 = vmatpush.msra.mxu0 0.0
    %1546 = vmatpush.msra.mxu0 0.0
    %1547 = vmatpush.msra.mxu0 0.0
    %1548 = vmatpush.msra.mxu0 %v491
    %1549 = vmatpush.msra.mxu0 %v490
    %1550 = vmatmul.f32.gmra.mxu0 %v1523
    %v1551 = vpop.f32.mrf.mxu0
    %v1552 = vadd.f32 %v1511, %v1551
    %1553 = vmatmul.f32.gmra.mxu0 %v1526
    %v1554 = vpop.f32.mrf.mxu0
    %v1555 = vadd.f32 %v1514, %v1554
    %1556 = vmatmul.f32.gmra.mxu0 %v1529
    %v1557 = vpop.f32.mrf.mxu0
    %v1558 = vadd.f32 %v1517, %v1557
    %1559 = vmatmul.f32.gmra.mxu0 %v1532
    %v1560 = vpop.f32.mrf.mxu0
    %v1561 = vadd.f32 %v1520, %v1560
    %1562 = vdwg.mxu0
    %v1563 = vadd.f32 %v111, %v1280
    %v1564 = vadd.f32 %v112, %v1283
    %v1565 = vadd.f32 %v113, %v1286
    %v1566 = vadd.f32 %v114, %v1289
    %v1567 = vadd.f32 %v115, %v1552
    %v1568 = vadd.f32 %v116, %v1555
    %v1569 = vadd.f32 %v117, %v1558
    %v1570 = vadd.f32 %v118, %v1561
    %v1571 = vld [vmem:[%s4 + $0x8] sm:$0x1]
    %v1572 = vperm.slane %v1571, 0
    %v1573 = vadd.f32 %v1563, %v1572
    %v1574 = vadd.f32 %v1564, %v1572
    %v1575 = vadd.f32 %v1565, %v1572
    %v1576 = vadd.f32 %v1566, %v1572
    %v1577 = vadd.f32 %v1567, %v1572
    %v1578 = vadd.f32 %v1568, %v1572
    %v1579 = vadd.f32 %v1569, %v1572
    %v1580 = vadd.f32 %v1570, %v1572
    %v1581 = vsel %vm119, %v1573, 0.0
    %1582 = vadd.xlane.f32.xlu0 %v1581
    %v1583 = vpop.xlane.xlu0 %1582
    %v1584 = vsel %vm119, %v1574, 0.0
    %1585 = vadd.xlane.f32.xlu0 %v1584
    %v1586 = vpop.xlane.xlu0 %1585
    %v1587 = vsel %vm119, %v1575, 0.0
    %1588 = vadd.xlane.f32.xlu0 %v1587
    %v1589 = vpop.xlane.xlu0 %1588
    %v1590 = vsel %vm119, %v1576, 0.0
    %1591 = vadd.xlane.f32.xlu0 %v1590
    %v1592 = vpop.xlane.xlu0 %1591
    %v1593 = vsel %vm119, %v1577, 0.0
    %1594 = vadd.xlane.f32.xlu0 %v1593
    %v1595 = vpop.xlane.xlu0 %1594
    %v1596 = vsel %vm119, %v1578, 0.0
    %1597 = vadd.xlane.f32.xlu0 %v1596
    %v1598 = vpop.xlane.xlu0 %1597
    %v1599 = vsel %vm119, %v1579, 0.0
    %1600 = vadd.xlane.f32.xlu0 %v1599
    %v1601 = vpop.xlane.xlu0 %1600
    %v1602 = vsel %vm119, %v1580, 0.0
    %1603 = vadd.xlane.f32.xlu0 %v1602
    %v1604 = vpop.xlane.xlu0 %1603
    %v1605 = vmul.f32 %v1583, %v150
    %v1606 = vmul.f32 %v1586, %v150
    %v1607 = vmul.f32 %v1589, %v150
    %v1608 = vmul.f32 %v1592, %v150
    %v1609 = vmul.f32 %v1595, %v150
    %v1610 = vmul.f32 %v1598, %v150
    %v1611 = vmul.f32 %v1601, %v150
    %v1612 = vmul.f32 %v1604, %v150
    %v1613 = vsub.f32 %v1573, %v1605
    %v1614 = vsub.f32 %v1574, %v1606
    %v1615 = vsub.f32 %v1575, %v1607
    %v1616 = vsub.f32 %v1576, %v1608
    %v1617 = vsub.f32 %v1577, %v1609
    %v1618 = vsub.f32 %v1578, %v1610
    %v1619 = vsub.f32 %v1579, %v1611
    %v1620 = vsub.f32 %v1580, %v1612
    %v1621 = vmul.f32 %v1613, %v1613
    %v1622 = vmul.f32 %v1614, %v1614
    %v1623 = vmul.f32 %v1615, %v1615
    %v1624 = vmul.f32 %v1616, %v1616
    %v1625 = vmul.f32 %v1617, %v1617
    %v1626 = vmul.f32 %v1618, %v1618
    %v1627 = vmul.f32 %v1619, %v1619
    %v1628 = vmul.f32 %v1620, %v1620
    %v1629 = vsel %vm119, %v1621, 0.0
    %1630 = vadd.xlane.f32.xlu0 %v1629
    %v1631 = vpop.xlane.xlu0 %1630
    %v1632 = vsel %vm119, %v1622, 0.0
    %1633 = vadd.xlane.f32.xlu0 %v1632
    %v1634 = vpop.xlane.xlu0 %1633
    %v1635 = vsel %vm119, %v1623, 0.0
    %1636 = vadd.xlane.f32.xlu0 %v1635
    %v1637 = vpop.xlane.xlu0 %1636
    %v1638 = vsel %vm119, %v1624, 0.0
    %1639 = vadd.xlane.f32.xlu0 %v1638
    %v1640 = vpop.xlane.xlu0 %1639
    %v1641 = vsel %vm119, %v1625, 0.0
    %1642 = vadd.xlane.f32.xlu0 %v1641
    %v1643 = vpop.xlane.xlu0 %1642
    %v1644 = vsel %vm119, %v1626, 0.0
    %1645 = vadd.xlane.f32.xlu0 %v1644
    %v1646 = vpop.xlane.xlu0 %1645
    %v1647 = vsel %vm119, %v1627, 0.0
    %1648 = vadd.xlane.f32.xlu0 %v1647
    %v1649 = vpop.xlane.xlu0 %1648
    %v1650 = vsel %vm119, %v1628, 0.0
    %1651 = vadd.xlane.f32.xlu0 %v1650
    %v1652 = vpop.xlane.xlu0 %1651
    %v1653 = vmul.f32 %v1631, %v150
    %v1654 = vmul.f32 %v1634, %v150
    %v1655 = vmul.f32 %v1637, %v150
    %v1656 = vmul.f32 %v1640, %v150
    %v1657 = vmul.f32 %v1643, %v150
    %v1658 = vmul.f32 %v1646, %v150
    %v1659 = vmul.f32 %v1649, %v150
    %v1660 = vmul.f32 %v1652, %v150
    %v1661 = vadd.f32 %v1653, 1e-05
    %v1662 = vadd.f32 %v1654, 1e-05
    %v1663 = vadd.f32 %v1655, 1e-05
    %v1664 = vadd.f32 %v1656, 1e-05
    %v1665 = vadd.f32 %v1657, 1e-05
    %v1666 = vadd.f32 %v1658, 1e-05
    %v1667 = vadd.f32 %v1659, 1e-05
    %v1668 = vadd.f32 %v1660, 1e-05
    %v1669 = vrsqrt.pop %v1661
    %v1670 = vmul.f32 %v1669, %v1661
    %v1671 = vmul.f32 %v1670, %v1669
    %v1672 = vmul.f32 0.5, %v1671
    %v1673 = vsub.f32 1.5, %v1672
    %v1674 = vmul.f32 %v1669, %v1673
    %vm1675 = vweird.f32 %v1661
    %vm1676 = vweird.f32 %v1669
    %vm1677 = vmor %vm1675, %vm1676
    %v1678 = vsel %vm1677, %v1669, %v1674
    %v1679 = vrsqrt.pop %v1662
    %v1680 = vmul.f32 %v1679, %v1662
    %v1681 = vmul.f32 %v1680, %v1679
    %v1682 = vmul.f32 0.5, %v1681
    %v1683 = vsub.f32 1.5, %v1682
    %v1684 = vmul.f32 %v1679, %v1683
    %vm1685 = vweird.f32 %v1662
    %vm1686 = vweird.f32 %v1679
    %vm1687 = vmor %vm1685, %vm1686
    %v1688 = vsel %vm1687, %v1679, %v1684
    %v1689 = vrsqrt.pop %v1663
    %v1690 = vmul.f32 %v1689, %v1663
    %v1691 = vmul.f32 %v1690, %v1689
    %v1692 = vmul.f32 0.5, %v1691
    %v1693 = vsub.f32 1.5, %v1692
    %v1694 = vmul.f32 %v1689, %v1693
    %vm1695 = vweird.f32 %v1663
    %vm1696 = vweird.f32 %v1689
    %vm1697 = vmor %vm1695, %vm1696
    %v1698 = vsel %vm1697, %v1689, %v1694
    %v1699 = vrsqrt.pop %v1664
    %v1700 = vmul.f32 %v1699, %v1664
    %v1701 = vmul.f32 %v1700, %v1699
    %v1702 = vmul.f32 0.5, %v1701
    %v1703 = vsub.f32 1.5, %v1702
    %v1704 = vmul.f32 %v1699, %v1703
    %vm1705 = vweird.f32 %v1664
    %vm1706 = vweird.f32 %v1699
    %vm1707 = vmor %vm1705, %vm1706
    %v1708 = vsel %vm1707, %v1699, %v1704
    %v1709 = vrsqrt.pop %v1665
    %v1710 = vmul.f32 %v1709, %v1665
    %v1711 = vmul.f32 %v1710, %v1709
    %v1712 = vmul.f32 0.5, %v1711
    %v1713 = vsub.f32 1.5, %v1712
    %v1714 = vmul.f32 %v1709, %v1713
    %vm1715 = vweird.f32 %v1665
    %vm1716 = vweird.f32 %v1709
    %vm1717 = vmor %vm1715, %vm1716
    %v1718 = vsel %vm1717, %v1709, %v1714
    %v1719 = vrsqrt.pop %v1666
    %v1720 = vmul.f32 %v1719, %v1666
    %v1721 = vmul.f32 %v1720, %v1719
    %v1722 = vmul.f32 0.5, %v1721
    %v1723 = vsub.f32 1.5, %v1722
    %v1724 = vmul.f32 %v1719, %v1723
    %vm1725 = vweird.f32 %v1666
    %vm1726 = vweird.f32 %v1719
    %vm1727 = vmor %vm1725, %vm1726
    %v1728 = vsel %vm1727, %v1719, %v1724
    %v1729 = vrsqrt.pop %v1667
    %v1730 = vmul.f32 %v1729, %v1667
    %v1731 = vmul.f32 %v1730, %v1729
    %v1732 = vmul.f32 0.5, %v1731
    %v1733 = vsub.f32 1.5, %v1732
    %v1734 = vmul.f32 %v1729, %v1733
    %vm1735 = vweird.f32 %v1667
    %vm1736 = vweird.f32 %v1729
    %vm1737 = vmor %vm1735, %vm1736
    %v1738 = vsel %vm1737, %v1729, %v1734
    %v1739 = vrsqrt.pop %v1668
    %v1740 = vmul.f32 %v1739, %v1668
    %v1741 = vmul.f32 %v1740, %v1739
    %v1742 = vmul.f32 0.5, %v1741
    %v1743 = vsub.f32 1.5, %v1742
    %v1744 = vmul.f32 %v1739, %v1743
    %vm1745 = vweird.f32 %v1668
    %vm1746 = vweird.f32 %v1739
    %vm1747 = vmor %vm1745, %vm1746
    %v1748 = vsel %vm1747, %v1739, %v1744
    %v1749 = vmul.f32 %v1613, %v1678
    %v1750 = vmul.f32 %v1614, %v1688
    %v1751 = vmul.f32 %v1615, %v1698
    %v1752 = vmul.f32 %v1616, %v1708
    %v1753 = vmul.f32 %v1617, %v1718
    %v1754 = vmul.f32 %v1618, %v1728
    %v1755 = vmul.f32 %v1619, %v1738
    %v1756 = vmul.f32 %v1620, %v1748
    %v1757 = vld [vmem:[%s4 + $0x6] sm:$0x1]
    %v1758 = vperm.slane %v1757, 0
    %v1759 = vmul.f32 %v1749, %v1758
    %v1760 = vmul.f32 %v1750, %v1758
    %v1761 = vmul.f32 %v1751, %v1758
    %v1762 = vmul.f32 %v1752, %v1758
    %v1763 = vmul.f32 %v1753, %v1758
    %v1764 = vmul.f32 %v1754, %v1758
    %v1765 = vmul.f32 %v1755, %v1758
    %v1766 = vmul.f32 %v1756, %v1758
    %v1767 = vld [vmem:[%s4 + $0x7] sm:$0x1]
    %v1768 = vperm.slane %v1767, 0
    %v1769 = vadd.f32 %v1759, %v1768
    %v1770 = vadd.f32 %v1760, %v1768
    %v1771 = vadd.f32 %v1761, %v1768
    %v1772 = vadd.f32 %v1762, %v1768
    %v1773 = vadd.f32 %v1763, %v1768
    %v1774 = vadd.f32 %v1764, %v1768
    %v1775 = vadd.f32 %v1765, %v1768
    %v1776 = vadd.f32 %v1766, %v1768
    %v1777 = vld [vmem:[%s3] sm:$0xff]
    %v1778 = vld [vmem:[%s3 + $0x8] sm:$0xff]
    %v1779 = vld [vmem:[%s3 + $0x10] sm:$0xff]
    %v1780 = vld [vmem:[%s3 + $0x18] sm:$0xff]
    %v1781 = vld [vmem:[%s4 + $0x9] sm:$0x1]
    %v1782 = vperm.slane %v1781, 0
    %v1784 = vsel %vm119, %v1769, 0
    %v1787 = vsel %vm119, %v1770, 0
    %v1790 = vsel %vm119, %v1771, 0
    %v1793 = vsel %vm119, %v1772, 0
    %v1796 = vsel %vm119, %v1773, 0
    %v1799 = vsel %vm119, %v1774, 0
    %v1802 = vsel %vm119, %v1775, 0
    %v1805 = vsel %vm119, %v1776, 0
    %1807 = vmatpush.msra.mxu0 0.0
    %1808 = vmatpush.msra.mxu0 0.0
    %1809 = vmatpush.msra.mxu0 0.0
    %1810 = vmatpush.msra.mxu0 0.0
    %1811 = vmatpush.msra.mxu0 0.0
    %1812 = vmatpush.msra.mxu0 0.0
    %1813 = vmatpush.msra.mxu0 0.0
    %1814 = vmatpush.msra.mxu0 0.0
    %1815 = vmatpush.msra.mxu0 0.0
    %1816 = vmatpush.msra.mxu0 0.0
    %1817 = vmatpush.msra.mxu0 0.0
    %1818 = vmatpush.msra.mxu0 0.0
    %1819 = vmatpush.msra.mxu0 %v1780
    %1820 = vmatpush.msra.mxu0 %v1779
    %1821 = vmatpush.msra.mxu0 %v1778
    %1822 = vmatpush.msra.mxu0 %v1777
    %1823 = vmatmul.f32.gmra.mxu0 %v1784
    %v1824 = vpop.f32.mrf.mxu0
    %v1825 = vadd.f32 %v1782, %v1824
    %1826 = vmatmul.f32.gmra.mxu0 %v1787
    %v1827 = vpop.f32.mrf.mxu0
    %v1828 = vadd.f32 %v1782, %v1827
    %1829 = vmatmul.f32.gmra.mxu0 %v1790
    %v1830 = vpop.f32.mrf.mxu0
    %v1831 = vadd.f32 %v1782, %v1830
    %1832 = vmatmul.f32.gmra.mxu0 %v1793
    %v1833 = vpop.f32.mrf.mxu0
    %v1834 = vadd.f32 %v1782, %v1833
    %1835 = vmatmul.f32.gmra.mxu0 %v1796
    %v1836 = vpop.f32.mrf.mxu0
    %v1837 = vadd.f32 %v1782, %v1836
    %1838 = vmatmul.f32.gmra.mxu0 %v1799
    %v1839 = vpop.f32.mrf.mxu0
    %v1840 = vadd.f32 %v1782, %v1839
    %1841 = vmatmul.f32.gmra.mxu0 %v1802
    %v1842 = vpop.f32.mrf.mxu0
    %v1843 = vadd.f32 %v1782, %v1842
    %1844 = vmatmul.f32.gmra.mxu0 %v1805
    %v1845 = vpop.f32.mrf.mxu0
    %v1846 = vadd.f32 %v1782, %v1845
    %1847 = vdwg.mxu0
    %v1848 = vmul.f32 %v1825, %v1825
    %v1849 = vmul.f32 %v1828, %v1828
    %v1850 = vmul.f32 %v1831, %v1831
    %v1851 = vmul.f32 %v1834, %v1834
    %v1852 = vmul.f32 %v1837, %v1837
    %v1853 = vmul.f32 %v1840, %v1840
    %v1854 = vmul.f32 %v1843, %v1843
    %v1855 = vmul.f32 %v1846, %v1846
    %v1856 = vmul.f32 %v1825, %v1848
    %v1857 = vmul.f32 %v1828, %v1849
    %v1858 = vmul.f32 %v1831, %v1850
    %v1859 = vmul.f32 %v1834, %v1851
    %v1860 = vmul.f32 %v1837, %v1852
    %v1861 = vmul.f32 %v1840, %v1853
    %v1862 = vmul.f32 %v1843, %v1854
    %v1863 = vmul.f32 %v1846, %v1855
    %v1864 = vmul.f32 %v1856, 0.044715
    %v1865 = vmul.f32 %v1857, 0.044715
    %v1866 = vmul.f32 %v1858, 0.044715
    %v1867 = vmul.f32 %v1859, 0.044715
    %v1868 = vmul.f32 %v1860, 0.044715
    %v1869 = vmul.f32 %v1861, 0.044715
    %v1870 = vmul.f32 %v1862, 0.044715
    %v1871 = vmul.f32 %v1863, 0.044715
    %v1872 = vadd.f32 %v1825, %v1864
    %v1873 = vadd.f32 %v1828, %v1865
    %v1874 = vadd.f32 %v1831, %v1866
    %v1875 = vadd.f32 %v1834, %v1867
    %v1876 = vadd.f32 %v1837, %v1868
    %v1877 = vadd.f32 %v1840, %v1869
    %v1878 = vadd.f32 %v1843, %v1870
    %v1879 = vadd.f32 %v1846, %v1871
    %v1880 = vmul.f32 %v1872, 0.7978846
    %v1881 = vmul.f32 %v1873, 0.7978846
    %v1882 = vmul.f32 %v1874, 0.7978846
    %v1883 = vmul.f32 %v1875, 0.7978846
    %v1884 = vmul.f32 %v1876, 0.7978846
    %v1885 = vmul.f32 %v1877, 0.7978846
    %v1886 = vmul.f32 %v1878, 0.7978846
    %v1887 = vmul.f32 %v1879, 0.7978846
    %v1888 = vtanh.pop %v1880
    %v1889 = vtanh.pop %v1881
    %v1890 = vtanh.pop %v1882
    %v1891 = vtanh.pop %v1883
    %v1892 = vtanh.pop %v1884
    %v1893 = vtanh.pop %v1885
    %v1894 = vtanh.pop %v1886
    %v1895 = vtanh.pop %v1887
    %v1896 = vadd.f32 %v1888, 1.0
    %v1897 = vadd.f32 %v1889, 1.0
    %v1898 = vadd.f32 %v1890, 1.0
    %v1899 = vadd.f32 %v1891, 1.0
    %v1900 = vadd.f32 %v1892, 1.0
    %v1901 = vadd.f32 %v1893, 1.0
    %v1902 = vadd.f32 %v1894, 1.0
    %v1903 = vadd.f32 %v1895, 1.0
    %v1904 = vmul.f32 %v1896, 0.5
    %v1905 = vmul.f32 %v1897, 0.5
    %v1906 = vmul.f32 %v1898, 0.5
    %v1907 = vmul.f32 %v1899, 0.5
    %v1908 = vmul.f32 %v1900, 0.5
    %v1909 = vmul.f32 %v1901, 0.5
    %v1910 = vmul.f32 %v1902, 0.5
    %v1911 = vmul.f32 %v1903, 0.5
    %v1912 = vmul.f32 %v1825, %v1904
    %v1913 = vmul.f32 %v1828, %v1905
    %v1914 = vmul.f32 %v1831, %v1906
    %v1915 = vmul.f32 %v1834, %v1907
    %v1916 = vmul.f32 %v1837, %v1908
    %v1917 = vmul.f32 %v1840, %v1909
    %v1918 = vmul.f32 %v1843, %v1910
    %v1919 = vmul.f32 %v1846, %v1911
    %v1920 = vld [vmem:[%s2 + $0x40] sm:$0xff]
    %v1921 = vld [vmem:[%s2 + $0x48] sm:$0xff]
    %v1922 = vld [vmem:[%s2 + $0x50] sm:$0xff]
    %v1923 = vld [vmem:[%s2 + $0x58] sm:$0xff]
    %v1924 = vld [vmem:[%s2 + $0x60] sm:$0xff]
    %v1925 = vld [vmem:[%s2 + $0x68] sm:$0xff]
    %v1926 = vld [vmem:[%s2 + $0x70] sm:$0xff]
    %v1927 = vld [vmem:[%s2 + $0x78] sm:$0xff]
    %v1929 = vsel %vm45, %v1912, 0
    %v1932 = vsel %vm45, %v1913, 0
    %v1935 = vsel %vm45, %v1914, 0
    %v1938 = vsel %vm45, %v1915, 0
    %v1941 = vsel %vm45, %v1916, 0
    %v1944 = vsel %vm45, %v1917, 0
    %v1947 = vsel %vm45, %v1918, 0
    %v1950 = vsel %vm45, %v1919, 0
    %1952 = vmatpush.msra.mxu0 0.0
    %1953 = vmatpush.msra.mxu0 0.0
    %1954 = vmatpush.msra.mxu0 0.0
    %1955 = vmatpush.msra.mxu0 0.0
    %1956 = vmatpush.msra.mxu0 0.0
    %1957 = vmatpush.msra.mxu0 0.0
    %1958 = vmatpush.msra.mxu0 0.0
    %1959 = vmatpush.msra.mxu0 0.0
    %1960 = vmatpush.msra.mxu0 %v1927
    %1961 = vmatpush.msra.mxu0 %v1926
    %1962 = vmatpush.msra.mxu0 %v1925
    %1963 = vmatpush.msra.mxu0 %v1924
    %1964 = vmatpush.msra.mxu0 %v1923
    %1965 = vmatpush.msra.mxu0 %v1922
    %1966 = vmatpush.msra.mxu0 %v1921
    %1967 = vmatpush.msra.mxu0 %v1920
    %1968 = vmatmul.f32.gmra.mxu0 %v1929
    %v1969 = vpop.f32.mrf.mxu0
    %v1970 = vadd.f32 0.0, %v1969
    %1971 = vmatmul.f32.gmra.mxu0 %v1932
    %v1972 = vpop.f32.mrf.mxu0
    %v1973 = vadd.f32 0.0, %v1972
    %1974 = vmatmul.f32.gmra.mxu0 %v1935
    %v1975 = vpop.f32.mrf.mxu0
    %v1976 = vadd.f32 0.0, %v1975
    %1977 = vmatmul.f32.gmra.mxu0 %v1938
    %v1978 = vpop.f32.mrf.mxu0
    %v1979 = vadd.f32 0.0, %v1978
    %1980 = vmatmul.f32.gmra.mxu0 %v1941
    %v1981 = vpop.f32.mrf.mxu0
    %v1982 = vadd.f32 0.0, %v1981
    %1983 = vmatmul.f32.gmra.mxu0 %v1944
    %v1984 = vpop.f32.mrf.mxu0
    %v1985 = vadd.f32 0.0, %v1984
    %1986 = vmatmul.f32.gmra.mxu0 %v1947
    %v1987 = vpop.f32.mrf.mxu0
    %v1988 = vadd.f32 0.0, %v1987
    %1989 = vmatmul.f32.gmra.mxu0 %v1950
    %v1990 = vpop.f32.mrf.mxu0
    %v1991 = vadd.f32 0.0, %v1990
    %1992 = vdwg.mxu0
    %v1993 = vadd.f32 %v1573, %v1970
    %v1994 = vadd.f32 %v1574, %v1973
    %v1995 = vadd.f32 %v1575, %v1976
    %v1996 = vadd.f32 %v1576, %v1979
    %v1997 = vadd.f32 %v1577, %v1982
    %v1998 = vadd.f32 %v1578, %v1985
    %v1999 = vadd.f32 %v1579, %v1988
    %v2000 = vadd.f32 %v1580, %v1991
    %v2001 = vld [vmem:[%s4 + $0xa] sm:$0x1]
    %v2002 = vperm.slane %v2001, 0
    %v2003 = vadd.f32 %v1993, %v2002
    %v2004 = vadd.f32 %v1994, %v2002
    %v2005 = vadd.f32 %v1995, %v2002
    %v2006 = vadd.f32 %v1996, %v2002
    %v2007 = vadd.f32 %v1997, %v2002
    %v2008 = vadd.f32 %v1998, %v2002
    %v2009 = vadd.f32 %v1999, %v2002
    %v2010 = vadd.f32 %v2000, %v2002
    %v2011 = vsel %vm119, %v2003, 0.0
    %2012 = vadd.xlane.f32.xlu0 %v2011
    %v2013 = vpop.xlane.xlu0 %2012
    %v2014 = vsel %vm119, %v2004, 0.0
    %2015 = vadd.xlane.f32.xlu0 %v2014
    %v2016 = vpop.xlane.xlu0 %2015
    %v2017 = vsel %vm119, %v2005, 0.0
    %2018 = vadd.xlane.f32.xlu0 %v2017
    %v2019 = vpop.xlane.xlu0 %2018
    %v2020 = vsel %vm119, %v2006, 0.0
    %2021 = vadd.xlane.f32.xlu0 %v2020
    %v2022 = vpop.xlane.xlu0 %2021
    %v2023 = vsel %vm119, %v2007, 0.0
    %2024 = vadd.xlane.f32.xlu0 %v2023
    %v2025 = vpop.xlane.xlu0 %2024
    %v2026 = vsel %vm119, %v2008, 0.0
    %2027 = vadd.xlane.f32.xlu0 %v2026
    %v2028 = vpop.xlane.xlu0 %2027
    %v2029 = vsel %vm119, %v2009, 0.0
    %2030 = vadd.xlane.f32.xlu0 %v2029
    %v2031 = vpop.xlane.xlu0 %2030
    %v2032 = vsel %vm119, %v2010, 0.0
    %2033 = vadd.xlane.f32.xlu0 %v2032
    %v2034 = vpop.xlane.xlu0 %2033
    %v2035 = vmul.f32 %v2013, %v150
    %v2036 = vmul.f32 %v2016, %v150
    %v2037 = vmul.f32 %v2019, %v150
    %v2038 = vmul.f32 %v2022, %v150
    %v2039 = vmul.f32 %v2025, %v150
    %v2040 = vmul.f32 %v2028, %v150
    %v2041 = vmul.f32 %v2031, %v150
    %v2042 = vmul.f32 %v2034, %v150
    %v2043 = vsub.f32 %v2003, %v2035
    %v2044 = vsub.f32 %v2004, %v2036
    %v2045 = vsub.f32 %v2005, %v2037
    %v2046 = vsub.f32 %v2006, %v2038
    %v2047 = vsub.f32 %v2007, %v2039
    %v2048 = vsub.f32 %v2008, %v2040
    %v2049 = vsub.f32 %v2009, %v2041
    %v2050 = vsub.f32 %v2010, %v2042
    %v2051 = vmul.f32 %v2043, %v2043
    %v2052 = vmul.f32 %v2044, %v2044
    %v2053 = vmul.f32 %v2045, %v2045
    %v2054 = vmul.f32 %v2046, %v2046
    %v2055 = vmul.f32 %v2047, %v2047
    %v2056 = vmul.f32 %v2048, %v2048
    %v2057 = vmul.f32 %v2049, %v2049
    %v2058 = vmul.f32 %v2050, %v2050
    %v2059 = vsel %vm119, %v2051, 0.0
    %2060 = vadd.xlane.f32.xlu0 %v2059
    %v2061 = vpop.xlane.xlu0 %2060
    %v2062 = vsel %vm119, %v2052, 0.0
    %2063 = vadd.xlane.f32.xlu0 %v2062
    %v2064 = vpop.xlane.xlu0 %2063
    %v2065 = vsel %vm119, %v2053, 0.0
    %2066 = vadd.xlane.f32.xlu0 %v2065
    %v2067 = vpop.xlane.xlu0 %2066
    %v2068 = vsel %vm119, %v2054, 0.0
    %2069 = vadd.xlane.f32.xlu0 %v2068
    %v2070 = vpop.xlane.xlu0 %2069
    %v2071 = vsel %vm119, %v2055, 0.0
    %2072 = vadd.xlane.f32.xlu0 %v2071
    %v2073 = vpop.xlane.xlu0 %2072
    %v2074 = vsel %vm119, %v2056, 0.0
    %2075 = vadd.xlane.f32.xlu0 %v2074
    %v2076 = vpop.xlane.xlu0 %2075
    %v2077 = vsel %vm119, %v2057, 0.0
    %2078 = vadd.xlane.f32.xlu0 %v2077
    %v2079 = vpop.xlane.xlu0 %2078
    %v2080 = vsel %vm119, %v2058, 0.0
    %2081 = vadd.xlane.f32.xlu0 %v2080
    %v2082 = vpop.xlane.xlu0 %2081
    %v2083 = vmul.f32 %v2061, %v150
    %v2084 = vmul.f32 %v2064, %v150
    %v2085 = vmul.f32 %v2067, %v150
    %v2086 = vmul.f32 %v2070, %v150
    %v2087 = vmul.f32 %v2073, %v150
    %v2088 = vmul.f32 %v2076, %v150
    %v2089 = vmul.f32 %v2079, %v150
    %v2090 = vmul.f32 %v2082, %v150
    %v2091 = vadd.f32 %v2083, 1e-05
    %v2092 = vadd.f32 %v2084, 1e-05
    %v2093 = vadd.f32 %v2085, 1e-05
    %v2094 = vadd.f32 %v2086, 1e-05
    %v2095 = vadd.f32 %v2087, 1e-05
    %v2096 = vadd.f32 %v2088, 1e-05
    %v2097 = vadd.f32 %v2089, 1e-05
    %v2098 = vadd.f32 %v2090, 1e-05
    %v2099 = vrsqrt.pop %v2091
    %v2100 = vmul.f32 %v2099, %v2091
    %v2101 = vmul.f32 %v2100, %v2099
    %v2102 = vmul.f32 0.5, %v2101
    %v2103 = vsub.f32 1.5, %v2102
    %v2104 = vmul.f32 %v2099, %v2103
    %vm2105 = vweird.f32 %v2091
    %vm2106 = vweird.f32 %v2099
    %vm2107 = vmor %vm2105, %vm2106
    %v2108 = vsel %vm2107, %v2099, %v2104
    %v2109 = vrsqrt.pop %v2092
    %v2110 = vmul.f32 %v2109, %v2092
    %v2111 = vmul.f32 %v2110, %v2109
    %v2112 = vmul.f32 0.5, %v2111
    %v2113 = vsub.f32 1.5, %v2112
    %v2114 = vmul.f32 %v2109, %v2113
    %vm2115 = vweird.f32 %v2092
    %vm2116 = vweird.f32 %v2109
    %vm2117 = vmor %vm2115, %vm2116
    %v2118 = vsel %vm2117, %v2109, %v2114
    %v2119 = vrsqrt.pop %v2093
    %v2120 = vmul.f32 %v2119, %v2093
    %v2121 = vmul.f32 %v2120, %v2119
    %v2122 = vmul.f32 0.5, %v2121
    %v2123 = vsub.f32 1.5, %v2122
    %v2124 = vmul.f32 %v2119, %v2123
    %vm2125 = vweird.f32 %v2093
    %vm2126 = vweird.f32 %v2119
    %vm2127 = vmor %vm2125, %vm2126
    %v2128 = vsel %vm2127, %v2119, %v2124
    %v2129 = vrsqrt.pop %v2094
    %v2130 = vmul.f32 %v2129, %v2094
    %v2131 = vmul.f32 %v2130, %v2129
    %v2132 = vmul.f32 0.5, %v2131
    %v2133 = vsub.f32 1.5, %v2132
    %v2134 = vmul.f32 %v2129, %v2133
    %vm2135 = vweird.f32 %v2094
    %vm2136 = vweird.f32 %v2129
    %vm2137 = vmor %vm2135, %vm2136
    %v2138 = vsel %vm2137, %v2129, %v2134
    %v2139 = vrsqrt.pop %v2095
    %v2140 = vmul.f32 %v2139, %v2095
    %v2141 = vmul.f32 %v2140, %v2139
    %v2142 = vmul.f32 0.5, %v2141
    %v2143 = vsub.f32 1.5, %v2142
    %v2144 = vmul.f32 %v2139, %v2143
    %vm2145 = vweird.f32 %v2095
    %vm2146 = vweird.f32 %v2139
    %vm2147 = vmor %vm2145, %vm2146
    %v2148 = vsel %vm2147, %v2139, %v2144
    %v2149 = vrsqrt.pop %v2096
    %v2150 = vmul.f32 %v2149, %v2096
    %v2151 = vmul.f32 %v2150, %v2149
    %v2152 = vmul.f32 0.5, %v2151
    %v2153 = vsub.f32 1.5, %v2152
    %v2154 = vmul.f32 %v2149, %v2153
    %vm2155 = vweird.f32 %v2096
    %vm2156 = vweird.f32 %v2149
    %vm2157 = vmor %vm2155, %vm2156
    %v2158 = vsel %vm2157, %v2149, %v2154
    %v2159 = vrsqrt.pop %v2097
    %v2160 = vmul.f32 %v2159, %v2097
    %v2161 = vmul.f32 %v2160, %v2159
    %v2162 = vmul.f32 0.5, %v2161
    %v2163 = vsub.f32 1.5, %v2162
    %v2164 = vmul.f32 %v2159, %v2163
    %vm2165 = vweird.f32 %v2097
    %vm2166 = vweird.f32 %v2159
    %vm2167 = vmor %vm2165, %vm2166
    %v2168 = vsel %vm2167, %v2159, %v2164
    %v2169 = vrsqrt.pop %v2098
    %v2170 = vmul.f32 %v2169, %v2098
    %v2171 = vmul.f32 %v2170, %v2169
    %v2172 = vmul.f32 0.5, %v2171
    %v2173 = vsub.f32 1.5, %v2172
    %v2174 = vmul.f32 %v2169, %v2173
    %vm2175 = vweird.f32 %v2098
    %vm2176 = vweird.f32 %v2169
    %vm2177 = vmor %vm2175, %vm2176
    %v2178 = vsel %vm2177, %v2169, %v2174
    %v2179 = vmul.f32 %v2043, %v2108
    %v2180 = vmul.f32 %v2044, %v2118
    %v2181 = vmul.f32 %v2045, %v2128
    %v2182 = vmul.f32 %v2046, %v2138
    %v2183 = vmul.f32 %v2047, %v2148
    %v2184 = vmul.f32 %v2048, %v2158
    %v2185 = vmul.f32 %v2049, %v2168
    %v2186 = vmul.f32 %v2050, %v2178
    %v2187 = vld [vmem:[%s4 + $0x11] sm:$0x1]
    %v2188 = vperm.slane %v2187, 0
    %v2189 = vmul.f32 %v2179, %v2188
    %v2190 = vmul.f32 %v2180, %v2188
    %v2191 = vmul.f32 %v2181, %v2188
    %v2192 = vmul.f32 %v2182, %v2188
    %v2193 = vmul.f32 %v2183, %v2188
    %v2194 = vmul.f32 %v2184, %v2188
    %v2195 = vmul.f32 %v2185, %v2188
    %v2196 = vmul.f32 %v2186, %v2188
    %v2197 = vld [vmem:[%s4 + $0x12] sm:$0x1]
    %v2198 = vperm.slane %v2197, 0
    %v2199 = vadd.f32 %v2189, %v2198
    %v2200 = vadd.f32 %v2190, %v2198
    %v2201 = vadd.f32 %v2191, %v2198
    %v2202 = vadd.f32 %v2192, %v2198
    %v2203 = vadd.f32 %v2193, %v2198
    %v2204 = vadd.f32 %v2194, %v2198
    %v2205 = vadd.f32 %v2195, %v2198
    %v2206 = vadd.f32 %v2196, %v2198
    %s2207 = scalar_lea.vmem %s1, 192
    %v2208 = vld [vmem:[%s2207] sm:$0xff]
    %v2209 = vld [vmem:[%s2207 + $0x8] sm:$0xff]
    %v2210 = vld [vmem:[%s2207 + $0x10] sm:$0xff]
    %v2211 = vld [vmem:[%s2207 + $0x18] sm:$0xff]
    %v2212 = vld [vmem:[%s4 + $0x18] sm:$0x1]
    %v2213 = vperm.slane %v2212, 0
    %v2215 = vsel %vm119, %v2199, 0
    %v2218 = vsel %vm119, %v2200, 0
    %v2221 = vsel %vm119, %v2201, 0
    %v2224 = vsel %vm119, %v2202, 0
    %v2227 = vsel %vm119, %v2203, 0
    %v2230 = vsel %vm119, %v2204, 0
    %v2233 = vsel %vm119, %v2205, 0
    %v2236 = vsel %vm119, %v2206, 0
    %2238 = vmatpush.msra.mxu0 0.0
    %2239 = vmatpush.msra.mxu0 0.0
    %2240 = vmatpush.msra.mxu0 0.0
    %2241 = vmatpush.msra.mxu0 0.0
    %2242 = vmatpush.msra.mxu0 0.0
    %2243 = vmatpush.msra.mxu0 0.0
    %2244 = vmatpush.msra.mxu0 0.0
    %2245 = vmatpush.msra.mxu0 0.0
    %2246 = vmatpush.msra.mxu0 0.0
    %2247 = vmatpush.msra.mxu0 0.0
    %2248 = vmatpush.msra.mxu0 0.0
    %2249 = vmatpush.msra.mxu0 0.0
    %2250 = vmatpush.msra.mxu0 %v2211
    %2251 = vmatpush.msra.mxu0 %v2210
    %2252 = vmatpush.msra.mxu0 %v2209
    %2253 = vmatpush.msra.mxu0 %v2208
    %2254 = vmatmul.f32.gmra.mxu0 %v2215
    %v2255 = vpop.f32.mrf.mxu0
    %v2256 = vadd.f32 %v2213, %v2255
    %2257 = vmatmul.f32.gmra.mxu0 %v2218
    %v2258 = vpop.f32.mrf.mxu0
    %v2259 = vadd.f32 %v2213, %v2258
    %2260 = vmatmul.f32.gmra.mxu0 %v2221
    %v2261 = vpop.f32.mrf.mxu0
    %v2262 = vadd.f32 %v2213, %v2261
    %2263 = vmatmul.f32.gmra.mxu0 %v2224
    %v2264 = vpop.f32.mrf.mxu0
    %v2265 = vadd.f32 %v2213, %v2264
    %2266 = vmatmul.f32.gmra.mxu0 %v2227
    %v2267 = vpop.f32.mrf.mxu0
    %v2268 = vadd.f32 %v2213, %v2267
    %2269 = vmatmul.f32.gmra.mxu0 %v2230
    %v2270 = vpop.f32.mrf.mxu0
    %v2271 = vadd.f32 %v2213, %v2270
    %2272 = vmatmul.f32.gmra.mxu0 %v2233
    %v2273 = vpop.f32.mrf.mxu0
    %v2274 = vadd.f32 %v2213, %v2273
    %2275 = vmatmul.f32.gmra.mxu0 %v2236
    %v2276 = vpop.f32.mrf.mxu0
    %v2277 = vadd.f32 %v2213, %v2276
    %2278 = vdwg.mxu0
    %s2279 = scalar_lea.vmem %s1, 224
    %v2280 = vld [vmem:[%s2279] sm:$0xff]
    %v2281 = vld [vmem:[%s2279 + $0x8] sm:$0xff]
    %v2282 = vld [vmem:[%s2279 + $0x10] sm:$0xff]
    %v2283 = vld [vmem:[%s2279 + $0x18] sm:$0xff]
    %v2284 = vld [vmem:[%s4 + $0x19] sm:$0x1]
    %v2285 = vperm.slane %v2284, 0
    %2286 = vmatpush.msra.mxu0 0.0
    %2287 = vmatpush.msra.mxu0 0.0
    %2288 = vmatpush.msra.mxu0 0.0
    %2289 = vmatpush.msra.mxu0 0.0
    %2290 = vmatpush.msra.mxu0 0.0
    %2291 = vmatpush.msra.mxu0 0.0
    %2292 = vmatpush.msra.mxu0 0.0
    %2293 = vmatpush.msra.mxu0 0.0
    %2294 = vmatpush.msra.mxu0 0.0
    %2295 = vmatpush.msra.mxu0 0.0
    %2296 = vmatpush.msra.mxu0 0.0
    %2297 = vmatpush.msra.mxu0 0.0
    %2298 = vmatpush.msra.mxu0 %v2283
    %2299 = vmatpush.msra.mxu0 %v2282
    %2300 = vmatpush.msra.mxu0 %v2281
    %2301 = vmatpush.msra.mxu0 %v2280
    %2302 = vmatmul.f32.gmra.mxu0 %v2215
    %v2303 = vpop.f32.mrf.mxu0
    %v2304 = vadd.f32 %v2285, %v2303
    %2305 = vmatmul.f32.gmra.mxu0 %v2218
    %v2306 = vpop.f32.mrf.mxu0
    %v2307 = vadd.f32 %v2285, %v2306
    %2308 = vmatmul.f32.gmra.mxu0 %v2221
    %v2309 = vpop.f32.mrf.mxu0
    %v2310 = vadd.f32 %v2285, %v2309
    %2311 = vmatmul.f32.gmra.mxu0 %v2224
    %v2312 = vpop.f32.mrf.mxu0
    %v2313 = vadd.f32 %v2285, %v2312
    %2314 = vmatmul.f32.gmra.mxu0 %v2227
    %v2315 = vpop.f32.mrf.mxu0
    %v2316 = vadd.f32 %v2285, %v2315
    %2317 = vmatmul.f32.gmra.mxu0 %v2230
    %v2318 = vpop.f32.mrf.mxu0
    %v2319 = vadd.f32 %v2285, %v2318
    %2320 = vmatmul.f32.gmra.mxu0 %v2233
    %v2321 = vpop.f32.mrf.mxu0
    %v2322 = vadd.f32 %v2285, %v2321
    %2323 = vmatmul.f32.gmra.mxu0 %v2236
    %v2324 = vpop.f32.mrf.mxu0
    %v2325 = vadd.f32 %v2285, %v2324
    %2326 = vdwg.mxu0
    %s2327 = scalar_lea.vmem %s1, 256
    %v2328 = vld [vmem:[%s2327] sm:$0xff]
    %v2329 = vld [vmem:[%s2327 + $0x8] sm:$0xff]
    %v2330 = vld [vmem:[%s2327 + $0x10] sm:$0xff]
    %v2331 = vld [vmem:[%s2327 + $0x18] sm:$0xff]
    %v2332 = vld [vmem:[%s4 + $0x1a] sm:$0x1]
    %v2333 = vperm.slane %v2332, 0
    %2334 = vmatpush.msra.mxu0 0.0
    %2335 = vmatpush.msra.mxu0 0.0
    %2336 = vmatpush.msra.mxu0 0.0
    %2337 = vmatpush.msra.mxu0 0.0
    %2338 = vmatpush.msra.mxu0 0.0
    %2339 = vmatpush.msra.mxu0 0.0
    %2340 = vmatpush.msra.mxu0 0.0
    %2341 = vmatpush.msra.mxu0 0.0
    %2342 = vmatpush.msra.mxu0 0.0
    %2343 = vmatpush.msra.mxu0 0.0
    %2344 = vmatpush.msra.mxu0 0.0
    %2345 = vmatpush.msra.mxu0 0.0
    %2346 = vmatpush.msra.mxu0 %v2331
    %2347 = vmatpush.msra.mxu0 %v2330
    %2348 = vmatpush.msra.mxu0 %v2329
    %2349 = vmatpush.msra.mxu0 %v2328
    %2350 = vmatmul.f32.gmra.mxu0 %v2215
    %v2351 = vpop.f32.mrf.mxu0
    %v2352 = vadd.f32 %v2333, %v2351
    %2353 = vmatmul.f32.gmra.mxu0 %v2218
    %v2354 = vpop.f32.mrf.mxu0
    %v2355 = vadd.f32 %v2333, %v2354
    %2356 = vmatmul.f32.gmra.mxu0 %v2221
    %v2357 = vpop.f32.mrf.mxu0
    %v2358 = vadd.f32 %v2333, %v2357
    %2359 = vmatmul.f32.gmra.mxu0 %v2224
    %v2360 = vpop.f32.mrf.mxu0
    %v2361 = vadd.f32 %v2333, %v2360
    %2362 = vmatmul.f32.gmra.mxu0 %v2227
    %v2363 = vpop.f32.mrf.mxu0
    %v2364 = vadd.f32 %v2333, %v2363
    %2365 = vmatmul.f32.gmra.mxu0 %v2230
    %v2366 = vpop.f32.mrf.mxu0
    %v2367 = vadd.f32 %v2333, %v2366
    %2368 = vmatmul.f32.gmra.mxu0 %v2233
    %v2369 = vpop.f32.mrf.mxu0
    %v2370 = vadd.f32 %v2333, %v2369
    %2371 = vmatmul.f32.gmra.mxu0 %v2236
    %v2372 = vpop.f32.mrf.mxu0
    %v2373 = vadd.f32 %v2333, %v2372
    %2374 = vdwg.mxu0
    %v2375 = vld [vmem:[%s2 + $0xe0] sm:$0xff]
    %v2376 = vld [vmem:[%s2 + $0xe8] sm:$0xff]
    %v2378 = vsel %vm492, %v2256, 0
    %v2381 = vsel %vm492, %v2259, 0
    %v2384 = vsel %vm492, %v2262, 0
    %v2387 = vsel %vm492, %v2265, 0
    %v2390 = vsel %vm492, %v2304, 0
    %v2393 = vsel %vm492, %v2307, 0
    %v2396 = vsel %vm492, %v2310, 0
    %v2399 = vsel %vm492, %v2313, 0
    %2401 = vmatpush.xpose.msra.mxu0 0.0
    %2402 = vmatpush.xpose.msra.mxu0 0.0
    %2403 = vmatpush.xpose.msra.mxu0 0.0
    %2404 = vmatpush.xpose.msra.mxu0 0.0
    %2405 = vmatpush.xpose.msra.mxu0 0.0
    %2406 = vmatpush.xpose.msra.mxu0 0.0
    %2407 = vmatpush.xpose.msra.mxu0 0.0
    %2408 = vmatpush.xpose.msra.mxu0 0.0
    %2409 = vmatpush.xpose.msra.mxu0 0.0
    %2410 = vmatpush.xpose.msra.mxu0 0.0
    %2411 = vmatpush.xpose.msra.mxu0 0.0
    %2412 = vmatpush.xpose.msra.mxu0 0.0
    %2413 = vmatpush.xpose.msra.mxu0 %v2399
    %2414 = vmatpush.xpose.msra.mxu0 %v2396
    %2415 = vmatpush.xpose.msra.mxu0 %v2393
    %2416 = vmatpush.xpose.msra.mxu0 %v2390
    %2417 = vmatmul.f32.gmra.mxu0 %v2378
    %v2418 = vpop.f32.mrf.mxu0
    %v2419 = vadd.f32 0.0, %v2418
    %2420 = vmatmul.f32.gmra.mxu0 %v2381
    %v2421 = vpop.f32.mrf.mxu0
    %v2422 = vadd.f32 0.0, %v2421
    %2423 = vmatmul.f32.gmra.mxu0 %v2384
    %v2424 = vpop.f32.mrf.mxu0
    %v2425 = vadd.f32 0.0, %v2424
    %2426 = vmatmul.f32.gmra.mxu0 %v2387
    %v2427 = vpop.f32.mrf.mxu0
    %v2428 = vadd.f32 0.0, %v2427
    %2429 = vdwg.mxu0
    %v2430 = vsel %vm119, %v2419, -inf
    %2431 = vmax.xlane.f32.xlu0 %v2430
    %v2432 = vpop.xlane.xlu0 %2431
    %v2433 = vsel %vm119, %v2422, -inf
    %2434 = vmax.xlane.f32.xlu0 %v2433
    %v2435 = vpop.xlane.xlu0 %2434
    %v2436 = vsel %vm119, %v2425, -inf
    %2437 = vmax.xlane.f32.xlu0 %v2436
    %v2438 = vpop.xlane.xlu0 %2437
    %v2439 = vsel %vm119, %v2428, -inf
    %2440 = vmax.xlane.f32.xlu0 %v2439
    %v2441 = vpop.xlane.xlu0 %2440
    %v2442 = vsub.f32 %v2419, %v2432
    %v2443 = vsub.f32 %v2422, %v2435
    %v2444 = vsub.f32 %v2425, %v2438
    %v2445 = vsub.f32 %v2428, %v2441
    %v2446 = vmul.f32 %v2442, 1.442695
    %v2447 = vpow.pop %v2446
    %v2448 = vmul.f32 %v2443, 1.442695
    %v2449 = vpow.pop %v2448
    %v2450 = vmul.f32 %v2444, 1.442695
    %v2451 = vpow.pop %v2450
    %v2452 = vmul.f32 %v2445, 1.442695
    %v2453 = vpow.pop %v2452
    %v2454 = vsel %vm119, %v2447, 0.0
    %2455 = vadd.xlane.f32.xlu0 %v2454
    %v2456 = vpop.xlane.xlu0 %2455
    %v2457 = vsel %vm119, %v2449, 0.0
    %2458 = vadd.xlane.f32.xlu0 %v2457
    %v2459 = vpop.xlane.xlu0 %2458
    %v2460 = vsel %vm119, %v2451, 0.0
    %2461 = vadd.xlane.f32.xlu0 %v2460
    %v2462 = vpop.xlane.xlu0 %2461
    %v2463 = vsel %vm119, %v2453, 0.0
    %2464 = vadd.xlane.f32.xlu0 %v2463
    %v2465 = vpop.xlane.xlu0 %2464
    %v2466 = vrcp.pop %v2456
    %v2467 = vmul.f32 %v2456, %v2466
    %v2468 = vsub.f32 1.0, %v2467
    %v2469 = vmul.f32 %v2466, %v2468
    %v2470 = vadd.f32 %v2466, %v2469
    %vm2471 = vweird.f32 %v2456
    %vm2472 = vweird.f32 %v2466
    %vm2473 = vmor %vm2471, %vm2472
    %v2474 = vsel %vm2473, %v2466, %v2470
    %v2475 = vand.u32 2147483647, %v2456
    %vm2476 = vcmp.eq.f32.partialorder %v2475, 8.507059e+37
    %v2477 = vand.u32 %v2456, 2147483648
    %v2478 = vor.u32 1.1754944e-38, %v2477
    %v2479 = vsel %vm2476, %v2478, %v2474
    %v2480 = vmul.f32 %v2447, %v2479
    %v2481 = vrcp.pop %v2459
    %v2482 = vmul.f32 %v2459, %v2481
    %v2483 = vsub.f32 1.0, %v2482
    %v2484 = vmul.f32 %v2481, %v2483
    %v2485 = vadd.f32 %v2481, %v2484
    %vm2486 = vweird.f32 %v2459
    %vm2487 = vweird.f32 %v2481
    %vm2488 = vmor %vm2486, %vm2487
    %v2489 = vsel %vm2488, %v2481, %v2485
    %v2490 = vand.u32 2147483647, %v2459
    %vm2491 = vcmp.eq.f32.partialorder %v2490, 8.507059e+37
    %v2492 = vand.u32 %v2459, 2147483648
    %v2493 = vor.u32 1.1754944e-38, %v2492
    %v2494 = vsel %vm2491, %v2493, %v2489
    %v2495 = vmul.f32 %v2449, %v2494
    %v2496 = vrcp.pop %v2462
    %v2497 = vmul.f32 %v2462, %v2496
    %v2498 = vsub.f32 1.0, %v2497
    %v2499 = vmul.f32 %v2496, %v2498
    %v2500 = vadd.f32 %v2496, %v2499
    %vm2501 = vweird.f32 %v2462
    %vm2502 = vweird.f32 %v2496
    %vm2503 = vmor %vm2501, %vm2502
    %v2504 = vsel %vm2503, %v2496, %v2500
    %v2505 = vand.u32 2147483647, %v2462
    %vm2506 = vcmp.eq.f32.partialorder %v2505, 8.507059e+37
    %v2507 = vand.u32 %v2462, 2147483648
    %v2508 = vor.u32 1.1754944e-38, %v2507
    %v2509 = vsel %vm2506, %v2508, %v2504
    %v2510 = vmul.f32 %v2451, %v2509
    %v2511 = vrcp.pop %v2465
    %v2512 = vmul.f32 %v2465, %v2511
    %v2513 = vsub.f32 1.0, %v2512
    %v2514 = vmul.f32 %v2511, %v2513
    %v2515 = vadd.f32 %v2511, %v2514
    %vm2516 = vweird.f32 %v2465
    %vm2517 = vweird.f32 %v2511
    %vm2518 = vmor %vm2516, %vm2517
    %v2519 = vsel %vm2518, %v2511, %v2515
    %v2520 = vand.u32 2147483647, %v2465
    %vm2521 = vcmp.eq.f32.partialorder %v2520, 8.507059e+37
    %v2522 = vand.u32 %v2465, 2147483648
    %v2523 = vor.u32 1.1754944e-38, %v2522
    %v2524 = vsel %vm2521, %v2523, %v2519
    %v2525 = vmul.f32 %v2453, %v2524
    %v2527 = vsel %vm119, %v2480, 0
    %v2530 = vsel %vm119, %v2495, 0
    %v2533 = vsel %vm119, %v2510, 0
    %v2536 = vsel %vm119, %v2525, 0
    %2538 = vmatpush.msra.mxu0 0.0
    %2539 = vmatpush.msra.mxu0 0.0
    %2540 = vmatpush.msra.mxu0 0.0
    %2541 = vmatpush.msra.mxu0 0.0
    %2542 = vmatpush.msra.mxu0 0.0
    %2543 = vmatpush.msra.mxu0 0.0
    %2544 = vmatpush.msra.mxu0 0.0
    %2545 = vmatpush.msra.mxu0 0.0
    %2546 = vmatpush.msra.mxu0 0.0
    %2547 = vmatpush.msra.mxu0 0.0
    %2548 = vmatpush.msra.mxu0 0.0
    %2549 = vmatpush.msra.mxu0 0.0
    %2550 = vmatpush.msra.mxu0 %v2361
    %2551 = vmatpush.msra.mxu0 %v2358
    %2552 = vmatpush.msra.mxu0 %v2355
    %2553 = vmatpush.msra.mxu0 %v2352
    %2554 = vmatmul.f32.gmra.mxu0 %v2527
    %v2555 = vpop.f32.mrf.mxu0
    %v2556 = vadd.f32 0.0, %v2555
    %2557 = vmatmul.f32.gmra.mxu0 %v2530
    %v2558 = vpop.f32.mrf.mxu0
    %v2559 = vadd.f32 0.0, %v2558
    %2560 = vmatmul.f32.gmra.mxu0 %v2533
    %v2561 = vpop.f32.mrf.mxu0
    %v2562 = vadd.f32 0.0, %v2561
    %2563 = vmatmul.f32.gmra.mxu0 %v2536
    %v2564 = vpop.f32.mrf.mxu0
    %v2565 = vadd.f32 0.0, %v2564
    %2566 = vdwg.mxu0
    %v2568 = vsel %vm492, %v2268, 0
    %v2571 = vsel %vm492, %v2271, 0
    %v2574 = vsel %vm492, %v2274, 0
    %v2577 = vsel %vm492, %v2277, 0
    %v2580 = vsel %vm492, %v2316, 0
    %v2583 = vsel %vm492, %v2319, 0
    %v2586 = vsel %vm492, %v2322, 0
    %v2589 = vsel %vm492, %v2325, 0
    %2591 = vmatpush.xpose.msra.mxu0 0.0
    %2592 = vmatpush.xpose.msra.mxu0 0.0
    %2593 = vmatpush.xpose.msra.mxu0 0.0
    %2594 = vmatpush.xpose.msra.mxu0 0.0
    %2595 = vmatpush.xpose.msra.mxu0 0.0
    %2596 = vmatpush.xpose.msra.mxu0 0.0
    %2597 = vmatpush.xpose.msra.mxu0 0.0
    %2598 = vmatpush.xpose.msra.mxu0 0.0
    %2599 = vmatpush.xpose.msra.mxu0 0.0
    %2600 = vmatpush.xpose.msra.mxu0 0.0
    %2601 = vmatpush.xpose.msra.mxu0 0.0
    %2602 = vmatpush.xpose.msra.mxu0 0.0
    %2603 = vmatpush.xpose.msra.mxu0 %v2589
    %2604 = vmatpush.xpose.msra.mxu0 %v2586
    %2605 = vmatpush.xpose.msra.mxu0 %v2583
    %2606 = vmatpush.xpose.msra.mxu0 %v2580
    %2607 = vmatmul.f32.gmra.mxu0 %v2568
    %v2608 = vpop.f32.mrf.mxu0
    %v2609 = vadd.f32 0.0, %v2608
    %2610 = vmatmul.f32.gmra.mxu0 %v2571
    %v2611 = vpop.f32.mrf.mxu0
    %v2612 = vadd.f32 0.0, %v2611
    %2613 = vmatmul.f32.gmra.mxu0 %v2574
    %v2614 = vpop.f32.mrf.mxu0
    %v2615 = vadd.f32 0.0, %v2614
    %2616 = vmatmul.f32.gmra.mxu0 %v2577
    %v2617 = vpop.f32.mrf.mxu0
    %v2618 = vadd.f32 0.0, %v2617
    %2619 = vdwg.mxu0
    %v2620 = vsel %vm119, %v2609, -inf
    %2621 = vmax.xlane.f32.xlu0 %v2620
    %v2622 = vpop.xlane.xlu0 %2621
    %v2623 = vsel %vm119, %v2612, -inf
    %2624 = vmax.xlane.f32.xlu0 %v2623
    %v2625 = vpop.xlane.xlu0 %2624
    %v2626 = vsel %vm119, %v2615, -inf
    %2627 = vmax.xlane.f32.xlu0 %v2626
    %v2628 = vpop.xlane.xlu0 %2627
    %v2629 = vsel %vm119, %v2618, -inf
    %2630 = vmax.xlane.f32.xlu0 %v2629
    %v2631 = vpop.xlane.xlu0 %2630
    %v2632 = vsub.f32 %v2609, %v2622
    %v2633 = vsub.f32 %v2612, %v2625
    %v2634 = vsub.f32 %v2615, %v2628
    %v2635 = vsub.f32 %v2618, %v2631
    %v2636 = vmul.f32 %v2632, 1.442695
    %v2637 = vpow.pop %v2636
    %v2638 = vmul.f32 %v2633, 1.442695
    %v2639 = vpow.pop %v2638
    %v2640 = vmul.f32 %v2634, 1.442695
    %v2641 = vpow.pop %v2640
    %v2642 = vmul.f32 %v2635, 1.442695
    %v2643 = vpow.pop %v2642
    %v2644 = vsel %vm119, %v2637, 0.0
    %2645 = vadd.xlane.f32.xlu0 %v2644
    %v2646 = vpop.xlane.xlu0 %2645
    %v2647 = vsel %vm119, %v2639, 0.0
    %2648 = vadd.xlane.f32.xlu0 %v2647
    %v2649 = vpop.xlane.xlu0 %2648
    %v2650 = vsel %vm119, %v2641, 0.0
    %2651 = vadd.xlane.f32.xlu0 %v2650
    %v2652 = vpop.xlane.xlu0 %2651
    %v2653 = vsel %vm119, %v2643, 0.0
    %2654 = vadd.xlane.f32.xlu0 %v2653
    %v2655 = vpop.xlane.xlu0 %2654
    %v2656 = vrcp.pop %v2646
    %v2657 = vmul.f32 %v2646, %v2656
    %v2658 = vsub.f32 1.0, %v2657
    %v2659 = vmul.f32 %v2656, %v2658
    %v2660 = vadd.f32 %v2656, %v2659
    %vm2661 = vweird.f32 %v2646
    %vm2662 = vweird.f32 %v2656
    %vm2663 = vmor %vm2661, %vm2662
    %v2664 = vsel %vm2663, %v2656, %v2660
    %v2665 = vand.u32 2147483647, %v2646
    %vm2666 = vcmp.eq.f32.partialorder %v2665, 8.507059e+37
    %v2667 = vand.u32 %v2646, 2147483648
    %v2668 = vor.u32 1.1754944e-38, %v2667
    %v2669 = vsel %vm2666, %v2668, %v2664
    %v2670 = vmul.f32 %v2637, %v2669
    %v2671 = vrcp.pop %v2649
    %v2672 = vmul.f32 %v2649, %v2671
    %v2673 = vsub.f32 1.0, %v2672
    %v2674 = vmul.f32 %v2671, %v2673
    %v2675 = vadd.f32 %v2671, %v2674
    %vm2676 = vweird.f32 %v2649
    %vm2677 = vweird.f32 %v2671
    %vm2678 = vmor %vm2676, %vm2677
    %v2679 = vsel %vm2678, %v2671, %v2675
    %v2680 = vand.u32 2147483647, %v2649
    %vm2681 = vcmp.eq.f32.partialorder %v2680, 8.507059e+37
    %v2682 = vand.u32 %v2649, 2147483648
    %v2683 = vor.u32 1.1754944e-38, %v2682
    %v2684 = vsel %vm2681, %v2683, %v2679
    %v2685 = vmul.f32 %v2639, %v2684
    %v2686 = vrcp.pop %v2652
    %v2687 = vmul.f32 %v2652, %v2686
    %v2688 = vsub.f32 1.0, %v2687
    %v2689 = vmul.f32 %v2686, %v2688
    %v2690 = vadd.f32 %v2686, %v2689
    %vm2691 = vweird.f32 %v2652
    %vm2692 = vweird.f32 %v2686
    %vm2693 = vmor %vm2691, %vm2692
    %v2694 = vsel %vm2693, %v2686, %v2690
    %v2695 = vand.u32 2147483647, %v2652
    %vm2696 = vcmp.eq.f32.partialorder %v2695, 8.507059e+37
    %v2697 = vand.u32 %v2652, 2147483648
    %v2698 = vor.u32 1.1754944e-38, %v2697
    %v2699 = vsel %vm2696, %v2698, %v2694
    %v2700 = vmul.f32 %v2641, %v2699
    %v2701 = vrcp.pop %v2655
    %v2702 = vmul.f32 %v2655, %v2701
    %v2703 = vsub.f32 1.0, %v2702
    %v2704 = vmul.f32 %v2701, %v2703
    %v2705 = vadd.f32 %v2701, %v2704
    %vm2706 = vweird.f32 %v2655
    %vm2707 = vweird.f32 %v2701
    %vm2708 = vmor %vm2706, %vm2707
    %v2709 = vsel %vm2708, %v2701, %v2705
    %v2710 = vand.u32 2147483647, %v2655
    %vm2711 = vcmp.eq.f32.partialorder %v2710, 8.507059e+37
    %v2712 = vand.u32 %v2655, 2147483648
    %v2713 = vor.u32 1.1754944e-38, %v2712
    %v2714 = vsel %vm2711, %v2713, %v2709
    %v2715 = vmul.f32 %v2643, %v2714
    %v2717 = vsel %vm119, %v2670, 0
    %v2720 = vsel %vm119, %v2685, 0
    %v2723 = vsel %vm119, %v2700, 0
    %v2726 = vsel %vm119, %v2715, 0
    %2728 = vmatpush.msra.mxu0 0.0
    %2729 = vmatpush.msra.mxu0 0.0
    %2730 = vmatpush.msra.mxu0 0.0
    %2731 = vmatpush.msra.mxu0 0.0
    %2732 = vmatpush.msra.mxu0 0.0
    %2733 = vmatpush.msra.mxu0 0.0
    %2734 = vmatpush.msra.mxu0 0.0
    %2735 = vmatpush.msra.mxu0 0.0
    %2736 = vmatpush.msra.mxu0 0.0
    %2737 = vmatpush.msra.mxu0 0.0
    %2738 = vmatpush.msra.mxu0 0.0
    %2739 = vmatpush.msra.mxu0 0.0
    %2740 = vmatpush.msra.mxu0 %v2373
    %2741 = vmatpush.msra.mxu0 %v2370
    %2742 = vmatpush.msra.mxu0 %v2367
    %2743 = vmatpush.msra.mxu0 %v2364
    %2744 = vmatmul.f32.gmra.mxu0 %v2717
    %v2745 = vpop.f32.mrf.mxu0
    %v2746 = vadd.f32 0.0, %v2745
    %2747 = vmatmul.f32.gmra.mxu0 %v2720
    %v2748 = vpop.f32.mrf.mxu0
    %v2749 = vadd.f32 0.0, %v2748
    %2750 = vmatmul.f32.gmra.mxu0 %v2723
    %v2751 = vpop.f32.mrf.mxu0
    %v2752 = vadd.f32 0.0, %v2751
    %2753 = vmatmul.f32.gmra.mxu0 %v2726
    %v2754 = vpop.f32.mrf.mxu0
    %v2755 = vadd.f32 0.0, %v2754
    %2756 = vdwg.mxu0
    %s2757 = scalar_lea.vmem %s1, 288
    %v2758 = vld [vmem:[%s2757] sm:$0xff]
    %v2759 = vld [vmem:[%s2757 + $0x8] sm:$0xff]
    %v2760 = vld [vmem:[%s2757 + $0x10] sm:$0xff]
    %v2761 = vld [vmem:[%s2757 + $0x18] sm:$0xff]
    %v2762 = vld [vmem:[%s4 + $0x1b] sm:$0x1]
    %v2763 = vperm.slane %v2762, 0
    %2764 = vmatpush.msra.mxu0 0.0
    %2765 = vmatpush.msra.mxu0 0.0
    %2766 = vmatpush.msra.mxu0 0.0
    %2767 = vmatpush.msra.mxu0 0.0
    %2768 = vmatpush.msra.mxu0 0.0
    %2769 = vmatpush.msra.mxu0 0.0
    %2770 = vmatpush.msra.mxu0 0.0
    %2771 = vmatpush.msra.mxu0 0.0
    %2772 = vmatpush.msra.mxu0 0.0
    %2773 = vmatpush.msra.mxu0 0.0
    %2774 = vmatpush.msra.mxu0 0.0
    %2775 = vmatpush.msra.mxu0 0.0
    %2776 = vmatpush.msra.mxu0 %v2761
    %2777 = vmatpush.msra.mxu0 %v2760
    %2778 = vmatpush.msra.mxu0 %v2759
    %2779 = vmatpush.msra.mxu0 %v2758
    %2780 = vmatmul.f32.gmra.mxu0 %v2215
    %v2781 = vpop.f32.mrf.mxu0
    %v2782 = vadd.f32 %v2763, %v2781
    %2783 = vmatmul.f32.gmra.mxu0 %v2218
    %v2784 = vpop.f32.mrf.mxu0
    %v2785 = vadd.f32 %v2763, %v2784
    %2786 = vmatmul.f32.gmra.mxu0 %v2221
    %v2787 = vpop.f32.mrf.mxu0
    %v2788 = vadd.f32 %v2763, %v2787
    %2789 = vmatmul.f32.gmra.mxu0 %v2224
    %v2790 = vpop.f32.mrf.mxu0
    %v2791 = vadd.f32 %v2763, %v2790
    %2792 = vmatmul.f32.gmra.mxu0 %v2227
    %v2793 = vpop.f32.mrf.mxu0
    %v2794 = vadd.f32 %v2763, %v2793
    %2795 = vmatmul.f32.gmra.mxu0 %v2230
    %v2796 = vpop.f32.mrf.mxu0
    %v2797 = vadd.f32 %v2763, %v2796
    %2798 = vmatmul.f32.gmra.mxu0 %v2233
    %v2799 = vpop.f32.mrf.mxu0
    %v2800 = vadd.f32 %v2763, %v2799
    %2801 = vmatmul.f32.gmra.mxu0 %v2236
    %v2802 = vpop.f32.mrf.mxu0
    %v2803 = vadd.f32 %v2763, %v2802
    %2804 = vdwg.mxu0
    %s2805 = scalar_lea.vmem %s1, 320
    %v2806 = vld [vmem:[%s2805] sm:$0xff]
    %v2807 = vld [vmem:[%s2805 + $0x8] sm:$0xff]
    %v2808 = vld [vmem:[%s2805 + $0x10] sm:$0xff]
    %v2809 = vld [vmem:[%s2805 + $0x18] sm:$0xff]
    %v2810 = vld [vmem:[%s4 + $0x1c] sm:$0x1]
    %v2811 = vperm.slane %v2810, 0
    %2812 = vmatpush.msra.mxu0 0.0
    %2813 = vmatpush.msra.mxu0 0.0
    %2814 = vmatpush.msra.mxu0 0.0
    %2815 = vmatpush.msra.mxu0 0.0
    %2816 = vmatpush.msra.mxu0 0.0
    %2817 = vmatpush.msra.mxu0 0.0
    %2818 = vmatpush.msra.mxu0 0.0
    %2819 = vmatpush.msra.mxu0 0.0
    %2820 = vmatpush.msra.mxu0 0.0
    %2821 = vmatpush.msra.mxu0 0.0
    %2822 = vmatpush.msra.mxu0 0.0
    %2823 = vmatpush.msra.mxu0 0.0
    %2824 = vmatpush.msra.mxu0 %v2809
    %2825 = vmatpush.msra.mxu0 %v2808
    %2826 = vmatpush.msra.mxu0 %v2807
    %2827 = vmatpush.msra.mxu0 %v2806
    %2828 = vmatmul.f32.gmra.mxu0 %v2215
    %v2829 = vpop.f32.mrf.mxu0
    %v2830 = vadd.f32 %v2811, %v2829
    %2831 = vmatmul.f32.gmra.mxu0 %v2218
    %v2832 = vpop.f32.mrf.mxu0
    %v2833 = vadd.f32 %v2811, %v2832
    %2834 = vmatmul.f32.gmra.mxu0 %v2221
    %v2835 = vpop.f32.mrf.mxu0
    %v2836 = vadd.f32 %v2811, %v2835
    %2837 = vmatmul.f32.gmra.mxu0 %v2224
    %v2838 = vpop.f32.mrf.mxu0
    %v2839 = vadd.f32 %v2811, %v2838
    %2840 = vmatmul.f32.gmra.mxu0 %v2227
    %v2841 = vpop.f32.mrf.mxu0
    %v2842 = vadd.f32 %v2811, %v2841
    %2843 = vmatmul.f32.gmra.mxu0 %v2230
    %v2844 = vpop.f32.mrf.mxu0
    %v2845 = vadd.f32 %v2811, %v2844
    %2846 = vmatmul.f32.gmra.mxu0 %v2233
    %v2847 = vpop.f32.mrf.mxu0
    %v2848 = vadd.f32 %v2811, %v2847
    %2849 = vmatmul.f32.gmra.mxu0 %v2236
    %v2850 = vpop.f32.mrf.mxu0
    %v2851 = vadd.f32 %v2811, %v2850
    %2852 = vdwg.mxu0
    %s2853 = scalar_lea.vmem %s1, 352
    %v2854 = vld [vmem:[%s2853] sm:$0xff]
    %v2855 = vld [vmem:[%s2853 + $0x8] sm:$0xff]
    %v2856 = vld [vmem:[%s2853 + $0x10] sm:$0xff]
    %v2857 = vld [vmem:[%s2853 + $0x18] sm:$0xff]
    %v2858 = vld [vmem:[%s4 + $0x1d] sm:$0x1]
    %v2859 = vperm.slane %v2858, 0
    %2860 = vmatpush.msra.mxu0 0.0
    %2861 = vmatpush.msra.mxu0 0.0
    %2862 = vmatpush.msra.mxu0 0.0
    %2863 = vmatpush.msra.mxu0 0.0
    %2864 = vmatpush.msra.mxu0 0.0
    %2865 = vmatpush.msra.mxu0 0.0
    %2866 = vmatpush.msra.mxu0 0.0
    %2867 = vmatpush.msra.mxu0 0.0
    %2868 = vmatpush.msra.mxu0 0.0
    %2869 = vmatpush.msra.mxu0 0.0
    %2870 = vmatpush.msra.mxu0 0.0
    %2871 = vmatpush.msra.mxu0 0.0
    %2872 = vmatpush.msra.mxu0 %v2857
    %2873 = vmatpush.msra.mxu0 %v2856
    %2874 = vmatpush.msra.mxu0 %v2855
    %2875 = vmatpush.msra.mxu0 %v2854
    %2876 = vmatmul.f32.gmra.mxu0 %v2215
    %v2877 = vpop.f32.mrf.mxu0
    %v2878 = vadd.f32 %v2859, %v2877
    %2879 = vmatmul.f32.gmra.mxu0 %v2218
    %v2880 = vpop.f32.mrf.mxu0
    %v2881 = vadd.f32 %v2859, %v2880
    %2882 = vmatmul.f32.gmra.mxu0 %v2221
    %v2883 = vpop.f32.mrf.mxu0
    %v2884 = vadd.f32 %v2859, %v2883
    %2885 = vmatmul.f32.gmra.mxu0 %v2224
    %v2886 = vpop.f32.mrf.mxu0
    %v2887 = vadd.f32 %v2859, %v2886
    %2888 = vmatmul.f32.gmra.mxu0 %v2227
    %v2889 = vpop.f32.mrf.mxu0
    %v2890 = vadd.f32 %v2859, %v2889
    %2891 = vmatmul.f32.gmra.mxu0 %v2230
    %v2892 = vpop.f32.mrf.mxu0
    %v2893 = vadd.f32 %v2859, %v2892
    %2894 = vmatmul.f32.gmra.mxu0 %v2233
    %v2895 = vpop.f32.mrf.mxu0
    %v2896 = vadd.f32 %v2859, %v2895
    %2897 = vmatmul.f32.gmra.mxu0 %v2236
    %v2898 = vpop.f32.mrf.mxu0
    %v2899 = vadd.f32 %v2859, %v2898
    %2900 = vdwg.mxu0
    %v2901 = vld [vmem:[%s2 + $0xf0] sm:$0xff]
    %v2902 = vld [vmem:[%s2 + $0xf8] sm:$0xff]
    %v2904 = vsel %vm492, %v2782, 0
    %v2907 = vsel %vm492, %v2785, 0
    %v2910 = vsel %vm492, %v2788, 0
    %v2913 = vsel %vm492, %v2791, 0
    %v2916 = vsel %vm492, %v2830, 0
    %v2919 = vsel %vm492, %v2833, 0
    %v2922 = vsel %vm492, %v2836, 0
    %v2925 = vsel %vm492, %v2839, 0
    %2927 = vmatpush.xpose.msra.mxu0 0.0
    %2928 = vmatpush.xpose.msra.mxu0 0.0
    %2929 = vmatpush.xpose.msra.mxu0 0.0
    %2930 = vmatpush.xpose.msra.mxu0 0.0
    %2931 = vmatpush.xpose.msra.mxu0 0.0
    %2932 = vmatpush.xpose.msra.mxu0 0.0
    %2933 = vmatpush.xpose.msra.mxu0 0.0
    %2934 = vmatpush.xpose.msra.mxu0 0.0
    %2935 = vmatpush.xpose.msra.mxu0 0.0
    %2936 = vmatpush.xpose.msra.mxu0 0.0
    %2937 = vmatpush.xpose.msra.mxu0 0.0
    %2938 = vmatpush.xpose.msra.mxu0 0.0
    %2939 = vmatpush.xpose.msra.mxu0 %v2925
    %2940 = vmatpush.xpose.msra.mxu0 %v2922
    %2941 = vmatpush.xpose.msra.mxu0 %v2919
    %2942 = vmatpush.xpose.msra.mxu0 %v2916
    %2943 = vmatmul.f32.gmra.mxu0 %v2904
    %v2944 = vpop.f32.mrf.mxu0
    %v2945 = vadd.f32 0.0, %v2944
    %2946 = vmatmul.f32.gmra.mxu0 %v2907
    %v2947 = vpop.f32.mrf.mxu0
    %v2948 = vadd.f32 0.0, %v2947
    %2949 = vmatmul.f32.gmra.mxu0 %v2910
    %v2950 = vpop.f32.mrf.mxu0
    %v2951 = vadd.f32 0.0, %v2950
    %2952 = vmatmul.f32.gmra.mxu0 %v2913
    %v2953 = vpop.f32.mrf.mxu0
    %v2954 = vadd.f32 0.0, %v2953
    %2955 = vdwg.mxu0
    %v2956 = vsel %vm119, %v2945, -inf
    %2957 = vmax.xlane.f32.xlu0 %v2956
    %v2958 = vpop.xlane.xlu0 %2957
    %v2959 = vsel %vm119, %v2948, -inf
    %2960 = vmax.xlane.f32.xlu0 %v2959
    %v2961 = vpop.xlane.xlu0 %2960
    %v2962 = vsel %vm119, %v2951, -inf
    %2963 = vmax.xlane.f32.xlu0 %v2962
    %v2964 = vpop.xlane.xlu0 %2963
    %v2965 = vsel %vm119, %v2954, -inf
    %2966 = vmax.xlane.f32.xlu0 %v2965
    %v2967 = vpop.xlane.xlu0 %2966
    %v2968 = vsub.f32 %v2945, %v2958
    %v2969 = vsub.f32 %v2948, %v2961
    %v2970 = vsub.f32 %v2951, %v2964
    %v2971 = vsub.f32 %v2954, %v2967
    %v2972 = vmul.f32 %v2968, 1.442695
    %v2973 = vpow.pop %v2972
    %v2974 = vmul.f32 %v2969, 1.442695
    %v2975 = vpow.pop %v2974
    %v2976 = vmul.f32 %v2970, 1.442695
    %v2977 = vpow.pop %v2976
    %v2978 = vmul.f32 %v2971, 1.442695
    %v2979 = vpow.pop %v2978
    %v2980 = vsel %vm119, %v2973, 0.0
    %2981 = vadd.xlane.f32.xlu0 %v2980
    %v2982 = vpop.xlane.xlu0 %2981
    %v2983 = vsel %vm119, %v2975, 0.0
    %2984 = vadd.xlane.f32.xlu0 %v2983
    %v2985 = vpop.xlane.xlu0 %2984
    %v2986 = vsel %vm119, %v2977, 0.0
    %2987 = vadd.xlane.f32.xlu0 %v2986
    %v2988 = vpop.xlane.xlu0 %2987
    %v2989 = vsel %vm119, %v2979, 0.0
    %2990 = vadd.xlane.f32.xlu0 %v2989
    %v2991 = vpop.xlane.xlu0 %2990
    %v2992 = vrcp.pop %v2982
    %v2993 = vmul.f32 %v2982, %v2992
    %v2994 = vsub.f32 1.0, %v2993
    %v2995 = vmul.f32 %v2992, %v2994
    %v2996 = vadd.f32 %v2992, %v2995
    %vm2997 = vweird.f32 %v2982
    %vm2998 = vweird.f32 %v2992
    %vm2999 = vmor %vm2997, %vm2998
    %v3000 = vsel %vm2999, %v2992, %v2996
    %v3001 = vand.u32 2147483647, %v2982
    %vm3002 = vcmp.eq.f32.partialorder %v3001, 8.507059e+37
    %v3003 = vand.u32 %v2982, 2147483648
    %v3004 = vor.u32 1.1754944e-38, %v3003
    %v3005 = vsel %vm3002, %v3004, %v3000
    %v3006 = vmul.f32 %v2973, %v3005
    %v3007 = vrcp.pop %v2985
    %v3008 = vmul.f32 %v2985, %v3007
    %v3009 = vsub.f32 1.0, %v3008
    %v3010 = vmul.f32 %v3007, %v3009
    %v3011 = vadd.f32 %v3007, %v3010
    %vm3012 = vweird.f32 %v2985
    %vm3013 = vweird.f32 %v3007
    %vm3014 = vmor %vm3012, %vm3013
    %v3015 = vsel %vm3014, %v3007, %v3011
    %v3016 = vand.u32 2147483647, %v2985
    %vm3017 = vcmp.eq.f32.partialorder %v3016, 8.507059e+37
    %v3018 = vand.u32 %v2985, 2147483648
    %v3019 = vor.u32 1.1754944e-38, %v3018
    %v3020 = vsel %vm3017, %v3019, %v3015
    %v3021 = vmul.f32 %v2975, %v3020
    %v3022 = vrcp.pop %v2988
    %v3023 = vmul.f32 %v2988, %v3022
    %v3024 = vsub.f32 1.0, %v3023
    %v3025 = vmul.f32 %v3022, %v3024
    %v3026 = vadd.f32 %v3022, %v3025
    %vm3027 = vweird.f32 %v2988
    %vm3028 = vweird.f32 %v3022
    %vm3029 = vmor %vm3027, %vm3028
    %v3030 = vsel %vm3029, %v3022, %v3026
    %v3031 = vand.u32 2147483647, %v2988
    %vm3032 = vcmp.eq.f32.partialorder %v3031, 8.507059e+37
    %v3033 = vand.u32 %v2988, 2147483648
    %v3034 = vor.u32 1.1754944e-38, %v3033
    %v3035 = vsel %vm3032, %v3034, %v3030
    %v3036 = vmul.f32 %v2977, %v3035
    %v3037 = vrcp.pop %v2991
    %v3038 = vmul.f32 %v2991, %v3037
    %v3039 = vsub.f32 1.0, %v3038
    %v3040 = vmul.f32 %v3037, %v3039
    %v3041 = vadd.f32 %v3037, %v3040
    %vm3042 = vweird.f32 %v2991
    %vm3043 = vweird.f32 %v3037
    %vm3044 = vmor %vm3042, %vm3043
    %v3045 = vsel %vm3044, %v3037, %v3041
    %v3046 = vand.u32 2147483647, %v2991
    %vm3047 = vcmp.eq.f32.partialorder %v3046, 8.507059e+37
    %v3048 = vand.u32 %v2991, 2147483648
    %v3049 = vor.u32 1.1754944e-38, %v3048
    %v3050 = vsel %vm3047, %v3049, %v3045
    %v3051 = vmul.f32 %v2979, %v3050
    %v3053 = vsel %vm119, %v3006, 0
    %v3056 = vsel %vm119, %v3021, 0
    %v3059 = vsel %vm119, %v3036, 0
    %v3062 = vsel %vm119, %v3051, 0
    %3064 = vmatpush.msra.mxu0 0.0
    %3065 = vmatpush.msra.mxu0 0.0
    %3066 = vmatpush.msra.mxu0 0.0
    %3067 = vmatpush.msra.mxu0 0.0
    %3068 = vmatpush.msra.mxu0 0.0
    %3069 = vmatpush.msra.mxu0 0.0
    %3070 = vmatpush.msra.mxu0 0.0
    %3071 = vmatpush.msra.mxu0 0.0
    %3072 = vmatpush.msra.mxu0 0.0
    %3073 = vmatpush.msra.mxu0 0.0
    %3074 = vmatpush.msra.mxu0 0.0
    %3075 = vmatpush.msra.mxu0 0.0
    %3076 = vmatpush.msra.mxu0 %v2887
    %3077 = vmatpush.msra.mxu0 %v2884
    %3078 = vmatpush.msra.mxu0 %v2881
    %3079 = vmatpush.msra.mxu0 %v2878
    %3080 = vmatmul.f32.gmra.mxu0 %v3053
    %v3081 = vpop.f32.mrf.mxu0
    %v3082 = vadd.f32 0.0, %v3081
    %3083 = vmatmul.f32.gmra.mxu0 %v3056
    %v3084 = vpop.f32.mrf.mxu0
    %v3085 = vadd.f32 0.0, %v3084
    %3086 = vmatmul.f32.gmra.mxu0 %v3059
    %v3087 = vpop.f32.mrf.mxu0
    %v3088 = vadd.f32 0.0, %v3087
    %3089 = vmatmul.f32.gmra.mxu0 %v3062
    %v3090 = vpop.f32.mrf.mxu0
    %v3091 = vadd.f32 0.0, %v3090
    %3092 = vdwg.mxu0
    %v3094 = vsel %vm492, %v3082, 0
    %v3097 = vsel %vm492, %v3085, 0
    %v3100 = vsel %vm492, %v3088, 0
    %v3103 = vsel %vm492, %v3091, 0
    %3105 = vmatpush.msra.mxu0 0.0
    %3106 = vmatpush.msra.mxu0 0.0
    %3107 = vmatpush.msra.mxu0 0.0
    %3108 = vmatpush.msra.mxu0 0.0
    %3109 = vmatpush.msra.mxu0 0.0
    %3110 = vmatpush.msra.mxu0 0.0
    %3111 = vmatpush.msra.mxu0 0.0
    %3112 = vmatpush.msra.mxu0 0.0
    %3113 = vmatpush.msra.mxu0 0.0
    %3114 = vmatpush.msra.mxu0 0.0
    %3115 = vmatpush.msra.mxu0 0.0
    %3116 = vmatpush.msra.mxu0 0.0
    %3117 = vmatpush.msra.mxu0 0.0
    %3118 = vmatpush.msra.mxu0 0.0
    %3119 = vmatpush.msra.mxu0 %v2902
    %3120 = vmatpush.msra.mxu0 %v2901
    %3121 = vmatmul.f32.gmra.mxu0 %v3094
    %v3122 = vpop.f32.mrf.mxu0
    %v3123 = vadd.f32 0.0, %v3122
    %3124 = vmatmul.f32.gmra.mxu0 %v3097
    %v3125 = vpop.f32.mrf.mxu0
    %v3126 = vadd.f32 0.0, %v3125
    %3127 = vmatmul.f32.gmra.mxu0 %v3100
    %v3128 = vpop.f32.mrf.mxu0
    %v3129 = vadd.f32 0.0, %v3128
    %3130 = vmatmul.f32.gmra.mxu0 %v3103
    %v3131 = vpop.f32.mrf.mxu0
    %v3132 = vadd.f32 0.0, %v3131
    %3133 = vdwg.mxu0
    %v3135 = vsel %vm492, %v2556, 0
    %v3138 = vsel %vm492, %v2559, 0
    %v3141 = vsel %vm492, %v2562, 0
    %v3144 = vsel %vm492, %v2565, 0
    %3146 = vmatpush.msra.mxu0 0.0
    %3147 = vmatpush.msra.mxu0 0.0
    %3148 = vmatpush.msra.mxu0 0.0
    %3149 = vmatpush.msra.mxu0 0.0
    %3150 = vmatpush.msra.mxu0 0.0
    %3151 = vmatpush.msra.mxu0 0.0
    %3152 = vmatpush.msra.mxu0 0.0
    %3153 = vmatpush.msra.mxu0 0.0
    %3154 = vmatpush.msra.mxu0 0.0
    %3155 = vmatpush.msra.mxu0 0.0
    %3156 = vmatpush.msra.mxu0 0.0
    %3157 = vmatpush.msra.mxu0 0.0
    %3158 = vmatpush.msra.mxu0 0.0
    %3159 = vmatpush.msra.mxu0 0.0
    %3160 = vmatpush.msra.mxu0 %v2376
    %3161 = vmatpush.msra.mxu0 %v2375
    %3162 = vmatmul.f32.gmra.mxu0 %v3135
    %v3163 = vpop.f32.mrf.mxu0
    %v3164 = vadd.f32 %v3123, %v3163
    %3165 = vmatmul.f32.gmra.mxu0 %v3138
    %v3166 = vpop.f32.mrf.mxu0
    %v3167 = vadd.f32 %v3126, %v3166
    %3168 = vmatmul.f32.gmra.mxu0 %v3141
    %v3169 = vpop.f32.mrf.mxu0
    %v3170 = vadd.f32 %v3129, %v3169
    %3171 = vmatmul.f32.gmra.mxu0 %v3144
    %v3172 = vpop.f32.mrf.mxu0
    %v3173 = vadd.f32 %v3132, %v3172
    %3174 = vdwg.mxu0
    %v3176 = vsel %vm492, %v2794, 0
    %v3179 = vsel %vm492, %v2797, 0
    %v3182 = vsel %vm492, %v2800, 0
    %v3185 = vsel %vm492, %v2803, 0
    %v3188 = vsel %vm492, %v2842, 0
    %v3191 = vsel %vm492, %v2845, 0
    %v3194 = vsel %vm492, %v2848, 0
    %v3197 = vsel %vm492, %v2851, 0
    %3199 = vmatpush.xpose.msra.mxu0 0.0
    %3200 = vmatpush.xpose.msra.mxu0 0.0
    %3201 = vmatpush.xpose.msra.mxu0 0.0
    %3202 = vmatpush.xpose.msra.mxu0 0.0
    %3203 = vmatpush.xpose.msra.mxu0 0.0
    %3204 = vmatpush.xpose.msra.mxu0 0.0
    %3205 = vmatpush.xpose.msra.mxu0 0.0
    %3206 = vmatpush.xpose.msra.mxu0 0.0
    %3207 = vmatpush.xpose.msra.mxu0 0.0
    %3208 = vmatpush.xpose.msra.mxu0 0.0
    %3209 = vmatpush.xpose.msra.mxu0 0.0
    %3210 = vmatpush.xpose.msra.mxu0 0.0
    %3211 = vmatpush.xpose.msra.mxu0 %v3197
    %3212 = vmatpush.xpose.msra.mxu0 %v3194
    %3213 = vmatpush.xpose.msra.mxu0 %v3191
    %3214 = vmatpush.xpose.msra.mxu0 %v3188
    %3215 = vmatmul.f32.gmra.mxu0 %v3176
    %v3216 = vpop.f32.mrf.mxu0
    %v3217 = vadd.f32 0.0, %v3216
    %3218 = vmatmul.f32.gmra.mxu0 %v3179
    %v3219 = vpop.f32.mrf.mxu0
    %v3220 = vadd.f32 0.0, %v3219
    %3221 = vmatmul.f32.gmra.mxu0 %v3182
    %v3222 = vpop.f32.mrf.mxu0
    %v3223 = vadd.f32 0.0, %v3222
    %3224 = vmatmul.f32.gmra.mxu0 %v3185
    %v3225 = vpop.f32.mrf.mxu0
    %v3226 = vadd.f32 0.0, %v3225
    %3227 = vdwg.mxu0
    %v3228 = vsel %vm119, %v3217, -inf
    %3229 = vmax.xlane.f32.xlu0 %v3228
    %v3230 = vpop.xlane.xlu0 %3229
    %v3231 = vsel %vm119, %v3220, -inf
    %3232 = vmax.xlane.f32.xlu0 %v3231
    %v3233 = vpop.xlane.xlu0 %3232
    %v3234 = vsel %vm119, %v3223, -inf
    %3235 = vmax.xlane.f32.xlu0 %v3234
    %v3236 = vpop.xlane.xlu0 %3235
    %v3237 = vsel %vm119, %v3226, -inf
    %3238 = vmax.xlane.f32.xlu0 %v3237
    %v3239 = vpop.xlane.xlu0 %3238
    %v3240 = vsub.f32 %v3217, %v3230
    %v3241 = vsub.f32 %v3220, %v3233
    %v3242 = vsub.f32 %v3223, %v3236
    %v3243 = vsub.f32 %v3226, %v3239
    %v3244 = vmul.f32 %v3240, 1.442695
    %v3245 = vpow.pop %v3244
    %v3246 = vmul.f32 %v3241, 1.442695
    %v3247 = vpow.pop %v3246
    %v3248 = vmul.f32 %v3242, 1.442695
    %v3249 = vpow.pop %v3248
    %v3250 = vmul.f32 %v3243, 1.442695
    %v3251 = vpow.pop %v3250
    %v3252 = vsel %vm119, %v3245, 0.0
    %3253 = vadd.xlane.f32.xlu0 %v3252
    %v3254 = vpop.xlane.xlu0 %3253
    %v3255 = vsel %vm119, %v3247, 0.0
    %3256 = vadd.xlane.f32.xlu0 %v3255
    %v3257 = vpop.xlane.xlu0 %3256
    %v3258 = vsel %vm119, %v3249, 0.0
    %3259 = vadd.xlane.f32.xlu0 %v3258
    %v3260 = vpop.xlane.xlu0 %3259
    %v3261 = vsel %vm119, %v3251, 0.0
    %3262 = vadd.xlane.f32.xlu0 %v3261
    %v3263 = vpop.xlane.xlu0 %3262
    %v3264 = vrcp.pop %v3254
    %v3265 = vmul.f32 %v3254, %v3264
    %v3266 = vsub.f32 1.0, %v3265
    %v3267 = vmul.f32 %v3264, %v3266
    %v3268 = vadd.f32 %v3264, %v3267
    %vm3269 = vweird.f32 %v3254
    %vm3270 = vweird.f32 %v3264
    %vm3271 = vmor %vm3269, %vm3270
    %v3272 = vsel %vm3271, %v3264, %v3268
    %v3273 = vand.u32 2147483647, %v3254
    %vm3274 = vcmp.eq.f32.partialorder %v3273, 8.507059e+37
    %v3275 = vand.u32 %v3254, 2147483648
    %v3276 = vor.u32 1.1754944e-38, %v3275
    %v3277 = vsel %vm3274, %v3276, %v3272
    %v3278 = vmul.f32 %v3245, %v3277
    %v3279 = vrcp.pop %v3257
    %v3280 = vmul.f32 %v3257, %v3279
    %v3281 = vsub.f32 1.0, %v3280
    %v3282 = vmul.f32 %v3279, %v3281
    %v3283 = vadd.f32 %v3279, %v3282
    %vm3284 = vweird.f32 %v3257
    %vm3285 = vweird.f32 %v3279
    %vm3286 = vmor %vm3284, %vm3285
    %v3287 = vsel %vm3286, %v3279, %v3283
    %v3288 = vand.u32 2147483647, %v3257
    %vm3289 = vcmp.eq.f32.partialorder %v3288, 8.507059e+37
    %v3290 = vand.u32 %v3257, 2147483648
    %v3291 = vor.u32 1.1754944e-38, %v3290
    %v3292 = vsel %vm3289, %v3291, %v3287
    %v3293 = vmul.f32 %v3247, %v3292
    %v3294 = vrcp.pop %v3260
    %v3295 = vmul.f32 %v3260, %v3294
    %v3296 = vsub.f32 1.0, %v3295
    %v3297 = vmul.f32 %v3294, %v3296
    %v3298 = vadd.f32 %v3294, %v3297
    %vm3299 = vweird.f32 %v3260
    %vm3300 = vweird.f32 %v3294
    %vm3301 = vmor %vm3299, %vm3300
    %v3302 = vsel %vm3301, %v3294, %v3298
    %v3303 = vand.u32 2147483647, %v3260
    %vm3304 = vcmp.eq.f32.partialorder %v3303, 8.507059e+37
    %v3305 = vand.u32 %v3260, 2147483648
    %v3306 = vor.u32 1.1754944e-38, %v3305
    %v3307 = vsel %vm3304, %v3306, %v3302
    %v3308 = vmul.f32 %v3249, %v3307
    %v3309 = vrcp.pop %v3263
    %v3310 = vmul.f32 %v3263, %v3309
    %v3311 = vsub.f32 1.0, %v3310
    %v3312 = vmul.f32 %v3309, %v3311
    %v3313 = vadd.f32 %v3309, %v3312
    %vm3314 = vweird.f32 %v3263
    %vm3315 = vweird.f32 %v3309
    %vm3316 = vmor %vm3314, %vm3315
    %v3317 = vsel %vm3316, %v3309, %v3313
    %v3318 = vand.u32 2147483647, %v3263
    %vm3319 = vcmp.eq.f32.partialorder %v3318, 8.507059e+37
    %v3320 = vand.u32 %v3263, 2147483648
    %v3321 = vor.u32 1.1754944e-38, %v3320
    %v3322 = vsel %vm3319, %v3321, %v3317
    %v3323 = vmul.f32 %v3251, %v3322
    %v3325 = vsel %vm119, %v3278, 0
    %v3328 = vsel %vm119, %v3293, 0
    %v3331 = vsel %vm119, %v3308, 0
    %v3334 = vsel %vm119, %v3323, 0
    %3336 = vmatpush.msra.mxu0 0.0
    %3337 = vmatpush.msra.mxu0 0.0
    %3338 = vmatpush.msra.mxu0 0.0
    %3339 = vmatpush.msra.mxu0 0.0
    %3340 = vmatpush.msra.mxu0 0.0
    %3341 = vmatpush.msra.mxu0 0.0
    %3342 = vmatpush.msra.mxu0 0.0
    %3343 = vmatpush.msra.mxu0 0.0
    %3344 = vmatpush.msra.mxu0 0.0
    %3345 = vmatpush.msra.mxu0 0.0
    %3346 = vmatpush.msra.mxu0 0.0
    %3347 = vmatpush.msra.mxu0 0.0
    %3348 = vmatpush.msra.mxu0 %v2899
    %3349 = vmatpush.msra.mxu0 %v2896
    %3350 = vmatpush.msra.mxu0 %v2893
    %3351 = vmatpush.msra.mxu0 %v2890
    %3352 = vmatmul.f32.gmra.mxu0 %v3325
    %v3353 = vpop.f32.mrf.mxu0
    %v3354 = vadd.f32 0.0, %v3353
    %3355 = vmatmul.f32.gmra.mxu0 %v3328
    %v3356 = vpop.f32.mrf.mxu0
    %v3357 = vadd.f32 0.0, %v3356
    %3358 = vmatmul.f32.gmra.mxu0 %v3331
    %v3359 = vpop.f32.mrf.mxu0
    %v3360 = vadd.f32 0.0, %v3359
    %3361 = vmatmul.f32.gmra.mxu0 %v3334
    %v3362 = vpop.f32.mrf.mxu0
    %v3363 = vadd.f32 0.0, %v3362
    %3364 = vdwg.mxu0
    %v3366 = vsel %vm492, %v3354, 0
    %v3369 = vsel %vm492, %v3357, 0
    %v3372 = vsel %vm492, %v3360, 0
    %v3375 = vsel %vm492, %v3363, 0
    %3377 = vmatpush.msra.mxu0 0.0
    %3378 = vmatpush.msra.mxu0 0.0
    %3379 = vmatpush.msra.mxu0 0.0
    %3380 = vmatpush.msra.mxu0 0.0
    %3381 = vmatpush.msra.mxu0 0.0
    %3382 = vmatpush.msra.mxu0 0.0
    %3383 = vmatpush.msra.mxu0 0.0
    %3384 = vmatpush.msra.mxu0 0.0
    %3385 = vmatpush.msra.mxu0 0.0
    %3386 = vmatpush.msra.mxu0 0.0
    %3387 = vmatpush.msra.mxu0 0.0
    %3388 = vmatpush.msra.mxu0 0.0
    %3389 = vmatpush.msra.mxu0 0.0
    %3390 = vmatpush.msra.mxu0 0.0
    %3391 = vmatpush.msra.mxu0 %v2902
    %3392 = vmatpush.msra.mxu0 %v2901
    %3393 = vmatmul.f32.gmra.mxu0 %v3366
    %v3394 = vpop.f32.mrf.mxu0
    %v3395 = vadd.f32 0.0, %v3394
    %3396 = vmatmul.f32.gmra.mxu0 %v3369
    %v3397 = vpop.f32.mrf.mxu0
    %v3398 = vadd.f32 0.0, %v3397
    %3399 = vmatmul.f32.gmra.mxu0 %v3372
    %v3400 = vpop.f32.mrf.mxu0
    %v3401 = vadd.f32 0.0, %v3400
    %3402 = vmatmul.f32.gmra.mxu0 %v3375
    %v3403 = vpop.f32.mrf.mxu0
    %v3404 = vadd.f32 0.0, %v3403
    %3405 = vdwg.mxu0
    %v3407 = vsel %vm492, %v2746, 0
    %v3410 = vsel %vm492, %v2749, 0
    %v3413 = vsel %vm492, %v2752, 0
    %v3416 = vsel %vm492, %v2755, 0
    %3418 = vmatpush.msra.mxu0 0.0
    %3419 = vmatpush.msra.mxu0 0.0
    %3420 = vmatpush.msra.mxu0 0.0
    %3421 = vmatpush.msra.mxu0 0.0
    %3422 = vmatpush.msra.mxu0 0.0
    %3423 = vmatpush.msra.mxu0 0.0
    %3424 = vmatpush.msra.mxu0 0.0
    %3425 = vmatpush.msra.mxu0 0.0
    %3426 = vmatpush.msra.mxu0 0.0
    %3427 = vmatpush.msra.mxu0 0.0
    %3428 = vmatpush.msra.mxu0 0.0
    %3429 = vmatpush.msra.mxu0 0.0
    %3430 = vmatpush.msra.mxu0 0.0
    %3431 = vmatpush.msra.mxu0 0.0
    %3432 = vmatpush.msra.mxu0 %v2376
    %3433 = vmatpush.msra.mxu0 %v2375
    %3434 = vmatmul.f32.gmra.mxu0 %v3407
    %v3435 = vpop.f32.mrf.mxu0
    %v3436 = vadd.f32 %v3395, %v3435
    %3437 = vmatmul.f32.gmra.mxu0 %v3410
    %v3438 = vpop.f32.mrf.mxu0
    %v3439 = vadd.f32 %v3398, %v3438
    %3440 = vmatmul.f32.gmra.mxu0 %v3413
    %v3441 = vpop.f32.mrf.mxu0
    %v3442 = vadd.f32 %v3401, %v3441
    %3443 = vmatmul.f32.gmra.mxu0 %v3416
    %v3444 = vpop.f32.mrf.mxu0
    %v3445 = vadd.f32 %v3404, %v3444
    %3446 = vdwg.mxu0
    %v3447 = vadd.f32 %v2003, %v3164
    %v3448 = vadd.f32 %v2004, %v3167
    %v3449 = vadd.f32 %v2005, %v3170
    %v3450 = vadd.f32 %v2006, %v3173
    %v3451 = vadd.f32 %v2007, %v3436
    %v3452 = vadd.f32 %v2008, %v3439
    %v3453 = vadd.f32 %v2009, %v3442
    %v3454 = vadd.f32 %v2010, %v3445
    %v3455 = vld [vmem:[%s4 + $0x15] sm:$0x1]
    %v3456 = vperm.slane %v3455, 0
    %v3457 = vadd.f32 %v3447, %v3456
    %v3458 = vadd.f32 %v3448, %v3456
    %v3459 = vadd.f32 %v3449, %v3456
    %v3460 = vadd.f32 %v3450, %v3456
    %v3461 = vadd.f32 %v3451, %v3456
    %v3462 = vadd.f32 %v3452, %v3456
    %v3463 = vadd.f32 %v3453, %v3456
    %v3464 = vadd.f32 %v3454, %v3456
    %v3465 = vsel %vm119, %v3457, 0.0
    %3466 = vadd.xlane.f32.xlu0 %v3465
    %v3467 = vpop.xlane.xlu0 %3466
    %v3468 = vsel %vm119, %v3458, 0.0
    %3469 = vadd.xlane.f32.xlu0 %v3468
    %v3470 = vpop.xlane.xlu0 %3469
    %v3471 = vsel %vm119, %v3459, 0.0
    %3472 = vadd.xlane.f32.xlu0 %v3471
    %v3473 = vpop.xlane.xlu0 %3472
    %v3474 = vsel %vm119, %v3460, 0.0
    %3475 = vadd.xlane.f32.xlu0 %v3474
    %v3476 = vpop.xlane.xlu0 %3475
    %v3477 = vsel %vm119, %v3461, 0.0
    %3478 = vadd.xlane.f32.xlu0 %v3477
    %v3479 = vpop.xlane.xlu0 %3478
    %v3480 = vsel %vm119, %v3462, 0.0
    %3481 = vadd.xlane.f32.xlu0 %v3480
    %v3482 = vpop.xlane.xlu0 %3481
    %v3483 = vsel %vm119, %v3463, 0.0
    %3484 = vadd.xlane.f32.xlu0 %v3483
    %v3485 = vpop.xlane.xlu0 %3484
    %v3486 = vsel %vm119, %v3464, 0.0
    %3487 = vadd.xlane.f32.xlu0 %v3486
    %v3488 = vpop.xlane.xlu0 %3487
    %v3489 = vmul.f32 %v3467, %v150
    %v3490 = vmul.f32 %v3470, %v150
    %v3491 = vmul.f32 %v3473, %v150
    %v3492 = vmul.f32 %v3476, %v150
    %v3493 = vmul.f32 %v3479, %v150
    %v3494 = vmul.f32 %v3482, %v150
    %v3495 = vmul.f32 %v3485, %v150
    %v3496 = vmul.f32 %v3488, %v150
    %v3497 = vsub.f32 %v3457, %v3489
    %v3498 = vsub.f32 %v3458, %v3490
    %v3499 = vsub.f32 %v3459, %v3491
    %v3500 = vsub.f32 %v3460, %v3492
    %v3501 = vsub.f32 %v3461, %v3493
    %v3502 = vsub.f32 %v3462, %v3494
    %v3503 = vsub.f32 %v3463, %v3495
    %v3504 = vsub.f32 %v3464, %v3496
    %v3505 = vmul.f32 %v3497, %v3497
    %v3506 = vmul.f32 %v3498, %v3498
    %v3507 = vmul.f32 %v3499, %v3499
    %v3508 = vmul.f32 %v3500, %v3500
    %v3509 = vmul.f32 %v3501, %v3501
    %v3510 = vmul.f32 %v3502, %v3502
    %v3511 = vmul.f32 %v3503, %v3503
    %v3512 = vmul.f32 %v3504, %v3504
    %v3513 = vsel %vm119, %v3505, 0.0
    %3514 = vadd.xlane.f32.xlu0 %v3513
    %v3515 = vpop.xlane.xlu0 %3514
    %v3516 = vsel %vm119, %v3506, 0.0
    %3517 = vadd.xlane.f32.xlu0 %v3516
    %v3518 = vpop.xlane.xlu0 %3517
    %v3519 = vsel %vm119, %v3507, 0.0
    %3520 = vadd.xlane.f32.xlu0 %v3519
    %v3521 = vpop.xlane.xlu0 %3520
    %v3522 = vsel %vm119, %v3508, 0.0
    %3523 = vadd.xlane.f32.xlu0 %v3522
    %v3524 = vpop.xlane.xlu0 %3523
    %v3525 = vsel %vm119, %v3509, 0.0
    %3526 = vadd.xlane.f32.xlu0 %v3525
    %v3527 = vpop.xlane.xlu0 %3526
    %v3528 = vsel %vm119, %v3510, 0.0
    %3529 = vadd.xlane.f32.xlu0 %v3528
    %v3530 = vpop.xlane.xlu0 %3529
    %v3531 = vsel %vm119, %v3511, 0.0
    %3532 = vadd.xlane.f32.xlu0 %v3531
    %v3533 = vpop.xlane.xlu0 %3532
    %v3534 = vsel %vm119, %v3512, 0.0
    %3535 = vadd.xlane.f32.xlu0 %v3534
    %v3536 = vpop.xlane.xlu0 %3535
    %v3537 = vmul.f32 %v3515, %v150
    %v3538 = vmul.f32 %v3518, %v150
    %v3539 = vmul.f32 %v3521, %v150
    %v3540 = vmul.f32 %v3524, %v150
    %v3541 = vmul.f32 %v3527, %v150
    %v3542 = vmul.f32 %v3530, %v150
    %v3543 = vmul.f32 %v3533, %v150
    %v3544 = vmul.f32 %v3536, %v150
    %v3545 = vadd.f32 %v3537, 1e-05
    %v3546 = vadd.f32 %v3538, 1e-05
    %v3547 = vadd.f32 %v3539, 1e-05
    %v3548 = vadd.f32 %v3540, 1e-05
    %v3549 = vadd.f32 %v3541, 1e-05
    %v3550 = vadd.f32 %v3542, 1e-05
    %v3551 = vadd.f32 %v3543, 1e-05
    %v3552 = vadd.f32 %v3544, 1e-05
    %v3553 = vrsqrt.pop %v3545
    %v3554 = vmul.f32 %v3553, %v3545
    %v3555 = vmul.f32 %v3554, %v3553
    %v3556 = vmul.f32 0.5, %v3555
    %v3557 = vsub.f32 1.5, %v3556
    %v3558 = vmul.f32 %v3553, %v3557
    %vm3559 = vweird.f32 %v3545
    %vm3560 = vweird.f32 %v3553
    %vm3561 = vmor %vm3559, %vm3560
    %v3562 = vsel %vm3561, %v3553, %v3558
    %v3563 = vrsqrt.pop %v3546
    %v3564 = vmul.f32 %v3563, %v3546
    %v3565 = vmul.f32 %v3564, %v3563
    %v3566 = vmul.f32 0.5, %v3565
    %v3567 = vsub.f32 1.5, %v3566
    %v3568 = vmul.f32 %v3563, %v3567
    %vm3569 = vweird.f32 %v3546
    %vm3570 = vweird.f32 %v3563
    %vm3571 = vmor %vm3569, %vm3570
    %v3572 = vsel %vm3571, %v3563, %v3568
    %v3573 = vrsqrt.pop %v3547
    %v3574 = vmul.f32 %v3573, %v3547
    %v3575 = vmul.f32 %v3574, %v3573
    %v3576 = vmul.f32 0.5, %v3575
    %v3577 = vsub.f32 1.5, %v3576
    %v3578 = vmul.f32 %v3573, %v3577
    %vm3579 = vweird.f32 %v3547
    %vm3580 = vweird.f32 %v3573
    %vm3581 = vmor %vm3579, %vm3580
    %v3582 = vsel %vm3581, %v3573, %v3578
    %v3583 = vrsqrt.pop %v3548
    %v3584 = vmul.f32 %v3583, %v3548
    %v3585 = vmul.f32 %v3584, %v3583
    %v3586 = vmul.f32 0.5, %v3585
    %v3587 = vsub.f32 1.5, %v3586
    %v3588 = vmul.f32 %v3583, %v3587
    %vm3589 = vweird.f32 %v3548
    %vm3590 = vweird.f32 %v3583
    %vm3591 = vmor %vm3589, %vm3590
    %v3592 = vsel %vm3591, %v3583, %v3588
    %v3593 = vrsqrt.pop %v3549
    %v3594 = vmul.f32 %v3593, %v3549
    %v3595 = vmul.f32 %v3594, %v3593
    %v3596 = vmul.f32 0.5, %v3595
    %v3597 = vsub.f32 1.5, %v3596
    %v3598 = vmul.f32 %v3593, %v3597
    %vm3599 = vweird.f32 %v3549
    %vm3600 = vweird.f32 %v3593
    %vm3601 = vmor %vm3599, %vm3600
    %v3602 = vsel %vm3601, %v3593, %v3598
    %v3603 = vrsqrt.pop %v3550
    %v3604 = vmul.f32 %v3603, %v3550
    %v3605 = vmul.f32 %v3604, %v3603
    %v3606 = vmul.f32 0.5, %v3605
    %v3607 = vsub.f32 1.5, %v3606
    %v3608 = vmul.f32 %v3603, %v3607
    %vm3609 = vweird.f32 %v3550
    %vm3610 = vweird.f32 %v3603
    %vm3611 = vmor %vm3609, %vm3610
    %v3612 = vsel %vm3611, %v3603, %v3608
    %v3613 = vrsqrt.pop %v3551
    %v3614 = vmul.f32 %v3613, %v3551
    %v3615 = vmul.f32 %v3614, %v3613
    %v3616 = vmul.f32 0.5, %v3615
    %v3617 = vsub.f32 1.5, %v3616
    %v3618 = vmul.f32 %v3613, %v3617
    %vm3619 = vweird.f32 %v3551
    %vm3620 = vweird.f32 %v3613
    %vm3621 = vmor %vm3619, %vm3620
    %v3622 = vsel %vm3621, %v3613, %v3618
    %v3623 = vrsqrt.pop %v3552
    %v3624 = vmul.f32 %v3623, %v3552
    %v3625 = vmul.f32 %v3624, %v3623
    %v3626 = vmul.f32 0.5, %v3625
    %v3627 = vsub.f32 1.5, %v3626
    %v3628 = vmul.f32 %v3623, %v3627
    %vm3629 = vweird.f32 %v3552
    %vm3630 = vweird.f32 %v3623
    %vm3631 = vmor %vm3629, %vm3630
    %v3632 = vsel %vm3631, %v3623, %v3628
    %v3633 = vmul.f32 %v3497, %v3562
    %v3634 = vmul.f32 %v3498, %v3572
    %v3635 = vmul.f32 %v3499, %v3582
    %v3636 = vmul.f32 %v3500, %v3592
    %v3637 = vmul.f32 %v3501, %v3602
    %v3638 = vmul.f32 %v3502, %v3612
    %v3639 = vmul.f32 %v3503, %v3622
    %v3640 = vmul.f32 %v3504, %v3632
    %v3641 = vld [vmem:[%s4 + $0x13] sm:$0x1]
    %v3642 = vperm.slane %v3641, 0
    %v3643 = vmul.f32 %v3633, %v3642
    %v3644 = vmul.f32 %v3634, %v3642
    %v3645 = vmul.f32 %v3635, %v3642
    %v3646 = vmul.f32 %v3636, %v3642
    %v3647 = vmul.f32 %v3637, %v3642
    %v3648 = vmul.f32 %v3638, %v3642
    %v3649 = vmul.f32 %v3639, %v3642
    %v3650 = vmul.f32 %v3640, %v3642
    %v3651 = vld [vmem:[%s4 + $0x14] sm:$0x1]
    %v3652 = vperm.slane %v3651, 0
    %v3653 = vadd.f32 %v3643, %v3652
    %v3654 = vadd.f32 %v3644, %v3652
    %v3655 = vadd.f32 %v3645, %v3652
    %v3656 = vadd.f32 %v3646, %v3652
    %v3657 = vadd.f32 %v3647, %v3652
    %v3658 = vadd.f32 %v3648, %v3652
    %v3659 = vadd.f32 %v3649, %v3652
    %v3660 = vadd.f32 %v3650, %v3652
    %s3661 = scalar_lea.vmem %s3, 32
    %v3662 = vld [vmem:[%s3661] sm:$0xff]
    %v3663 = vld [vmem:[%s3661 + $0x8] sm:$0xff]
    %v3664 = vld [vmem:[%s3661 + $0x10] sm:$0xff]
    %v3665 = vld [vmem:[%s3661 + $0x18] sm:$0xff]
    %v3666 = vld [vmem:[%s4 + $0x16] sm:$0x1]
    %v3667 = vperm.slane %v3666, 0
    %v3669 = vsel %vm119, %v3653, 0
    %v3672 = vsel %vm119, %v3654, 0
    %v3675 = vsel %vm119, %v3655, 0
    %v3678 = vsel %vm119, %v3656, 0
    %v3681 = vsel %vm119, %v3657, 0
    %v3684 = vsel %vm119, %v3658, 0
    %v3687 = vsel %vm119, %v3659, 0
    %v3690 = vsel %vm119, %v3660, 0
    %3692 = vmatpush.msra.mxu0 0.0
    %3693 = vmatpush.msra.mxu0 0.0
    %3694 = vmatpush.msra.mxu0 0.0
    %3695 = vmatpush.msra.mxu0 0.0
    %3696 = vmatpush.msra.mxu0 0.0
    %3697 = vmatpush.msra.mxu0 0.0
    %3698 = vmatpush.msra.mxu0 0.0
    %3699 = vmatpush.msra.mxu0 0.0
    %3700 = vmatpush.msra.mxu0 0.0
    %3701 = vmatpush.msra.mxu0 0.0
    %3702 = vmatpush.msra.mxu0 0.0
    %3703 = vmatpush.msra.mxu0 0.0
    %3704 = vmatpush.msra.mxu0 %v3665
    %3705 = vmatpush.msra.mxu0 %v3664
    %3706 = vmatpush.msra.mxu0 %v3663
    %3707 = vmatpush.msra.mxu0 %v3662
    %3708 = vmatmul.f32.gmra.mxu0 %v3669
    %v3709 = vpop.f32.mrf.mxu0
    %v3710 = vadd.f32 %v3667, %v3709
    %3711 = vmatmul.f32.gmra.mxu0 %v3672
    %v3712 = vpop.f32.mrf.mxu0
    %v3713 = vadd.f32 %v3667, %v3712
    %3714 = vmatmul.f32.gmra.mxu0 %v3675
    %v3715 = vpop.f32.mrf.mxu0
    %v3716 = vadd.f32 %v3667, %v3715
    %3717 = vmatmul.f32.gmra.mxu0 %v3678
    %v3718 = vpop.f32.mrf.mxu0
    %v3719 = vadd.f32 %v3667, %v3718
    %3720 = vmatmul.f32.gmra.mxu0 %v3681
    %v3721 = vpop.f32.mrf.mxu0
    %v3722 = vadd.f32 %v3667, %v3721
    %3723 = vmatmul.f32.gmra.mxu0 %v3684
    %v3724 = vpop.f32.mrf.mxu0
    %v3725 = vadd.f32 %v3667, %v3724
    %3726 = vmatmul.f32.gmra.mxu0 %v3687
    %v3727 = vpop.f32.mrf.mxu0
    %v3728 = vadd.f32 %v3667, %v3727
    %3729 = vmatmul.f32.gmra.mxu0 %v3690
    %v3730 = vpop.f32.mrf.mxu0
    %v3731 = vadd.f32 %v3667, %v3730
    %3732 = vdwg.mxu0
    %v3733 = vmul.f32 %v3710, %v3710
    %v3734 = vmul.f32 %v3713, %v3713
    %v3735 = vmul.f32 %v3716, %v3716
    %v3736 = vmul.f32 %v3719, %v3719
    %v3737 = vmul.f32 %v3722, %v3722
    %v3738 = vmul.f32 %v3725, %v3725
    %v3739 = vmul.f32 %v3728, %v3728
    %v3740 = vmul.f32 %v3731, %v3731
    %v3741 = vmul.f32 %v3710, %v3733
    %v3742 = vmul.f32 %v3713, %v3734
    %v3743 = vmul.f32 %v3716, %v3735
    %v3744 = vmul.f32 %v3719, %v3736
    %v3745 = vmul.f32 %v3722, %v3737
    %v3746 = vmul.f32 %v3725, %v3738
    %v3747 = vmul.f32 %v3728, %v3739
    %v3748 = vmul.f32 %v3731, %v3740
    %v3749 = vmul.f32 %v3741, 0.044715
    %v3750 = vmul.f32 %v3742, 0.044715
    %v3751 = vmul.f32 %v3743, 0.044715
    %v3752 = vmul.f32 %v3744, 0.044715
    %v3753 = vmul.f32 %v3745, 0.044715
    %v3754 = vmul.f32 %v3746, 0.044715
    %v3755 = vmul.f32 %v3747, 0.044715
    %v3756 = vmul.f32 %v3748, 0.044715
    %v3757 = vadd.f32 %v3710, %v3749
    %v3758 = vadd.f32 %v3713, %v3750
    %v3759 = vadd.f32 %v3716, %v3751
    %v3760 = vadd.f32 %v3719, %v3752
    %v3761 = vadd.f32 %v3722, %v3753
    %v3762 = vadd.f32 %v3725, %v3754
    %v3763 = vadd.f32 %v3728, %v3755
    %v3764 = vadd.f32 %v3731, %v3756
    %v3765 = vmul.f32 %v3757, 0.7978846
    %v3766 = vmul.f32 %v3758, 0.7978846
    %v3767 = vmul.f32 %v3759, 0.7978846
    %v3768 = vmul.f32 %v3760, 0.7978846
    %v3769 = vmul.f32 %v3761, 0.7978846
    %v3770 = vmul.f32 %v3762, 0.7978846
    %v3771 = vmul.f32 %v3763, 0.7978846
    %v3772 = vmul.f32 %v3764, 0.7978846
    %v3773 = vtanh.pop %v3765
    %v3774 = vtanh.pop %v3766
    %v3775 = vtanh.pop %v3767
    %v3776 = vtanh.pop %v3768
    %v3777 = vtanh.pop %v3769
    %v3778 = vtanh.pop %v3770
    %v3779 = vtanh.pop %v3771
    %v3780 = vtanh.pop %v3772
    %v3781 = vadd.f32 %v3773, 1.0
    %v3782 = vadd.f32 %v3774, 1.0
    %v3783 = vadd.f32 %v3775, 1.0
    %v3784 = vadd.f32 %v3776, 1.0
    %v3785 = vadd.f32 %v3777, 1.0
    %v3786 = vadd.f32 %v3778, 1.0
    %v3787 = vadd.f32 %v3779, 1.0
    %v3788 = vadd.f32 %v3780, 1.0
    %v3789 = vmul.f32 %v3781, 0.5
    %v3790 = vmul.f32 %v3782, 0.5
    %v3791 = vmul.f32 %v3783, 0.5
    %v3792 = vmul.f32 %v3784, 0.5
    %v3793 = vmul.f32 %v3785, 0.5
    %v3794 = vmul.f32 %v3786, 0.5
    %v3795 = vmul.f32 %v3787, 0.5
    %v3796 = vmul.f32 %v3788, 0.5
    %v3797 = vmul.f32 %v3710, %v3789
    %v3798 = vmul.f32 %v3713, %v3790
    %v3799 = vmul.f32 %v3716, %v3791
    %v3800 = vmul.f32 %v3719, %v3792
    %v3801 = vmul.f32 %v3722, %v3793
    %v3802 = vmul.f32 %v3725, %v3794
    %v3803 = vmul.f32 %v3728, %v3795
    %v3804 = vmul.f32 %v3731, %v3796
    %v3805 = vld [vmem:[%s2 + $0x80] sm:$0xff]
    %v3806 = vld [vmem:[%s2 + $0x88] sm:$0xff]
    %v3807 = vld [vmem:[%s2 + $0x90] sm:$0xff]
    %v3808 = vld [vmem:[%s2 + $0x98] sm:$0xff]
    %v3809 = vld [vmem:[%s2 + $0xa0] sm:$0xff]
    %v3810 = vld [vmem:[%s2 + $0xa8] sm:$0xff]
    %v3811 = vld [vmem:[%s2 + $0xb0] sm:$0xff]
    %v3812 = vld [vmem:[%s2 + $0xb8] sm:$0xff]
    %v3814 = vsel %vm45, %v3797, 0
    %v3817 = vsel %vm45, %v3798, 0
    %v3820 = vsel %vm45, %v3799, 0
    %v3823 = vsel %vm45, %v3800, 0
    %v3826 = vsel %vm45, %v3801, 0
    %v3829 = vsel %vm45, %v3802, 0
    %v3832 = vsel %vm45, %v3803, 0
    %v3835 = vsel %vm45, %v3804, 0
    %3837 = vmatpush.msra.mxu0 0.0
    %3838 = vmatpush.msra.mxu0 0.0
    %3839 = vmatpush.msra.mxu0 0.0
    %3840 = vmatpush.msra.mxu0 0.0
    %3841 = vmatpush.msra.mxu0 0.0
    %3842 = vmatpush.msra.mxu0 0.0
    %3843 = vmatpush.msra.mxu0 0.0
    %3844 = vmatpush.msra.mxu0 0.0
    %3845 = vmatpush.msra.mxu0 %v3812
    %3846 = vmatpush.msra.mxu0 %v3811
    %3847 = vmatpush.msra.mxu0 %v3810
    %3848 = vmatpush.msra.mxu0 %v3809
    %3849 = vmatpush.msra.mxu0 %v3808
    %3850 = vmatpush.msra.mxu0 %v3807
    %3851 = vmatpush.msra.mxu0 %v3806
    %3852 = vmatpush.msra.mxu0 %v3805
    %3853 = vmatmul.f32.gmra.mxu0 %v3814
    %v3854 = vpop.f32.mrf.mxu0
    %v3855 = vadd.f32 0.0, %v3854
    %3856 = vmatmul.f32.gmra.mxu0 %v3817
    %v3857 = vpop.f32.mrf.mxu0
    %v3858 = vadd.f32 0.0, %v3857
    %3859 = vmatmul.f32.gmra.mxu0 %v3820
    %v3860 = vpop.f32.mrf.mxu0
    %v3861 = vadd.f32 0.0, %v3860
    %3862 = vmatmul.f32.gmra.mxu0 %v3823
    %v3863 = vpop.f32.mrf.mxu0
    %v3864 = vadd.f32 0.0, %v3863
    %3865 = vmatmul.f32.gmra.mxu0 %v3826
    %v3866 = vpop.f32.mrf.mxu0
    %v3867 = vadd.f32 0.0, %v3866
    %3868 = vmatmul.f32.gmra.mxu0 %v3829
    %v3869 = vpop.f32.mrf.mxu0
    %v3870 = vadd.f32 0.0, %v3869
    %3871 = vmatmul.f32.gmra.mxu0 %v3832
    %v3872 = vpop.f32.mrf.mxu0
    %v3873 = vadd.f32 0.0, %v3872
    %3874 = vmatmul.f32.gmra.mxu0 %v3835
    %v3875 = vpop.f32.mrf.mxu0
    %v3876 = vadd.f32 0.0, %v3875
    %3877 = vdwg.mxu0
    %v3878 = vadd.f32 %v3457, %v3855
    %v3879 = vadd.f32 %v3458, %v3858
    %v3880 = vadd.f32 %v3459, %v3861
    %v3881 = vadd.f32 %v3460, %v3864
    %v3882 = vadd.f32 %v3461, %v3867
    %v3883 = vadd.f32 %v3462, %v3870
    %v3884 = vadd.f32 %v3463, %v3873
    %v3885 = vadd.f32 %v3464, %v3876
    %v3886 = vld [vmem:[%s4 + $0x17] sm:$0x1]
    %v3887 = vperm.slane %v3886, 0
    %v3888 = vadd.f32 %v3878, %v3887
    %v3889 = vadd.f32 %v3879, %v3887
    %v3890 = vadd.f32 %v3880, %v3887
    %v3891 = vadd.f32 %v3881, %v3887
    %v3892 = vadd.f32 %v3882, %v3887
    %v3893 = vadd.f32 %v3883, %v3887
    %v3894 = vadd.f32 %v3884, %v3887
    %v3895 = vadd.f32 %v3885, %v3887
    %v3896 = vsel %vm119, %v3888, 0.0
    %3897 = vadd.xlane.f32.xlu0 %v3896
    %v3898 = vpop.xlane.xlu0 %3897
    %v3899 = vsel %vm119, %v3889, 0.0
    %3900 = vadd.xlane.f32.xlu0 %v3899
    %v3901 = vpop.xlane.xlu0 %3900
    %v3902 = vsel %vm119, %v3890, 0.0
    %3903 = vadd.xlane.f32.xlu0 %v3902
    %v3904 = vpop.xlane.xlu0 %3903
    %v3905 = vsel %vm119, %v3891, 0.0
    %3906 = vadd.xlane.f32.xlu0 %v3905
    %v3907 = vpop.xlane.xlu0 %3906
    %v3908 = vsel %vm119, %v3892, 0.0
    %3909 = vadd.xlane.f32.xlu0 %v3908
    %v3910 = vpop.xlane.xlu0 %3909
    %v3911 = vsel %vm119, %v3893, 0.0
    %3912 = vadd.xlane.f32.xlu0 %v3911
    %v3913 = vpop.xlane.xlu0 %3912
    %v3914 = vsel %vm119, %v3894, 0.0
    %3915 = vadd.xlane.f32.xlu0 %v3914
    %v3916 = vpop.xlane.xlu0 %3915
    %v3917 = vsel %vm119, %v3895, 0.0
    %3918 = vadd.xlane.f32.xlu0 %v3917
    %v3919 = vpop.xlane.xlu0 %3918
    %v3920 = vmul.f32 %v3898, %v150
    %v3921 = vmul.f32 %v3901, %v150
    %v3922 = vmul.f32 %v3904, %v150
    %v3923 = vmul.f32 %v3907, %v150
    %v3924 = vmul.f32 %v3910, %v150
    %v3925 = vmul.f32 %v3913, %v150
    %v3926 = vmul.f32 %v3916, %v150
    %v3927 = vmul.f32 %v3919, %v150
    %v3928 = vsub.f32 %v3888, %v3920
    %v3929 = vsub.f32 %v3889, %v3921
    %v3930 = vsub.f32 %v3890, %v3922
    %v3931 = vsub.f32 %v3891, %v3923
    %v3932 = vsub.f32 %v3892, %v3924
    %v3933 = vsub.f32 %v3893, %v3925
    %v3934 = vsub.f32 %v3894, %v3926
    %v3935 = vsub.f32 %v3895, %v3927
    %v3936 = vmul.f32 %v3928, %v3928
    %v3937 = vmul.f32 %v3929, %v3929
    %v3938 = vmul.f32 %v3930, %v3930
    %v3939 = vmul.f32 %v3931, %v3931
    %v3940 = vmul.f32 %v3932, %v3932
    %v3941 = vmul.f32 %v3933, %v3933
    %v3942 = vmul.f32 %v3934, %v3934
    %v3943 = vmul.f32 %v3935, %v3935
    %v3944 = vsel %vm119, %v3936, 0.0
    %3945 = vadd.xlane.f32.xlu0 %v3944
    %v3946 = vpop.xlane.xlu0 %3945
    %v3947 = vsel %vm119, %v3937, 0.0
    %3948 = vadd.xlane.f32.xlu0 %v3947
    %v3949 = vpop.xlane.xlu0 %3948
    %v3950 = vsel %vm119, %v3938, 0.0
    %3951 = vadd.xlane.f32.xlu0 %v3950
    %v3952 = vpop.xlane.xlu0 %3951
    %v3953 = vsel %vm119, %v3939, 0.0
    %3954 = vadd.xlane.f32.xlu0 %v3953
    %v3955 = vpop.xlane.xlu0 %3954
    %v3956 = vsel %vm119, %v3940, 0.0
    %3957 = vadd.xlane.f32.xlu0 %v3956
    %v3958 = vpop.xlane.xlu0 %3957
    %v3959 = vsel %vm119, %v3941, 0.0
    %3960 = vadd.xlane.f32.xlu0 %v3959
    %v3961 = vpop.xlane.xlu0 %3960
    %v3962 = vsel %vm119, %v3942, 0.0
    %3963 = vadd.xlane.f32.xlu0 %v3962
    %v3964 = vpop.xlane.xlu0 %3963
    %v3965 = vsel %vm119, %v3943, 0.0
    %3966 = vadd.xlane.f32.xlu0 %v3965
    %v3967 = vpop.xlane.xlu0 %3966
    %v3968 = vmul.f32 %v3946, %v150
    %v3969 = vmul.f32 %v3949, %v150
    %v3970 = vmul.f32 %v3952, %v150
    %v3971 = vmul.f32 %v3955, %v150
    %v3972 = vmul.f32 %v3958, %v150
    %v3973 = vmul.f32 %v3961, %v150
    %v3974 = vmul.f32 %v3964, %v150
    %v3975 = vmul.f32 %v3967, %v150
    %v3976 = vadd.f32 %v3968, 1e-05
    %v3977 = vadd.f32 %v3969, 1e-05
    %v3978 = vadd.f32 %v3970, 1e-05
    %v3979 = vadd.f32 %v3971, 1e-05
    %v3980 = vadd.f32 %v3972, 1e-05
    %v3981 = vadd.f32 %v3973, 1e-05
    %v3982 = vadd.f32 %v3974, 1e-05
    %v3983 = vadd.f32 %v3975, 1e-05
    %v3984 = vrsqrt.pop %v3976
    %v3985 = vmul.f32 %v3984, %v3976
    %v3986 = vmul.f32 %v3985, %v3984
    %v3987 = vmul.f32 0.5, %v3986
    %v3988 = vsub.f32 1.5, %v3987
    %v3989 = vmul.f32 %v3984, %v3988
    %vm3990 = vweird.f32 %v3976
    %vm3991 = vweird.f32 %v3984
    %vm3992 = vmor %vm3990, %vm3991
    %v3993 = vsel %vm3992, %v3984, %v3989
    %v3994 = vrsqrt.pop %v3977
    %v3995 = vmul.f32 %v3994, %v3977
    %v3996 = vmul.f32 %v3995, %v3994
    %v3997 = vmul.f32 0.5, %v3996
    %v3998 = vsub.f32 1.5, %v3997
    %v3999 = vmul.f32 %v3994, %v3998
    %vm4000 = vweird.f32 %v3977
    %vm4001 = vweird.f32 %v3994
    %vm4002 = vmor %vm4000, %vm4001
    %v4003 = vsel %vm4002, %v3994, %v3999
    %v4004 = vrsqrt.pop %v3978
    %v4005 = vmul.f32 %v4004, %v3978
    %v4006 = vmul.f32 %v4005, %v4004
    %v4007 = vmul.f32 0.5, %v4006
    %v4008 = vsub.f32 1.5, %v4007
    %v4009 = vmul.f32 %v4004, %v4008
    %vm4010 = vweird.f32 %v3978
    %vm4011 = vweird.f32 %v4004
    %vm4012 = vmor %vm4010, %vm4011
    %v4013 = vsel %vm4012, %v4004, %v4009
    %v4014 = vrsqrt.pop %v3979
    %v4015 = vmul.f32 %v4014, %v3979
    %v4016 = vmul.f32 %v4015, %v4014
    %v4017 = vmul.f32 0.5, %v4016
    %v4018 = vsub.f32 1.5, %v4017
    %v4019 = vmul.f32 %v4014, %v4018
    %vm4020 = vweird.f32 %v3979
    %vm4021 = vweird.f32 %v4014
    %vm4022 = vmor %vm4020, %vm4021
    %v4023 = vsel %vm4022, %v4014, %v4019
    %v4024 = vrsqrt.pop %v3980
    %v4025 = vmul.f32 %v4024, %v3980
    %v4026 = vmul.f32 %v4025, %v4024
    %v4027 = vmul.f32 0.5, %v4026
    %v4028 = vsub.f32 1.5, %v4027
    %v4029 = vmul.f32 %v4024, %v4028
    %vm4030 = vweird.f32 %v3980
    %vm4031 = vweird.f32 %v4024
    %vm4032 = vmor %vm4030, %vm4031
    %v4033 = vsel %vm4032, %v4024, %v4029
    %v4034 = vrsqrt.pop %v3981
    %v4035 = vmul.f32 %v4034, %v3981
    %v4036 = vmul.f32 %v4035, %v4034
    %v4037 = vmul.f32 0.5, %v4036
    %v4038 = vsub.f32 1.5, %v4037
    %v4039 = vmul.f32 %v4034, %v4038
    %vm4040 = vweird.f32 %v3981
    %vm4041 = vweird.f32 %v4034
    %vm4042 = vmor %vm4040, %vm4041
    %v4043 = vsel %vm4042, %v4034, %v4039
    %v4044 = vrsqrt.pop %v3982
    %v4045 = vmul.f32 %v4044, %v3982
    %v4046 = vmul.f32 %v4045, %v4044
    %v4047 = vmul.f32 0.5, %v4046
    %v4048 = vsub.f32 1.5, %v4047
    %v4049 = vmul.f32 %v4044, %v4048
    %vm4050 = vweird.f32 %v3982
    %vm4051 = vweird.f32 %v4044
    %vm4052 = vmor %vm4050, %vm4051
    %v4053 = vsel %vm4052, %v4044, %v4049
    %v4054 = vrsqrt.pop %v3983
    %v4055 = vmul.f32 %v4054, %v3983
    %v4056 = vmul.f32 %v4055, %v4054
    %v4057 = vmul.f32 0.5, %v4056
    %v4058 = vsub.f32 1.5, %v4057
    %v4059 = vmul.f32 %v4054, %v4058
    %vm4060 = vweird.f32 %v3983
    %vm4061 = vweird.f32 %v4054
    %vm4062 = vmor %vm4060, %vm4061
    %v4063 = vsel %vm4062, %v4054, %v4059
    %v4064 = vmul.f32 %v3928, %v3993
    %v4065 = vmul.f32 %v3929, %v4003
    %v4066 = vmul.f32 %v3930, %v4013
    %v4067 = vmul.f32 %v3931, %v4023
    %v4068 = vmul.f32 %v3932, %v4033
    %v4069 = vmul.f32 %v3933, %v4043
    %v4070 = vmul.f32 %v3934, %v4053
    %v4071 = vmul.f32 %v3935, %v4063
    %v4072 = vld [vmem:[%s4 + $0x1] sm:$0x1]
    %v4073 = vperm.slane %v4072, 0
    %v4074 = vmul.f32 %v4064, %v4073
    %v4075 = vmul.f32 %v4065, %v4073
    %v4076 = vmul.f32 %v4066, %v4073
    %v4077 = vmul.f32 %v4067, %v4073
    %v4078 = vmul.f32 %v4068, %v4073
    %v4079 = vmul.f32 %v4069, %v4073
    %v4080 = vmul.f32 %v4070, %v4073
    %v4081 = vmul.f32 %v4071, %v4073
    %v4082 = vld [vmem:[%s4 + $0x2] sm:$0x1]
    %v4083 = vperm.slane %v4082, 0
    %v4084 = vadd.f32 %v4074, %v4083
    %v4085 = vadd.f32 %v4075, %v4083
    %v4086 = vadd.f32 %v4076, %v4083
    %v4087 = vadd.f32 %v4077, %v4083
    %v4088 = vadd.f32 %v4078, %v4083
    %v4089 = vadd.f32 %v4079, %v4083
    %v4090 = vadd.f32 %v4080, %v4083
    %v4091 = vadd.f32 %v4081, %v4083
    %v4092 = vsel %vm119, %v4084, 0.0
    %v4093 = vsel %vm119, %v4085, 0.0
    %v4094 = vadd.f32 %v4092, %v4093
    %v4095 = vsel %vm119, %v4086, 0.0
    %v4096 = vadd.f32 %v4094, %v4095
    %v4097 = vsel %vm119, %v4087, 0.0
    %v4098 = vadd.f32 %v4096, %v4097
    %v4099 = vrot.slane %v4098, 4
    %v4100 = vadd.f32 %v4098, %v4099
    %v4101 = vrot.slane %v4100, 2
    %v4102 = vadd.f32 %v4100, %v4101
    %v4103 = vrot.slane %v4102, 1
    %v4104 = vadd.f32 %v4102, %v4103
    %v4105 = vmul.f32 %v4104, %v150
    %v4106 = vsel %vm119, %v4088, 0.0
    %v4107 = vsel %vm119, %v4089, 0.0
    %v4108 = vadd.f32 %v4106, %v4107
    %v4109 = vsel %vm119, %v4090, 0.0
    %v4110 = vadd.f32 %v4108, %v4109
    %v4111 = vsel %vm119, %v4091, 0.0
    %v4112 = vadd.f32 %v4110, %v4111
    %v4113 = vrot.slane %v4112, 4
    %v4114 = vadd.f32 %v4112, %v4113
    %v4115 = vrot.slane %v4114, 2
    %v4116 = vadd.f32 %v4114, %v4115
    %v4117 = vrot.slane %v4116, 1
    %v4118 = vadd.f32 %v4116, %v4117
    %v4119 = vmul.f32 %v4118, %v150
    %vm4120 = vcmask 1040384
    %v4121 = vsel %vm4120, %v4105, %v4119
    %v4122 = vld [vmem:[%s4 + $0x20] sm:$0xff]
    %v4123 = vld [vmem:[%s4 + $0x28] sm:$0xff]
    %v4124 = vld [vmem:[%s4 + $0x30] sm:$0xff]
    %v4125 = vld [vmem:[%s4 + $0x38] sm:$0xff]
    %v4126 = vld [vmem:[%s4 + $0x3] sm:$0x1]
    %v4127 = vperm.slane %v4126, 0
    %v4129 = vsel %vm119, %v4121, 0
    %4131 = vmatpush.msra.mxu0 0.0
    %4132 = vmatpush.msra.mxu0 0.0
    %4133 = vmatpush.msra.mxu0 0.0
    %4134 = vmatpush.msra.mxu0 0.0
    %4135 = vmatpush.msra.mxu0 0.0
    %4136 = vmatpush.msra.mxu0 0.0
    %4137 = vmatpush.msra.mxu0 0.0
    %4138 = vmatpush.msra.mxu0 0.0
    %4139 = vmatpush.msra.mxu0 0.0
    %4140 = vmatpush.msra.mxu0 0.0
    %4141 = vmatpush.msra.mxu0 0.0
    %4142 = vmatpush.msra.mxu0 0.0
    %4143 = vmatpush.msra.mxu0 %v4125
    %4144 = vmatpush.msra.mxu0 %v4124
    %4145 = vmatpush.msra.mxu0 %v4123
    %4146 = vmatpush.msra.mxu0 %v4122
    %4147 = vmatmul.f32.gmra.mxu0 %v4129
    %v4148 = vpop.f32.mrf.mxu0
    %v4149 = vadd.f32 %v4127, %v4148
    %4150 = vdwg.mxu0
    %v4152 = vrot.slane %v4149, 1
    %4154 = vst [vmem:[#allocation2] sm:$0x1] %v4149
    %4155 = vst [vmem:[#allocation2 + $0x1] sm:$0x1] %v4152
    %4156 = vrot.lane.b32.xlu0 %v1122, 32
    %v4157 = vpop.permute.xlu0 %4156
    %4158 = vrot.lane.b32.xlu0 %v1137, 32
    %v4159 = vpop.permute.xlu0 %4158
    %4160 = vrot.lane.b32.xlu0 %v1152, 32
    %v4161 = vpop.permute.xlu0 %4160
    %4162 = vrot.lane.b32.xlu0 %v1167, 32
    %v4163 = vpop.permute.xlu0 %4162
    %4168 = vrot.lane.b32.xlu0 %v2480, 64
    %v4169 = vpop.permute.xlu0 %4168
    %4170 = vrot.lane.b32.xlu0 %v2495, 64
    %v4171 = vpop.permute.xlu0 %4170
    %4172 = vrot.lane.b32.xlu0 %v2510, 64
    %v4173 = vpop.permute.xlu0 %4172
    %4174 = vrot.lane.b32.xlu0 %v2525, 64
    %v4175 = vpop.permute.xlu0 %4174
    %4180 = vrot.lane.b32.xlu0 %v3006, 96
    %v4181 = vpop.permute.xlu0 %4180
    %4182 = vrot.lane.b32.xlu0 %v3021, 96
    %v4183 = vpop.permute.xlu0 %4182
    %4184 = vrot.lane.b32.xlu0 %v3036, 96
    %v4185 = vpop.permute.xlu0 %4184
    %4186 = vrot.lane.b32.xlu0 %v3051, 96
    %v4187 = vpop.permute.xlu0 %4186
    %v4192 = vsel %vm119, %v596, %v4157
    %v4193 = vsel %vm119, %v611, %v4159
    %v4194 = vsel %vm119, %v626, %v4161
    %v4195 = vsel %vm119, %v641, %v4163
    %v4196 = vsel %vm45, %v4192, %v4169
    %v4197 = vsel %vm45, %v4193, %v4171
    %v4198 = vsel %vm45, %v4194, %v4173
    %v4199 = vsel %vm45, %v4195, %v4175
    %vm4200 = vcmask 785408
    %v4201 = vsel %vm4200, %v4196, %v4181
    %v4202 = vsel %vm4200, %v4197, %v4183
    %v4203 = vsel %vm4200, %v4198, %v4185
    %v4204 = vsel %vm4200, %v4199, %v4187
    %4205 = vst [vmem:[%s6] sm:$0xff] %v4201
    %4206 = vst [vmem:[%s6 + $0x8] sm:$0xff] %v4202
    %4207 = vst [vmem:[%s6 + $0x10] sm:$0xff] %v4203
    %4208 = vst [vmem:[%s6 + $0x18] sm:$0xff] %v4204
    %4209 = vrot.lane.b32.xlu0 %v1394, 32
    %v4210 = vpop.permute.xlu0 %4209
    %4211 = vrot.lane.b32.xlu0 %v1409, 32
    %v4212 = vpop.permute.xlu0 %4211
    %4213 = vrot.lane.b32.xlu0 %v1424, 32
    %v4214 = vpop.permute.xlu0 %4213
    %4215 = vrot.lane.b32.xlu0 %v1439, 32
    %v4216 = vpop.permute.xlu0 %4215
    %4221 = vrot.lane.b32.xlu0 %v2670, 64
    %v4222 = vpop.permute.xlu0 %4221
    %4223 = vrot.lane.b32.xlu0 %v2685, 64
    %v4224 = vpop.permute.xlu0 %4223
    %4225 = vrot.lane.b32.xlu0 %v2700, 64
    %v4226 = vpop.permute.xlu0 %4225
    %4227 = vrot.lane.b32.xlu0 %v2715, 64
    %v4228 = vpop.permute.xlu0 %4227
    %4233 = vrot.lane.b32.xlu0 %v3278, 96
    %v4234 = vpop.permute.xlu0 %4233
    %4235 = vrot.lane.b32.xlu0 %v3293, 96
    %v4236 = vpop.permute.xlu0 %4235
    %4237 = vrot.lane.b32.xlu0 %v3308, 96
    %v4238 = vpop.permute.xlu0 %4237
    %4239 = vrot.lane.b32.xlu0 %v3323, 96
    %v4240 = vpop.permute.xlu0 %4239
    %v4245 = vsel %vm119, %v786, %v4210
    %v4246 = vsel %vm119, %v801, %v4212
    %v4247 = vsel %vm119, %v816, %v4214
    %v4248 = vsel %vm119, %v831, %v4216
    %v4249 = vsel %vm45, %v4245, %v4222
    %v4250 = vsel %vm45, %v4246, %v4224
    %v4251 = vsel %vm45, %v4247, %v4226
    %v4252 = vsel %vm45, %v4248, %v4228
    %v4253 = vsel %vm4200, %v4249, %v4234
    %v4254 = vsel %vm4200, %v4250, %v4236
    %v4255 = vsel %vm4200, %v4251, %v4238
    %v4256 = vsel %vm4200, %v4252, %v4240
    %4257 = vst [vmem:[%s6 + $0x20] sm:$0xff] %v4253
    %4258 = vst [vmem:[%s6 + $0x28] sm:$0xff] %v4254
    %4259 = vst [vmem:[%s6 + $0x30] sm:$0xff] %v4255
    %4260 = vst [vmem:[%s6 + $0x38] sm:$0xff] %v4256
    // Predicated region
    $region22: #{recorder_forward.1} parent=1 // pred_check
      _
    $region23: #{recorder_forward.1} parent=1 // pred_check_branch
      %4262 = sbr.rel (0) target = $region25
    $region24: #{recorder_forward.1} parent=1 // pred_region
      %4264 = vsyncadd [#allocation3], 0
      %s4265 = sshll.u32 [#allocation2], 4
      %s4266 = int_to_ptr.vmem [resolvable:$true] %s4265
      %s4267 = sshll.u32 %s5, 4
      %s4268 = int_to_ptr.hbm [resolvable:$true] %s4267
      %4273 = dma.vmem_to_hbm [thread:$0]  %s4266, 32, %s4268, [#allocation3], 16, 16, 1
    $region25: #{recorder_forward.1} parent=1 // pred_fallthru
      _
    // Predicated region
    $region26: #{recorder_forward.1} parent=1 // pred_check
      _
    $region27: #{recorder_forward.1} parent=1 // pred_check_branch
      %4275 = sbr.rel (0) target = $region29
    $region28: #{recorder_forward.1} parent=1 // pred_region
      _
    $region29: #{recorder_forward.1} parent=1 // pred_fallthru
      _
    // Predicated region
    $region30: #{recorder_forward.1} parent=1 // pred_check
      _
    $region31: #{recorder_forward.1} parent=1 // pred_check_branch
      %4277 = sbr.rel (0) target = $region33
    $region32: #{recorder_forward.1} parent=1 // pred_region
      %4279 = dma.done [#allocation3], 32
    $region33: #{recorder_forward.1} parent=1 // pred_fallthru
      _
    // Predicated region
    $region34: #{recorder_forward.1} parent=1 // pred_check
      _
    $region35: #{recorder_forward.1} parent=1 // pred_check_branch
      %4281 = sbr.rel (0) target = $region37
    $region36: #{recorder_forward.1} parent=1 // pred_region
      _
    $region37: #{recorder_forward.1} parent=1 // pred_fallthru
      _
    %4282 = vsyncpa [#allocation3], 1

</llo_original>
